<compile_context>
chip_gen: v5e
topology: v5e:2x2
jax: 0.10.0
libtpu: 0.0.40
codegen_flags: <defaults>
</compile_context>

<pallas_src>
import functools

import jax
import jax.numpy as jnp
from jax.experimental import pallas as pl
from jax.experimental.pallas import tpu as pltpu


def _vmem_limit_bytes():
    """~75% of physical VMEM (64 MiB chips need headroom), capped at 96 MiB."""
    cap = 128 * 1024 * 1024
    try:
        info = pltpu.get_tpu_info()
        cap = int(getattr(info, "vmem_capacity_bytes", cap) or cap)
    except Exception:
        pass
    return max(32 * 1024 * 1024, min(int(cap * 3 // 4), 96 * 1024 * 1024))


_VMEM_LIMIT = _vmem_limit_bytes()


def _pick_slabs_per_step(num_slabs, rows_per_slab, *, max_rows=512, min_steps=4):
    """Slot-slabs per decoder grid step: divisor of num_slabs, <=max_rows rows,
    keeping >= min_steps grid steps (pipelining / megacore depth)."""
    best = 1
    for d in range(1, num_slabs + 1):
        if num_slabs % d:
            continue
        if d * rows_per_slab > max_rows:
            continue
        if num_slabs // d < min_steps:
            continue
        best = max(best, d)
    return best


# ----------------------------- Pallas kernels -----------------------------

def _encode_kernel(x_ref, ew_ref, eb_ref, mw_ref, mb_ref, tgt_ref, pooled_ref):
    # Fused: encoder patch-embedding linear + embidding_layer readout for one
    # image.  bf16 MXU operands, f32 accumulation.
    x = x_ref[0]                                                    # (HW, Din) bf16
    f = (jnp.dot(x, ew_ref[...], preferred_element_type=jnp.float32)
         + eb_ref[...])                                             # (HW, C) f32
    # loss target directly in (C, HW) layout (XLU transpose, co-issues)
    tgt_ref[0] = f.T
    # mean over positions commutes with the embidding linear -> pooled embedding
    fm = jnp.mean(f, axis=0, keepdims=True)                         # (1, C)
    pooled_ref[0] = (jnp.dot(fm.astype(jnp.bfloat16), mw_ref[...],
                             preferred_element_type=jnp.float32) + mb_ref[...])


def pallas_encode(patches, enc_w, enc_b, emb_w, emb_b):
    """patches:(B,HW,Din) bf16 -> target_t:(B,C,HW) f32, pooled:(B,1,C) f32."""
    B, HW, Din = patches.shape
    C = enc_w.shape[1]
    full = lambda b: (0, 0)
    return pl.pallas_call(
        _encode_kernel,
        out_shape=(jax.ShapeDtypeStruct((B, C, HW), jnp.float32),
                   jax.ShapeDtypeStruct((B, 1, C), jnp.float32)),
        grid=(B,),
        in_specs=[pl.BlockSpec((1, HW, Din), lambda b: (b, 0, 0)),
                  pl.BlockSpec((Din, C), full),
                  pl.BlockSpec((1, C), full),
                  pl.BlockSpec((C, C), full),
                  pl.BlockSpec((1, C), full)],
        out_specs=(pl.BlockSpec((1, C, HW), lambda b: (b, 0, 0)),
                   pl.BlockSpec((1, 1, C), lambda b: (b, 0, 0))),
        compiler_params=pltpu.CompilerParams(
            dimension_semantics=("parallel",),
            vmem_limit_bytes=_VMEM_LIMIT),
    )(patches, enc_w, enc_b.reshape(1, C), emb_w, emb_b.reshape(1, C))


def _decoder_mlp_kernel(slots_ref, pos_ref, w0_ref, b0_ref, w1_ref, b1_ref,
                        w2_ref, b2_ref, w3_ref, b3_ref, o_ref, *, k, hw):
    # MLP_decoder(num_mlp=4): Linear, Linear, ReLU, Linear, ReLU, Linear.
    # Tokens (slot vector + positional embedding) are built in VMEM, one
    # (HW, SLOT) slab per slot; matmul operands bf16, accumulation/bias/ReLU f32.
    sl = slots_ref[0]                                   # (k, SLOT) f32
    pos = pos_ref[...]                                  # (HW, SLOT) f32
    for j in range(k):
        tok = (pos + sl[j:j + 1, :]).astype(jnp.bfloat16)           # (HW, SLOT)
        h = jnp.dot(tok, w0_ref[...],
                    preferred_element_type=jnp.float32) + b0_ref[...]
        h = jnp.dot(h.astype(jnp.bfloat16), w1_ref[...],
                    preferred_element_type=jnp.float32) + b1_ref[...]
        h = jnp.maximum(h, 0.0)
        h = jnp.dot(h.astype(jnp.bfloat16), w2_ref[...],
                    preferred_element_type=jnp.float32) + b2_ref[...]
        h = jnp.maximum(h, 0.0)
        o_ref[pl.ds(j * hw, hw), :] = (
            jnp.dot(h.astype(jnp.bfloat16), w3_ref[...],
                    preferred_element_type=jnp.float32) + b3_ref[...])


def pallas_decoder_mlp(slots_flat, pos, w0, b0, w1, b1, w2, b2, w3, b3):
    """slots_flat:(B*S,SLOT) f32, pos:(HW,SLOT) f32 -> dec:(B*S*HW, C+1) f32."""
    BS, SLOT = slots_flat.shape
    HW = pos.shape[0]
    HID = w0.shape[1]
    Dout = w3.shape[1]
    k = _pick_slabs_per_step(BS, HW)
    steps = BS // k
    N = BS * HW
    slots_r = slots_flat.reshape(steps, k, SLOT)        # leading-dim split only
    full = lambda i: (0, 0)
    flops = 2 * N * (SLOT * HID + 2 * HID * HID + HID * Dout)
    bytes_accessed = int(BS * SLOT * 4 + HW * SLOT * 4
                         + (SLOT * HID + 2 * HID * HID + HID * Dout) * 2
                         + (3 * HID + Dout) * 4
                         + N * Dout * 4)
    return pl.pallas_call(
        functools.partial(_decoder_mlp_kernel, k=k, hw=HW),
        out_shape=jax.ShapeDtypeStruct((N, Dout), jnp.float32),
        grid=(steps,),
        in_specs=[pl.BlockSpec((1, k, SLOT), lambda i: (i, 0, 0)),
                  pl.BlockSpec((HW, SLOT), full),
                  pl.BlockSpec((SLOT, HID), full), pl.BlockSpec((1, HID), full),
                  pl.BlockSpec((HID, HID), full), pl.BlockSpec((1, HID), full),
                  pl.BlockSpec((HID, HID), full), pl.BlockSpec((1, HID), full),
                  pl.BlockSpec((HID, Dout), full), pl.BlockSpec((1, Dout), full)],
        out_specs=pl.BlockSpec((k * HW, Dout), lambda i: (i, 0)),
        compiler_params=pltpu.CompilerParams(
            dimension_semantics=("parallel",),
            vmem_limit_bytes=_VMEM_LIMIT),
        cost_estimate=pl.CostEstimate(flops=flops, transcendentals=0,
                                      bytes_accessed=bytes_accessed),
    )(slots_r, pos, w0, b0.reshape(1, -1), w1, b1.reshape(1, -1),
      w2, b2.reshape(1, -1), w3, b3.reshape(1, -1))


def _mask_recon_loss_kernel(dec_ref, tgt_ref, mask_out_ref, sse_ref, *, C, S):
    # mask channel of the raw-reshaped decoder output, read in-kernel
    logits = jnp.concatenate(
        [dec_ref[0, s, C:C + 1, :] for s in range(S)], axis=0)      # (S, HW)
    # softmax over the slot axis
    m = jnp.max(logits, axis=0, keepdims=True)
    e = jnp.exp(logits - m)
    sm = e * pl.reciprocal(jnp.sum(e, axis=0, keepdims=True), approx=True)
    mask_out_ref[0] = sm

    # recon[c, p] = sum_s sm[s, p] * dec4[b, s, c, p]
    # slot-by-slot accumulation: only one (C, HW) feature tile is live at a time.
    acc = sm[0:1, :] * dec_ref[0, 0, :C, :]
    for s in range(1, S):
        acc = acc + sm[s:s + 1, :] * dec_ref[0, s, :C, :]

    diff = acc - tgt_ref[0]                                 # (C, HW)
    sse_ref[0] = jnp.sum(diff * diff, keepdims=True)        # per-batch partial SSE


def pallas_mask_recon_loss(dec4, target_t):
    """dec4:(B,S,C+1,HW)  target_t:(B,C,HW)  ->  soft_mask:(B,S,HW), sse:(B,1,1)."""
    B, S, Cp1, HW = dec4.shape
    C = Cp1 - 1
    return pl.pallas_call(
        functools.partial(_mask_recon_loss_kernel, C=C, S=S),
        out_shape=(jax.ShapeDtypeStruct((B, S, HW), jnp.float32),
                   jax.ShapeDtypeStruct((B, 1, 1), jnp.float32)),
        grid=(B,),
        in_specs=[pl.BlockSpec((1, S, Cp1, HW), lambda b: (b, 0, 0, 0)),
                  pl.BlockSpec((1, C, HW), lambda b: (b, 0, 0))],
        out_specs=(pl.BlockSpec((1, S, HW), lambda b: (b, 0, 0)),
                   pl.BlockSpec((1, 1, 1), lambda b: (b, 0, 0))),
        compiler_params=pltpu.CompilerParams(
            dimension_semantics=("parallel",),
            vmem_limit_bytes=_VMEM_LIMIT),
    )(dec4, target_t)


# ----------------------------- parameters ---------------------------------

def init_params(key, *, C, SLOT, HID, H, W, S, P):
    ks = jax.random.split(key, 17)
    u = lambda k, shape: jax.random.uniform(k, shape, jnp.float32)
    n = lambda k, shape, s=0.02: s * jax.random.normal(k, shape, jnp.float32)
    return dict(
        # encoder stand-in: patch-embedding linear (3*P*P -> C)
        enc_w=n(ks[0], (3 * P * P, C)), enc_b=n(ks[1], (C,)),
        # embidding_layer: Linear(C, C)
        emb_w=n(ks[2], (C, C)), emb_b=n(ks[3], (C,)),
        # slot-attention stand-in
        slot_emb=n(ks[4], (S, SLOT), 1.0),
        slot_w=n(ks[5], (C, SLOT)), slot_b=n(ks[6], (SLOT,)),
        # PositionEmbeddingLearned (uniform init as in the reference)
        row_embed=u(ks[7], (H, SLOT // 2)),
        col_embed=u(ks[8], (W, SLOT // 2)),
        # MLP_decoder: Linear, Linear, ReLU, Linear, ReLU, Linear
        dec_w0=n(ks[9], (SLOT, HID)), dec_b0=n(ks[10], (HID,)),
        dec_w1=n(ks[11], (HID, HID)), dec_b1=n(ks[12], (HID,)),
        dec_w2=n(ks[13], (HID, HID)), dec_b2=n(ks[14], (HID,)),
        dec_w3=n(ks[15], (HID, C + 1)), dec_b3=n(ks[16], (C + 1,)),
    )


# ----------------------------- forward ------------------------------------

def net_forward(params, image, *, S, SLOT, P, C, H, W):
    B = image.shape[0]
    HW = H * W
    bf16 = lambda name: params[name].astype(jnp.bfloat16)

    # ---- encoder feature extractor ----
    # TODO(synk): the pretrained DINO ViT encoder (external `vits` module +
    # checkpoint) cannot be reproduced here; replaced by a deterministic
    # patch-embedding linear producing (B, HW, C) tokens.
    patches = image.reshape(B, 3, H, P, W, P).transpose(0, 2, 4, 1, 3, 5)
    patches = patches.reshape(B, HW, 3 * P * P).astype(jnp.bfloat16)

    # fused encoder linear + embidding_layer readout: the kernel directly emits
    # the loss target in (B, C, HW) layout and the pooled embedding -> no
    # feats/emb intermediates or transpose passes in HBM.
    target_t, pooled = pallas_encode(patches,
                                     bf16("enc_w"), params["enc_b"],
                                     bf16("emb_w"), params["emb_b"])
    target_t = jax.lax.stop_gradient(target_t)          # .clone().detach()

    # ---- slot attention ----
    # TODO(synk): SlotAttention source was not provided; replaced with a
    # deterministic readout (learned slot embeddings + projected mean feature).
    proj = jnp.dot(pooled[:, 0, :], params["slot_w"]) + params["slot_b"]  # (B, SLOT)
    slots = proj[:, None, :] + params["slot_emb"][None, :, :]             # (B, S, SLOT)

    # learned positional embedding: pos[h*W+w] = [col(w), row(h)]
    pos = jnp.concatenate(
        [jnp.broadcast_to(params["col_embed"][None, :, :], (H, W, SLOT // 2)),
         jnp.broadcast_to(params["row_embed"][:, None, :], (H, W, SLOT // 2))],
        axis=-1).reshape(HW, SLOT)

    # ---- decoder MLP (token construction fused into the kernel) ----
    dec = pallas_decoder_mlp(slots.reshape(B * S, SLOT), pos,
                             bf16("dec_w0"), params["dec_b0"],
                             bf16("dec_w1"), params["dec_b1"],
                             bf16("dec_w2"), params["dec_b2"],
                             bf16("dec_w3"), params["dec_b3"])   # (B*S*HW, C+1) f32

    # PyTorch's raw row-major `x.reshape(batch, C+1, H, W)` in MLP_decoder
    # (NOT a transpose).  Both views below are reinterpretations of `dec`,
    # required by the module's semantics (returned `slots` + the loss view).
    slots_out = dec.reshape(B * S, C + 1, H, W)
    dec4 = dec.reshape(B, S, C + 1, HW)

    soft_mask_flat, sse = pallas_mask_recon_loss(dec4, target_t)
    feats_recons_loss = jnp.sum(sse) / (B * HW * C)     # nn.MSELoss (mean reduction)
    soft_mask = soft_mask_flat.reshape(B, S, H, W)
    return slots_out, soft_mask, feats_recons_loss


# ----------------------------- main ----------------------------------------

if __name__ == "__main__":
    # small shapes consistent with the module's forward
    B, S = 2, 6          # batch, num_slots
    P = 8                # patch size
    IMG = 64             # image size -> feature resolution (8, 8)
    H = W = IMG // P
    C = 128              # feats_channels (small, 128-aligned stand-in for 768)
    SLOT = 128           # slot_dim      (small, 128-aligned stand-in for 256)
    HID = 128            # decoder hid_dim (small, 128-aligned stand-in for 1024)

    key = jax.random.PRNGKey(0)
    k_param, k_img = jax.random.split(key)
    params = init_params(k_param, C=C, SLOT=SLOT, HID=HID, H=H, W=W, S=S, P=P)
    image = jax.random.normal(k_img, (B, 3, IMG, IMG), jnp.float32)

    fwd = jax.jit(functools.partial(net_forward, S=S, SLOT=SLOT, P=P, C=C, H=H, W=W))
    slots_out, soft_mask, loss = fwd(params, image)
    jax.block_until_ready((slots_out, soft_mask, loss))

    assert slots_out.shape == (B * S, C + 1, H, W)
    assert soft_mask.shape == (B, S, H, W)
    assert loss.shape == ()
    assert bool(jnp.isfinite(loss))
    print("KERNEL_OK")
</pallas_src>

<mosaic_0001>
module attributes {stable_mosaic.version = 11 : i64} {
  func.func @_encode_kernel(%arg0: i32, %arg1: memref<1x64x192xbf16, #tpu.memory_space<vmem>>, %arg2: memref<192x128xbf16, #tpu.memory_space<vmem>>, %arg3: memref<1x128xf32, #tpu.memory_space<vmem>>, %arg4: memref<128x128xbf16, #tpu.memory_space<vmem>>, %arg5: memref<1x128xf32, #tpu.memory_space<vmem>>, %arg6: memref<1x128x64xf32, #tpu.memory_space<vmem>>, %arg7: memref<1x1x128xf32, #tpu.memory_space<vmem>>) attributes {dimension_semantics = [#tpu.dimension_semantics<parallel>], iteration_bounds = array<i64: 2>, scalar_prefetch = 0 : i64, scratch_operands = 0 : i64, tpu.core_type = #tpu.core_type<tc>, window_params = [{transform_indices = @transform_0, window_bounds = array<i64: 1, 64, 192>}, {pipeline_mode = #tpu.pipeline_mode<synchronous>, transform_indices = @transform_1, window_bounds = array<i64: 192, 128>}, {pipeline_mode = #tpu.pipeline_mode<synchronous>, transform_indices = @transform_2, window_bounds = array<i64: 1, 128>}, {pipeline_mode = #tpu.pipeline_mode<synchronous>, transform_indices = @transform_3, window_bounds = array<i64: 128, 128>}, {pipeline_mode = #tpu.pipeline_mode<synchronous>, transform_indices = @transform_4, window_bounds = array<i64: 1, 128>}, {transform_indices = @transform_5, window_bounds = array<i64: 1, 128, 64>}, {transform_indices = @transform_6, window_bounds = array<i64: 1, 1, 128>}]} {
    %c0 = arith.constant 0 : index
    %c0_0 = arith.constant 0 : index
    %c0_1 = arith.constant 0 : index
    %0 = vector.load %arg1[%c0, %c0_0, %c0_1] : memref<1x64x192xbf16, #tpu.memory_space<vmem>>, vector<1x64x192xbf16>
    %1 = vector.shape_cast %0 : vector<1x64x192xbf16> to vector<64x192xbf16>
    %c0_2 = arith.constant 0 : index
    %c0_3 = arith.constant 0 : index
    %2 = vector.load %arg2[%c0_2, %c0_3] : memref<192x128xbf16, #tpu.memory_space<vmem>>, vector<192x128xbf16>
    %cst = arith.constant dense<0.000000e+00> : vector<64x128xf32>
    %3 = tpu.matmul %1, %2, %cst {dimension_numbers = #tpu.dot_dimension_numbers<[1], [0], [0], [1], [0, 0, 1, 1], [], []>} : vector<64x192xbf16>, vector<192x128xbf16>, vector<64x128xf32> -> vector<64x128xf32>
    %c0_4 = arith.constant 0 : index
    %c0_5 = arith.constant 0 : index
    %4 = vector.load %arg3[%c0_4, %c0_5] : memref<1x128xf32, #tpu.memory_space<vmem>>, vector<1x128xf32>
    %5 = vector.broadcast %4 : vector<1x128xf32> to vector<64x128xf32>
    %6 = arith.addf %3, %5 : vector<64x128xf32>
    %7 = tpu.transpose %6, [1, 0] : vector<64x128xf32> -> vector<128x64xf32>
    %c0_6 = arith.constant 0 : index
    %c0_7 = arith.constant 0 : index
    %c0_8 = arith.constant 0 : index
    %8 = vector.load %arg6[%c0_6, %c0_7, %c0_8] : memref<1x128x64xf32, #tpu.memory_space<vmem>>, vector<1x128x64xf32>
    %9 = vector.shape_cast %8 : vector<1x128x64xf32> to vector<128x64xf32>
    %10 = vector.shape_cast %7 : vector<128x64xf32> to vector<1x128x64xf32>
    tpu.vector_store %arg6[%c0_6, %c0_7, %c0_8], %10 {strides = array<i32>} : memref<1x128x64xf32, #tpu.memory_space<vmem>>, vector<1x128x64xf32>,
    %cst_9 = arith.constant dense<0.000000e+00> : vector<128xf32>
    %11 = vector.multi_reduction <add>, %6, %cst_9 [0] : vector<64x128xf32> to vector<128xf32>
    %12 = vector.shape_cast %11 : vector<128xf32> to vector<1x128xf32>
    %cst_10 = arith.constant 6.400000e+01 : f32
    %13 = vector.broadcast %cst_10 : f32 to vector<1x128xf32>
    %14 = arith.divf %12, %13 : vector<1x128xf32>
    %15 = arith.truncf %14 : vector<1x128xf32> to vector<1x128xbf16>
    %c0_11 = arith.constant 0 : index
    %c0_12 = arith.constant 0 : index
    %16 = vector.load %arg4[%c0_11, %c0_12] : memref<128x128xbf16, #tpu.memory_space<vmem>>, vector<128x128xbf16>
    %cst_13 = arith.constant dense<0.000000e+00> : vector<1x128xf32>
    %17 = tpu.matmul %15, %16, %cst_13 {dimension_numbers = #tpu.dot_dimension_numbers<[1], [0], [0], [1], [0, 0, 1, 1], [], []>} : vector<1x128xbf16>, vector<128x128xbf16>, vector<1x128xf32> -> vector<1x128xf32>
    %c0_14 = arith.constant 0 : index
    %c0_15 = arith.constant 0 : index
    %18 = vector.load %arg5[%c0_14, %c0_15] : memref<1x128xf32, #tpu.memory_space<vmem>>, vector<1x128xf32>
    %19 = arith.addf %17, %18 : vector<1x128xf32>
    %c0_16 = arith.constant 0 : index
    %c0_17 = arith.constant 0 : index
    %c0_18 = arith.constant 0 : index
    %20 = vector.load %arg7[%c0_16, %c0_17, %c0_18] : memref<1x1x128xf32, #tpu.memory_space<vmem>>, vector<1x1x128xf32>
    %21 = vector.shape_cast %20 : vector<1x1x128xf32> to vector<1x128xf32>
    %22 = vector.shape_cast %19 : vector<1x128xf32> to vector<1x1x128xf32>
    tpu.vector_store %arg7[%c0_16, %c0_17, %c0_18], %22 {strides = array<i32>} : memref<1x1x128xf32, #tpu.memory_space<vmem>>, vector<1x1x128xf32>,
    return
  }
  func.func @transform_0(%arg0: i32) -> (i32, i32, i32) {
    %c0_i32 = arith.constant 0 : i32
    %c0_i32_0 = arith.constant 0 : i32
    %c0_i32_1 = arith.constant 0 : i32
    return %arg0, %c0_i32, %c0_i32_0 : i32, i32, i32
  }
  func.func @transform_1(%arg0: i32) -> (i32, i32) {
    %c0_i32 = arith.constant 0 : i32
    %c0_i32_0 = arith.constant 0 : i32
    %c0_i32_1 = arith.constant 0 : i32
    return %c0_i32, %c0_i32_0 : i32, i32
  }
  func.func @transform_2(%arg0: i32) -> (i32, i32) {
    %c0_i32 = arith.constant 0 : i32
    %c0_i32_0 = arith.constant 0 : i32
    %c0_i32_1 = arith.constant 0 : i32
    return %c0_i32, %c0_i32_0 : i32, i32
  }
  func.func @transform_3(%arg0: i32) -> (i32, i32) {
    %c0_i32 = arith.constant 0 : i32
    %c0_i32_0 = arith.constant 0 : i32
    %c0_i32_1 = arith.constant 0 : i32
    return %c0_i32, %c0_i32_0 : i32, i32
  }
  func.func @transform_4(%arg0: i32) -> (i32, i32) {
    %c0_i32 = arith.constant 0 : i32
    %c0_i32_0 = arith.constant 0 : i32
    %c0_i32_1 = arith.constant 0 : i32
    return %c0_i32, %c0_i32_0 : i32, i32
  }
  func.func @transform_5(%arg0: i32) -> (i32, i32, i32) {
    %c0_i32 = arith.constant 0 : i32
    %c0_i32_0 = arith.constant 0 : i32
    %c0_i32_1 = arith.constant 0 : i32
    return %arg0, %c0_i32, %c0_i32_0 : i32, i32, i32
  }
  func.func @transform_6(%arg0: i32) -> (i32, i32, i32) {
    %c0_i32 = arith.constant 0 : i32
    %c0_i32_0 = arith.constant 0 : i32
    %c0_i32_1 = arith.constant 0 : i32
    return %arg0, %c0_i32, %c0_i32_0 : i32, i32, i32
  }
}

module attributes {stable_mosaic.version = 11 : i64} {
  func.func @_decoder_mlp_kernel(%arg0: i32, %arg1: memref<1x3x128xf32, #tpu.memory_space<vmem>>, %arg2: memref<64x128xf32, #tpu.memory_space<vmem>>, %arg3: memref<128x128xbf16, #tpu.memory_space<vmem>>, %arg4: memref<1x128xf32, #tpu.memory_space<vmem>>, %arg5: memref<128x128xbf16, #tpu.memory_space<vmem>>, %arg6: memref<1x128xf32, #tpu.memory_space<vmem>>, %arg7: memref<128x128xbf16, #tpu.memory_space<vmem>>, %arg8: memref<1x128xf32, #tpu.memory_space<vmem>>, %arg9: memref<128x129xbf16, #tpu.memory_space<vmem>>, %arg10: memref<1x129xf32, #tpu.memory_space<vmem>>, %arg11: memref<192x129xf32, #tpu.memory_space<vmem>>) attributes {dimension_semantics = [#tpu.dimension_semantics<parallel>], iteration_bounds = array<i64: 4>, scalar_prefetch = 0 : i64, scratch_operands = 0 : i64, tpu.core_type = #tpu.core_type<tc>, window_params = [{transform_indices = @transform_0, window_bounds = array<i64: 1, 3, 128>}, {pipeline_mode = #tpu.pipeline_mode<synchronous>, transform_indices = @transform_1, window_bounds = array<i64: 64, 128>}, {pipeline_mode = #tpu.pipeline_mode<synchronous>, transform_indices = @transform_2, window_bounds = array<i64: 128, 128>}, {pipeline_mode = #tpu.pipeline_mode<synchronous>, transform_indices = @transform_3, window_bounds = array<i64: 1, 128>}, {pipeline_mode = #tpu.pipeline_mode<synchronous>, transform_indices = @transform_4, window_bounds = array<i64: 128, 128>}, {pipeline_mode = #tpu.pipeline_mode<synchronous>, transform_indices = @transform_5, window_bounds = array<i64: 1, 128>}, {pipeline_mode = #tpu.pipeline_mode<synchronous>, transform_indices = @transform_6, window_bounds = array<i64: 128, 128>}, {pipeline_mode = #tpu.pipeline_mode<synchronous>, transform_indices = @transform_7, window_bounds = array<i64: 1, 128>}, {pipeline_mode = #tpu.pipeline_mode<synchronous>, transform_indices = @transform_8, window_bounds = array<i64: 128, 129>}, {pipeline_mode = #tpu.pipeline_mode<synchronous>, transform_indices = @transform_9, window_bounds = array<i64: 1, 129>}, {transform_indices = @transform_10, window_bounds = array<i64: 192, 129>}]} {
    %c0 = arith.constant 0 : index
    %c0_0 = arith.constant 0 : index
    %c0_1 = arith.constant 0 : index
    %0 = vector.load %arg1[%c0, %c0_0, %c0_1] : memref<1x3x128xf32, #tpu.memory_space<vmem>>, vector<1x3x128xf32>
    %1 = vector.shape_cast %0 : vector<1x3x128xf32> to vector<3x128xf32>
    %c0_2 = arith.constant 0 : index
    %c0_3 = arith.constant 0 : index
    %2 = vector.load %arg2[%c0_2, %c0_3] : memref<64x128xf32, #tpu.memory_space<vmem>>, vector<64x128xf32>
    %3 = vector.extract_strided_slice %1 {offsets = [0, 0], sizes = [1, 128], strides = [1, 1]} : vector<3x128xf32> to vector<1x128xf32>
    %4 = vector.broadcast %3 : vector<1x128xf32> to vector<64x128xf32>
    %5 = arith.addf %2, %4 : vector<64x128xf32>
    %6 = arith.truncf %5 : vector<64x128xf32> to vector<64x128xbf16>
    %c0_4 = arith.constant 0 : index
    %c0_5 = arith.constant 0 : index
    %7 = vector.load %arg3[%c0_4, %c0_5] : memref<128x128xbf16, #tpu.memory_space<vmem>>, vector<128x128xbf16>
    %cst = arith.constant dense<0.000000e+00> : vector<64x128xf32>
    %8 = tpu.matmul %6, %7, %cst {dimension_numbers = #tpu.dot_dimension_numbers<[1], [0], [0], [1], [0, 0, 1, 1], [], []>} : vector<64x128xbf16>, vector<128x128xbf16>, vector<64x128xf32> -> vector<64x128xf32>
    %c0_6 = arith.constant 0 : index
    %c0_7 = arith.constant 0 : index
    %9 = vector.load %arg4[%c0_6, %c0_7] : memref<1x128xf32, #tpu.memory_space<vmem>>, vector<1x128xf32>
    %10 = vector.broadcast %9 : vector<1x128xf32> to vector<64x128xf32>
    %11 = arith.addf %8, %10 : vector<64x128xf32>
    %12 = arith.truncf %11 : vector<64x128xf32> to vector<64x128xbf16>
    %c0_8 = arith.constant 0 : index
    %c0_9 = arith.constant 0 : index
    %13 = vector.load %arg5[%c0_8, %c0_9] : memref<128x128xbf16, #tpu.memory_space<vmem>>, vector<128x128xbf16>
    %cst_10 = arith.constant dense<0.000000e+00> : vector<64x128xf32>
    %14 = tpu.matmul %12, %13, %cst_10 {dimension_numbers = #tpu.dot_dimension_numbers<[1], [0], [0], [1], [0, 0, 1, 1], [], []>} : vector<64x128xbf16>, vector<128x128xbf16>, vector<64x128xf32> -> vector<64x128xf32>
    %c0_11 = arith.constant 0 : index
    %c0_12 = arith.constant 0 : index
    %15 = vector.load %arg6[%c0_11, %c0_12] : memref<1x128xf32, #tpu.memory_space<vmem>>, vector<1x128xf32>
    %16 = vector.broadcast %15 : vector<1x128xf32> to vector<64x128xf32>
    %17 = arith.addf %14, %16 : vector<64x128xf32>
    %cst_13 = arith.constant 0.000000e+00 : f32
    %18 = vector.broadcast %cst_13 : f32 to vector<64x128xf32>
    %19 = arith.maximumf %17, %18 : vector<64x128xf32>
    %20 = arith.truncf %19 : vector<64x128xf32> to vector<64x128xbf16>
    %c0_14 = arith.constant 0 : index
    %c0_15 = arith.constant 0 : index
    %21 = vector.load %arg7[%c0_14, %c0_15] : memref<128x128xbf16, #tpu.memory_space<vmem>>, vector<128x128xbf16>
    %cst_16 = arith.constant dense<0.000000e+00> : vector<64x128xf32>
    %22 = tpu.matmul %20, %21, %cst_16 {dimension_numbers = #tpu.dot_dimension_numbers<[1], [0], [0], [1], [0, 0, 1, 1], [], []>} : vector<64x128xbf16>, vector<128x128xbf16>, vector<64x128xf32> -> vector<64x128xf32>
    %c0_17 = arith.constant 0 : index
    %c0_18 = arith.constant 0 : index
    %23 = vector.load %arg8[%c0_17, %c0_18] : memref<1x128xf32, #tpu.memory_space<vmem>>, vector<1x128xf32>
    %24 = vector.broadcast %23 : vector<1x128xf32> to vector<64x128xf32>
    %25 = arith.addf %22, %24 : vector<64x128xf32>
    %cst_19 = arith.constant 0.000000e+00 : f32
    %26 = vector.broadcast %cst_19 : f32 to vector<64x128xf32>
    %27 = arith.maximumf %25, %26 : vector<64x128xf32>
    %28 = arith.truncf %27 : vector<64x128xf32> to vector<64x128xbf16>
    %c0_20 = arith.constant 0 : index
    %c0_21 = arith.constant 0 : index
    %29 = vector.load %arg9[%c0_20, %c0_21] : memref<128x129xbf16, #tpu.memory_space<vmem>>, vector<128x129xbf16>
    %cst_22 = arith.constant dense<0.000000e+00> : vector<64x129xf32>
    %30 = tpu.matmul %28, %29, %cst_22 {dimension_numbers = #tpu.dot_dimension_numbers<[1], [0], [0], [1], [0, 0, 1, 1], [], []>} : vector<64x128xbf16>, vector<128x129xbf16>, vector<64x129xf32> -> vector<64x129xf32>
    %c0_23 = arith.constant 0 : index
    %c0_24 = arith.constant 0 : index
    %31 = vector.load %arg10[%c0_23, %c0_24] : memref<1x129xf32, #tpu.memory_space<vmem>>, vector<1x129xf32>
    %32 = vector.broadcast %31 : vector<1x129xf32> to vector<64x129xf32>
    %33 = arith.addf %30, %32 : vector<64x129xf32>
    %c0_25 = arith.constant 0 : index
    %c0_26 = arith.constant 0 : index
    %34 = vector.load %arg11[%c0_25, %c0_26] : memref<192x129xf32, #tpu.memory_space<vmem>>, vector<64x129xf32>
    tpu.vector_store %arg11[%c0_25, %c0_26], %33 {strides = array<i32>} : memref<192x129xf32, #tpu.memory_space<vmem>>, vector<64x129xf32>,
    %35 = vector.extract_strided_slice %1 {offsets = [1, 0], sizes = [1, 128], strides = [1, 1]} : vector<3x128xf32> to vector<1x128xf32>
    %36 = vector.broadcast %35 : vector<1x128xf32> to vector<64x128xf32>
    %37 = arith.addf %2, %36 : vector<64x128xf32>
    %38 = arith.truncf %37 : vector<64x128xf32> to vector<64x128xbf16>
    %c0_27 = arith.constant 0 : index
    %c0_28 = arith.constant 0 : index
    %39 = vector.load %arg3[%c0_27, %c0_28] : memref<128x128xbf16, #tpu.memory_space<vmem>>, vector<128x128xbf16>
    %cst_29 = arith.constant dense<0.000000e+00> : vector<64x128xf32>
    %40 = tpu.matmul %38, %39, %cst_29 {dimension_numbers = #tpu.dot_dimension_numbers<[1], [0], [0], [1], [0, 0, 1, 1], [], []>} : vector<64x128xbf16>, vector<128x128xbf16>, vector<64x128xf32> -> vector<64x128xf32>
    %c0_30 = arith.constant 0 : index
    %c0_31 = arith.constant 0 : index
    %41 = vector.load %arg4[%c0_30, %c0_31] : memref<1x128xf32, #tpu.memory_space<vmem>>, vector<1x128xf32>
    %42 = vector.broadcast %41 : vector<1x128xf32> to vector<64x128xf32>
    %43 = arith.addf %40, %42 : vector<64x128xf32>
    %44 = arith.truncf %43 : vector<64x128xf32> to vector<64x128xbf16>
    %c0_32 = arith.constant 0 : index
    %c0_33 = arith.constant 0 : index
    %45 = vector.load %arg5[%c0_32, %c0_33] : memref<128x128xbf16, #tpu.memory_space<vmem>>, vector<128x128xbf16>
    %cst_34 = arith.constant dense<0.000000e+00> : vector<64x128xf32>
    %46 = tpu.matmul %44, %45, %cst_34 {dimension_numbers = #tpu.dot_dimension_numbers<[1], [0], [0], [1], [0, 0, 1, 1], [], []>} : vector<64x128xbf16>, vector<128x128xbf16>, vector<64x128xf32> -> vector<64x128xf32>
    %c0_35 = arith.constant 0 : index
    %c0_36 = arith.constant 0 : index
    %47 = vector.load %arg6[%c0_35, %c0_36] : memref<1x128xf32, #tpu.memory_space<vmem>>, vector<1x128xf32>
    %48 = vector.broadcast %47 : vector<1x128xf32> to vector<64x128xf32>
    %49 = arith.addf %46, %48 : vector<64x128xf32>
    %cst_37 = arith.constant 0.000000e+00 : f32
    %50 = vector.broadcast %cst_37 : f32 to vector<64x128xf32>
    %51 = arith.maximumf %49, %50 : vector<64x128xf32>
    %52 = arith.truncf %51 : vector<64x128xf32> to vector<64x128xbf16>
    %c0_38 = arith.constant 0 : index
    %c0_39 = arith.constant 0 : index
    %53 = vector.load %arg7[%c0_38, %c0_39] : memref<128x128xbf16, #tpu.memory_space<vmem>>, vector<128x128xbf16>
    %cst_40 = arith.constant dense<0.000000e+00> : vector<64x128xf32>
    %54 = tpu.matmul %52, %53, %cst_40 {dimension_numbers = #tpu.dot_dimension_numbers<[1], [0], [0], [1], [0, 0, 1, 1], [], []>} : vector<64x128xbf16>, vector<128x128xbf16>, vector<64x128xf32> -> vector<64x128xf32>
    %c0_41 = arith.constant 0 : index
    %c0_42 = arith.constant 0 : index
    %55 = vector.load %arg8[%c0_41, %c0_42] : memref<1x128xf32, #tpu.memory_space<vmem>>, vector<1x128xf32>
    %56 = vector.broadcast %55 : vector<1x128xf32> to vector<64x128xf32>
    %57 = arith.addf %54, %56 : vector<64x128xf32>
    %cst_43 = arith.constant 0.000000e+00 : f32
    %58 = vector.broadcast %cst_43 : f32 to vector<64x128xf32>
    %59 = arith.maximumf %57, %58 : vector<64x128xf32>
    %60 = arith.truncf %59 : vector<64x128xf32> to vector<64x128xbf16>
    %c0_44 = arith.constant 0 : index
    %c0_45 = arith.constant 0 : index
    %61 = vector.load %arg9[%c0_44, %c0_45] : memref<128x129xbf16, #tpu.memory_space<vmem>>, vector<128x129xbf16>
    %cst_46 = arith.constant dense<0.000000e+00> : vector<64x129xf32>
    %62 = tpu.matmul %60, %61, %cst_46 {dimension_numbers = #tpu.dot_dimension_numbers<[1], [0], [0], [1], [0, 0, 1, 1], [], []>} : vector<64x128xbf16>, vector<128x129xbf16>, vector<64x129xf32> -> vector<64x129xf32>
    %c0_47 = arith.constant 0 : index
    %c0_48 = arith.constant 0 : index
    %63 = vector.load %arg10[%c0_47, %c0_48] : memref<1x129xf32, #tpu.memory_space<vmem>>, vector<1x129xf32>
    %64 = vector.broadcast %63 : vector<1x129xf32> to vector<64x129xf32>
    %65 = arith.addf %62, %64 : vector<64x129xf32>
    %c64 = arith.constant 64 : index
    %c0_49 = arith.constant 0 : index
    %66 = vector.load %arg11[%c64, %c0_49] : memref<192x129xf32, #tpu.memory_space<vmem>>, vector<64x129xf32>
    tpu.vector_store %arg11[%c64, %c0_49], %65 {strides = array<i32>} : memref<192x129xf32, #tpu.memory_space<vmem>>, vector<64x129xf32>,
    %67 = vector.extract_strided_slice %1 {offsets = [2, 0], sizes = [1, 128], strides = [1, 1]} : vector<3x128xf32> to vector<1x128xf32>
    %68 = vector.broadcast %67 : vector<1x128xf32> to vector<64x128xf32>
    %69 = arith.addf %2, %68 : vector<64x128xf32>
    %70 = arith.truncf %69 : vector<64x128xf32> to vector<64x128xbf16>
    %c0_50 = arith.constant 0 : index
    %c0_51 = arith.constant 0 : index
    %71 = vector.load %arg3[%c0_50, %c0_51] : memref<128x128xbf16, #tpu.memory_space<vmem>>, vector<128x128xbf16>
    %cst_52 = arith.constant dense<0.000000e+00> : vector<64x128xf32>
    %72 = tpu.matmul %70, %71, %cst_52 {dimension_numbers = #tpu.dot_dimension_numbers<[1], [0], [0], [1], [0, 0, 1, 1], [], []>} : vector<64x128xbf16>, vector<128x128xbf16>, vector<64x128xf32> -> vector<64x128xf32>
    %c0_53 = arith.constant 0 : index
    %c0_54 = arith.constant 0 : index
    %73 = vector.load %arg4[%c0_53, %c0_54] : memref<1x128xf32, #tpu.memory_space<vmem>>, vector<1x128xf32>
    %74 = vector.broadcast %73 : vector<1x128xf32> to vector<64x128xf32>
    %75 = arith.addf %72, %74 : vector<64x128xf32>
    %76 = arith.truncf %75 : vector<64x128xf32> to vector<64x128xbf16>
    %c0_55 = arith.constant 0 : index
    %c0_56 = arith.constant 0 : index
    %77 = vector.load %arg5[%c0_55, %c0_56] : memref<128x128xbf16, #tpu.memory_space<vmem>>, vector<128x128xbf16>
    %cst_57 = arith.constant dense<0.000000e+00> : vector<64x128xf32>
    %78 = tpu.matmul %76, %77, %cst_57 {dimension_numbers = #tpu.dot_dimension_numbers<[1], [0], [0], [1], [0, 0, 1, 1], [], []>} : vector<64x128xbf16>, vector<128x128xbf16>, vector<64x128xf32> -> vector<64x128xf32>
    %c0_58 = arith.constant 0 : index
    %c0_59 = arith.constant 0 : index
    %79 = vector.load %arg6[%c0_58, %c0_59] : memref<1x128xf32, #tpu.memory_space<vmem>>, vector<1x128xf32>
    %80 = vector.broadcast %79 : vector<1x128xf32> to vector<64x128xf32>
    %81 = arith.addf %78, %80 : vector<64x128xf32>
    %cst_60 = arith.constant 0.000000e+00 : f32
    %82 = vector.broadcast %cst_60 : f32 to vector<64x128xf32>
    %83 = arith.maximumf %81, %82 : vector<64x128xf32>
    %84 = arith.truncf %83 : vector<64x128xf32> to vector<64x128xbf16>
    %c0_61 = arith.constant 0 : index
    %c0_62 = arith.constant 0 : index
    %85 = vector.load %arg7[%c0_61, %c0_62] : memref<128x128xbf16, #tpu.memory_space<vmem>>, vector<128x128xbf16>
    %cst_63 = arith.constant dense<0.000000e+00> : vector<64x128xf32>
    %86 = tpu.matmul %84, %85, %cst_63 {dimension_numbers = #tpu.dot_dimension_numbers<[1], [0], [0], [1], [0, 0, 1, 1], [], []>} : vector<64x128xbf16>, vector<128x128xbf16>, vector<64x128xf32> -> vector<64x128xf32>
    %c0_64 = arith.constant 0 : index
    %c0_65 = arith.constant 0 : index
    %87 = vector.load %arg8[%c0_64, %c0_65] : memref<1x128xf32, #tpu.memory_space<vmem>>, vector<1x128xf32>
    %88 = vector.broadcast %87 : vector<1x128xf32> to vector<64x128xf32>
    %89 = arith.addf %86, %88 : vector<64x128xf32>
    %cst_66 = arith.constant 0.000000e+00 : f32
    %90 = vector.broadcast %cst_66 : f32 to vector<64x128xf32>
    %91 = arith.maximumf %89, %90 : vector<64x128xf32>
    %92 = arith.truncf %91 : vector<64x128xf32> to vector<64x128xbf16>
    %c0_67 = arith.constant 0 : index
    %c0_68 = arith.constant 0 : index
    %93 = vector.load %arg9[%c0_67, %c0_68] : memref<128x129xbf16, #tpu.memory_space<vmem>>, vector<128x129xbf16>
    %cst_69 = arith.constant dense<0.000000e+00> : vector<64x129xf32>
    %94 = tpu.matmul %92, %93, %cst_69 {dimension_numbers = #tpu.dot_dimension_numbers<[1], [0], [0], [1], [0, 0, 1, 1], [], []>} : vector<64x128xbf16>, vector<128x129xbf16>, vector<64x129xf32> -> vector<64x129xf32>
    %c0_70 = arith.constant 0 : index
    %c0_71 = arith.constant 0 : index
    %95 = vector.load %arg10[%c0_70, %c0_71] : memref<1x129xf32, #tpu.memory_space<vmem>>, vector<1x129xf32>
    %96 = vector.broadcast %95 : vector<1x129xf32> to vector<64x129xf32>
    %97 = arith.addf %94, %96 : vector<64x129xf32>
    %c128 = arith.constant 128 : index
    %c0_72 = arith.constant 0 : index
    %98 = vector.load %arg11[%c128, %c0_72] : memref<192x129xf32, #tpu.memory_space<vmem>>, vector<64x129xf32>
    tpu.vector_store %arg11[%c128, %c0_72], %97 {strides = array<i32>} : memref<192x129xf32, #tpu.memory_space<vmem>>, vector<64x129xf32>,
    return
  }
  func.func @transform_0(%arg0: i32) -> (i32, i32, i32) {
    %c0_i32 = arith.constant 0 : i32
    %c0_i32_0 = arith.constant 0 : i32
    %c0_i32_1 = arith.constant 0 : i32
    return %arg0, %c0_i32, %c0_i32_0 : i32, i32, i32
  }
  func.func @transform_1(%arg0: i32) -> (i32, i32) {
    %c0_i32 = arith.constant 0 : i32
    %c0_i32_0 = arith.constant 0 : i32
    %c0_i32_1 = arith.constant 0 : i32
    return %c0_i32, %c0_i32_0 : i32, i32
  }
  func.func @transform_2(%arg0: i32) -> (i32, i32) {
    %c0_i32 = arith.constant 0 : i32
    %c0_i32_0 = arith.constant 0 : i32
    %c0_i32_1 = arith.constant 0 : i32
    return %c0_i32, %c0_i32_0 : i32, i32
  }
  func.func @transform_3(%arg0: i32) -> (i32, i32) {
    %c0_i32 = arith.constant 0 : i32
    %c0_i32_0 = arith.constant 0 : i32
    %c0_i32_1 = arith.constant 0 : i32
    return %c0_i32, %c0_i32_0 : i32, i32
  }
  func.func @transform_4(%arg0: i32) -> (i32, i32) {
    %c0_i32 = arith.constant 0 : i32
    %c0_i32_0 = arith.constant 0 : i32
    %c0_i32_1 = arith.constant 0 : i32
    return %c0_i32, %c0_i32_0 : i32, i32
  }
  func.func @transform_5(%arg0: i32) -> (i32, i32) {
    %c0_i32 = arith.constant 0 : i32
    %c0_i32_0 = arith.constant 0 : i32
    %c0_i32_1 = arith.constant 0 : i32
    return %c0_i32, %c0_i32_0 : i32, i32
  }
  func.func @transform_6(%arg0: i32) -> (i32, i32) {
    %c0_i32 = arith.constant 0 : i32
    %c0_i32_0 = arith.constant 0 : i32
    %c0_i32_1 = arith.constant 0 : i32
    return %c0_i32, %c0_i32_0 : i32, i32
  }
  func.func @transform_7(%arg0: i32) -> (i32, i32) {
    %c0_i32 = arith.constant 0 : i32
    %c0_i32_0 = arith.constant 0 : i32
    %c0_i32_1 = arith.constant 0 : i32
    return %c0_i32, %c0_i32_0 : i32, i32
  }
  func.func @transform_8(%arg0: i32) -> (i32, i32) {
    %c0_i32 = arith.constant 0 : i32
    %c0_i32_0 = arith.constant 0 : i32
    %c0_i32_1 = arith.constant 0 : i32
    return %c0_i32, %c0_i32_0 : i32, i32
  }
  func.func @transform_9(%arg0: i32) -> (i32, i32) {
    %c0_i32 = arith.constant 0 : i32
    %c0_i32_0 = arith.constant 0 : i32
    %c0_i32_1 = arith.constant 0 : i32
    return %c0_i32, %c0_i32_0 : i32, i32
  }
  func.func @transform_10(%arg0: i32) -> (i32, i32) {
    %c0_i32 = arith.constant 0 : i32
    %c0_i32_0 = arith.constant 0 : i32
    return %arg0, %c0_i32 : i32, i32
  }
}

module attributes {stable_mosaic.version = 11 : i64} {
  func.func @_mask_recon_loss_kernel(%arg0: i32, %arg1: memref<1x6x129x64xf32, #tpu.memory_space<vmem>>, %arg2: memref<1x128x64xf32, #tpu.memory_space<vmem>>, %arg3: memref<1x6x64xf32, #tpu.memory_space<vmem>>, %arg4: memref<1x1x1xf32, #tpu.memory_space<vmem>>) attributes {dimension_semantics = [#tpu.dimension_semantics<parallel>], iteration_bounds = array<i64: 2>, scalar_prefetch = 0 : i64, scratch_operands = 0 : i64, tpu.core_type = #tpu.core_type<tc>, window_params = [{transform_indices = @transform_0, window_bounds = array<i64: 1, 6, 129, 64>}, {transform_indices = @transform_1, window_bounds = array<i64: 1, 128, 64>}, {transform_indices = @transform_2, window_bounds = array<i64: 1, 6, 64>}, {transform_indices = @transform_3, window_bounds = array<i64: 1, 1, 1>}]} {
    %c0 = arith.constant 0 : index
    %c0_0 = arith.constant 0 : index
    %c128 = arith.constant 128 : index
    %c0_1 = arith.constant 0 : index
    %0 = vector.load %arg1[%c0, %c0_0, %c128, %c0_1] : memref<1x6x129x64xf32, #tpu.memory_space<vmem>>, vector<1x1x1x64xf32>
    %1 = vector.shape_cast %0 : vector<1x1x1x64xf32> to vector<1x64xf32>
    %c0_2 = arith.constant 0 : index
    %c1 = arith.constant 1 : index
    %c128_3 = arith.constant 128 : index
    %c0_4 = arith.constant 0 : index
    %2 = vector.load %arg1[%c0_2, %c1, %c128_3, %c0_4] : memref<1x6x129x64xf32, #tpu.memory_space<vmem>>, vector<1x1x1x64xf32>
    %3 = vector.shape_cast %2 : vector<1x1x1x64xf32> to vector<1x64xf32>
    %c0_5 = arith.constant 0 : index
    %c2 = arith.constant 2 : index
    %c128_6 = arith.constant 128 : index
    %c0_7 = arith.constant 0 : index
    %4 = vector.load %arg1[%c0_5, %c2, %c128_6, %c0_7] : memref<1x6x129x64xf32, #tpu.memory_space<vmem>>, vector<1x1x1x64xf32>
    %5 = vector.shape_cast %4 : vector<1x1x1x64xf32> to vector<1x64xf32>
    %c0_8 = arith.constant 0 : index
    %c3 = arith.constant 3 : index
    %c128_9 = arith.constant 128 : index
    %c0_10 = arith.constant 0 : index
    %6 = vector.load %arg1[%c0_8, %c3, %c128_9, %c0_10] : memref<1x6x129x64xf32, #tpu.memory_space<vmem>>, vector<1x1x1x64xf32>
    %7 = vector.shape_cast %6 : vector<1x1x1x64xf32> to vector<1x64xf32>
    %c0_11 = arith.constant 0 : index
    %c4 = arith.constant 4 : index
    %c128_12 = arith.constant 128 : index
    %c0_13 = arith.constant 0 : index
    %8 = vector.load %arg1[%c0_11, %c4, %c128_12, %c0_13] : memref<1x6x129x64xf32, #tpu.memory_space<vmem>>, vector<1x1x1x64xf32>
    %9 = vector.shape_cast %8 : vector<1x1x1x64xf32> to vector<1x64xf32>
    %c0_14 = arith.constant 0 : index
    %c5 = arith.constant 5 : index
    %c128_15 = arith.constant 128 : index
    %c0_16 = arith.constant 0 : index
    %10 = vector.load %arg1[%c0_14, %c5, %c128_15, %c0_16] : memref<1x6x129x64xf32, #tpu.memory_space<vmem>>, vector<1x1x1x64xf32>
    %11 = vector.shape_cast %10 : vector<1x1x1x64xf32> to vector<1x64xf32>
    %12 = tpu.concatenate %1, %3, %5, %7, %9, %11 in 0 : vector<1x64xf32>, vector<1x64xf32>, vector<1x64xf32>, vector<1x64xf32>, vector<1x64xf32>, vector<1x64xf32> -> vector<6x64xf32>
    %cst = arith.constant dense<0xFF800000> : vector<64xf32>
    %13 = vector.multi_reduction <maximumf>, %12, %cst [0] : vector<6x64xf32> to vector<64xf32>
    %14 = vector.shape_cast %13 : vector<64xf32> to vector<1x64xf32>
    %15 = vector.broadcast %14 : vector<1x64xf32> to vector<6x64xf32>
    %16 = arith.subf %12, %15 : vector<6x64xf32>
    %17 = math.exp %16 : vector<6x64xf32>
    %cst_17 = arith.constant dense<0.000000e+00> : vector<64xf32>
    %18 = vector.multi_reduction <add>, %17, %cst_17 [0] : vector<6x64xf32> to vector<64xf32>
    %19 = vector.shape_cast %18 : vector<64xf32> to vector<1x64xf32>
    %20 = tpu.reciprocal %19 {approx = true} : vector<1x64xf32> -> vector<1x64xf32>
    %21 = vector.broadcast %20 : vector<1x64xf32> to vector<6x64xf32>
    %22 = arith.mulf %17, %21 : vector<6x64xf32>
    %c0_18 = arith.constant 0 : index
    %c0_19 = arith.constant 0 : index
    %c0_20 = arith.constant 0 : index
    %23 = vector.load %arg3[%c0_18, %c0_19, %c0_20] : memref<1x6x64xf32, #tpu.memory_space<vmem>>, vector<1x6x64xf32>
    %24 = vector.shape_cast %23 : vector<1x6x64xf32> to vector<6x64xf32>
    %25 = vector.shape_cast %22 : vector<6x64xf32> to vector<1x6x64xf32>
    tpu.vector_store %arg3[%c0_18, %c0_19, %c0_20], %25 {strides = array<i32>} : memref<1x6x64xf32, #tpu.memory_space<vmem>>, vector<1x6x64xf32>,
    %26 = vector.extract_strided_slice %22 {offsets = [0, 0], sizes = [1, 64], strides = [1, 1]} : vector<6x64xf32> to vector<1x64xf32>
    %c0_21 = arith.constant 0 : index
    %c0_22 = arith.constant 0 : index
    %c0_23 = arith.constant 0 : index
    %c0_24 = arith.constant 0 : index
    %27 = vector.load %arg1[%c0_21, %c0_22, %c0_23, %c0_24] : memref<1x6x129x64xf32, #tpu.memory_space<vmem>>, vector<1x1x128x64xf32>
    %28 = vector.shape_cast %27 : vector<1x1x128x64xf32> to vector<128x64xf32>
    %29 = vector.broadcast %26 : vector<1x64xf32> to vector<128x64xf32>
    %30 = arith.mulf %29, %28 : vector<128x64xf32>
    %31 = vector.extract_strided_slice %22 {offsets = [1, 0], sizes = [1, 64], strides = [1, 1]} : vector<6x64xf32> to vector<1x64xf32>
    %c0_25 = arith.constant 0 : index
    %c1_26 = arith.constant 1 : index
    %c0_27 = arith.constant 0 : index
    %c0_28 = arith.constant 0 : index
    %32 = vector.load %arg1[%c0_25, %c1_26, %c0_27, %c0_28] : memref<1x6x129x64xf32, #tpu.memory_space<vmem>>, vector<1x1x128x64xf32>
    %33 = vector.shape_cast %32 : vector<1x1x128x64xf32> to vector<128x64xf32>
    %34 = vector.broadcast %31 : vector<1x64xf32> to vector<128x64xf32>
    %35 = arith.mulf %34, %33 : vector<128x64xf32>
    %36 = arith.addf %30, %35 : vector<128x64xf32>
    %37 = vector.extract_strided_slice %22 {offsets = [2, 0], sizes = [1, 64], strides = [1, 1]} : vector<6x64xf32> to vector<1x64xf32>
    %c0_29 = arith.constant 0 : index
    %c2_30 = arith.constant 2 : index
    %c0_31 = arith.constant 0 : index
    %c0_32 = arith.constant 0 : index
    %38 = vector.load %arg1[%c0_29, %c2_30, %c0_31, %c0_32] : memref<1x6x129x64xf32, #tpu.memory_space<vmem>>, vector<1x1x128x64xf32>
    %39 = vector.shape_cast %38 : vector<1x1x128x64xf32> to vector<128x64xf32>
    %40 = vector.broadcast %37 : vector<1x64xf32> to vector<128x64xf32>
    %41 = arith.mulf %40, %39 : vector<128x64xf32>
    %42 = arith.addf %36, %41 : vector<128x64xf32>
    %43 = vector.extract_strided_slice %22 {offsets = [3, 0], sizes = [1, 64], strides = [1, 1]} : vector<6x64xf32> to vector<1x64xf32>
    %c0_33 = arith.constant 0 : index
    %c3_34 = arith.constant 3 : index
    %c0_35 = arith.constant 0 : index
    %c0_36 = arith.constant 0 : index
    %44 = vector.load %arg1[%c0_33, %c3_34, %c0_35, %c0_36] : memref<1x6x129x64xf32, #tpu.memory_space<vmem>>, vector<1x1x128x64xf32>
    %45 = vector.shape_cast %44 : vector<1x1x128x64xf32> to vector<128x64xf32>
    %46 = vector.broadcast %43 : vector<1x64xf32> to vector<128x64xf32>
    %47 = arith.mulf %46, %45 : vector<128x64xf32>
    %48 = arith.addf %42, %47 : vector<128x64xf32>
    %49 = vector.extract_strided_slice %22 {offsets = [4, 0], sizes = [1, 64], strides = [1, 1]} : vector<6x64xf32> to vector<1x64xf32>
    %c0_37 = arith.constant 0 : index
    %c4_38 = arith.constant 4 : index
    %c0_39 = arith.constant 0 : index
    %c0_40 = arith.constant 0 : index
    %50 = vector.load %arg1[%c0_37, %c4_38, %c0_39, %c0_40] : memref<1x6x129x64xf32, #tpu.memory_space<vmem>>, vector<1x1x128x64xf32>
    %51 = vector.shape_cast %50 : vector<1x1x128x64xf32> to vector<128x64xf32>
    %52 = vector.broadcast %49 : vector<1x64xf32> to vector<128x64xf32>
    %53 = arith.mulf %52, %51 : vector<128x64xf32>
    %54 = arith.addf %48, %53 : vector<128x64xf32>
    %55 = vector.extract_strided_slice %22 {offsets = [5, 0], sizes = [1, 64], strides = [1, 1]} : vector<6x64xf32> to vector<1x64xf32>
    %c0_41 = arith.constant 0 : index
    %c5_42 = arith.constant 5 : index
    %c0_43 = arith.constant 0 : index
    %c0_44 = arith.constant 0 : index
    %56 = vector.load %arg1[%c0_41, %c5_42, %c0_43, %c0_44] : memref<1x6x129x64xf32, #tpu.memory_space<vmem>>, vector<1x1x128x64xf32>
    %57 = vector.shape_cast %56 : vector<1x1x128x64xf32> to vector<128x64xf32>
    %58 = vector.broadcast %55 : vector<1x64xf32> to vector<128x64xf32>
    %59 = arith.mulf %58, %57 : vector<128x64xf32>
    %60 = arith.addf %54, %59 : vector<128x64xf32>
    %c0_45 = arith.constant 0 : index
    %c0_46 = arith.constant 0 : index
    %c0_47 = arith.constant 0 : index
    %61 = vector.load %arg2[%c0_45, %c0_46, %c0_47] : memref<1x128x64xf32, #tpu.memory_space<vmem>>, vector<1x128x64xf32>
    %62 = vector.shape_cast %61 : vector<1x128x64xf32> to vector<128x64xf32>
    %63 = arith.subf %60, %62 : vector<128x64xf32>
    %64 = arith.mulf %63, %63 : vector<128x64xf32>
    %65 = vector.shape_cast %64 : vector<128x64xf32> to vector<1x128x64xf32>
    %cst_48 = arith.constant dense<0.000000e+00> : vector<1xf32>
    %66 = vector.multi_reduction <add>, %65, %cst_48 [1, 2] : vector<1x128x64xf32> to vector<1xf32>
    %67 = vector.shape_cast %66 : vector<1xf32> to vector<1x1x1xf32>
    %68 = vector.extract %67[0, 0, 0] : f32 from vector<1x1x1xf32>
    %69 = vector.broadcast %68 : f32 to vector<1x1xf32>
    %c0_49 = arith.constant 0 : index
    %c0_50 = arith.constant 0 : index
    %c0_51 = arith.constant 0 : index
    %70 = vector.load %arg4[%c0_49, %c0_50, %c0_51] : memref<1x1x1xf32, #tpu.memory_space<vmem>>, vector<1x1x1xf32>
    %71 = vector.shape_cast %70 : vector<1x1x1xf32> to vector<1x1xf32>
    %72 = vector.shape_cast %69 : vector<1x1xf32> to vector<1x1x1xf32>
    tpu.vector_store %arg4[%c0_49, %c0_50, %c0_51], %72 {strides = array<i32>} : memref<1x1x1xf32, #tpu.memory_space<vmem>>, vector<1x1x1xf32>,
    return
  }
  func.func @transform_0(%arg0: i32) -> (i32, i32, i32, i32) {
    %c0_i32 = arith.constant 0 : i32
    %c0_i32_0 = arith.constant 0 : i32
    %c0_i32_1 = arith.constant 0 : i32
    %c0_i32_2 = arith.constant 0 : i32
    return %arg0, %c0_i32, %c0_i32_0, %c0_i32_1 : i32, i32, i32, i32
  }
  func.func @transform_1(%arg0: i32) -> (i32, i32, i32) {
    %c0_i32 = arith.constant 0 : i32
    %c0_i32_0 = arith.constant 0 : i32
    %c0_i32_1 = arith.constant 0 : i32
    return %arg0, %c0_i32, %c0_i32_0 : i32, i32, i32
  }
  func.func @transform_2(%arg0: i32) -> (i32, i32, i32) {
    %c0_i32 = arith.constant 0 : i32
    %c0_i32_0 = arith.constant 0 : i32
    %c0_i32_1 = arith.constant 0 : i32
    return %arg0, %c0_i32, %c0_i32_0 : i32, i32, i32
  }
  func.func @transform_3(%arg0: i32) -> (i32, i32, i32) {
    %c0_i32 = arith.constant 0 : i32
    %c0_i32_0 = arith.constant 0 : i32
    %c0_i32_1 = arith.constant 0 : i32
    return %arg0, %c0_i32, %c0_i32_0 : i32, i32, i32
  }
}

</mosaic_0001>

<llo_original>
// kernel: net_forward.3
$region0: #{net_forward.3}
  #allocation0 [shape = 'u32[]', space=smem, size = 0x4, offset = 0x4, fixed_abs, tag = 'smem constant byte address 0x4 - core index']
  #allocation1 [shape = 'u32[72,128]{1,0:T(1,128)}', space=vmem, size = 0x9000, scoped, tag = 'internal scratch']
  %s0 = inlined_call_operand.vmem [shape: bf16[2,64,192], index: 0, kind: input, shape index: {}]
  %s1 = inlined_call_operand.vmem [shape: bf16[192,128], index: 1, kind: input, shape index: {}]
  %s2 = inlined_call_operand.hbm [shape: f32[1,128], index: 2, kind: input, shape index: {}]
  %s3 = inlined_call_operand.vmem [shape: bf16[128,128], index: 3, kind: input, shape index: {}]
  %s4 = inlined_call_operand.hbm [shape: f32[1,128], index: 4, kind: input, shape index: {}]
  %s5 = inlined_call_operand.vmem [shape: f32[2,128,64], index: 5, kind: output, shape index: {0}]
  %s6 = inlined_call_operand.vmem [shape: f32[2,1,128], index: 6, kind: output, shape index: {1}]
  %7 = xla_tuple %s5, %s6
  %s8 = sld [smem:[#allocation0]]
  $region69: #{net_forward.3} parent=0
    _
  %s10 = ssub.s32 1, %s8
  %s11 = scalar_select 0, %s10, %s8
  $region1: #{net_forward.3} parent=0
    #allocation2 [shape = 'u8[512]{0}', space=vmem, size = 0x400, scoped, tag = 'input window, operand 2, single buffered']
    #allocation3 [shape = 's32[2]{0}', space=sflag, size = 0x8, scoped, tag = 'scoped memory for net_forward.3']
    #allocation4 [shape = 'u8[512]{0}', space=vmem, size = 0x400, scoped, tag = 'input window, operand 4, single buffered']
    #allocation5 [shape = 's32[1]{0}', space=sflag, size = 0x4, scoped, tag = 'scoped memory for net_forward.3']
    %12 = vsyncpa [#allocation3], 0
    %13 = vsyncpa [#allocation5], 0
    loop: start=0, step=1, limit=4
    $region2: #{net_forward.3} parent=1 // loop_pre_header
      _
    $region3: #{net_forward.3} parent=1 // loop_header
      %s15 = sphi 0, %s19
      %p16 = scmp.ge.s32.totalorder %s15, 4
      %s25 = sphi 0, %s27
      %s28 = sphi 0, %s25
      %s29 = sphi 0, %s28
      %s45 = sphi 0, %s29
      %s49 = sphi 0, %s49
      %s51 = sphi 0, %s49
      %s52 = sphi 0, %s51
      %s66 = sphi 0, %s52
      %s70 = sphi 0, %s70
      %s72 = sphi 0, %s70
      %s73 = sphi 0, %s72
      %s87 = sphi 0, %s73
      %s91 = sphi 0, %s91
      %s93 = sphi 0, %s91
      %s94 = sphi 0, %s93
      %s108 = sphi 0, %s94
      %s112 = sphi 0, %s112
      %s114 = sphi 0, %s112
      %s115 = sphi 0, %s114
      %s129 = sphi 0, %s115
      %s135 = sphi 0, %s137
      %s138 = sphi 0, %s135
      %s139 = sphi 0, %s138
      %s155 = sphi 0, %s139
      %s161 = sphi 0, %s163
      %s164 = sphi 0, %s161
      %s165 = sphi 0, %s164
      %s181 = sphi 0, %s165
    $region4: #{net_forward.3} parent=1 // loop_header_branch
      %18 = sbr.rel (%p16) target = $region8
    $region5: #{net_forward.3} parent=1 // loop_body
      %s20 = ssub.s32 %s15, 1
      %s21 = ssub.s32 %s15, 2
      %s22 = sadd.s32 %s15, 1
      %s23 = ssub.s32 %s15, %s22
      %p24 = scmp.eq.s32.totalorder %s23, 0
      %s26 = sadd.s32 %s25, 1
      %s27 = scalar_select %p24, %s25, %s26
      %p30 = pneg %p24
      %p31 = scmp.eq.s32.totalorder %s15, 1
      %p32 = por %p30, %p31
      %p33 = scmp.ne.s32.totalorder %s25, %s28
      %p34 = scmp.eq.s32.totalorder %s15, 0
      %p35 = por %p33, %p34
      %p36 = scmp.ne.s32.totalorder %s25, %s28
      %p37 = scmp.eq.s32.totalorder %s20, 1
      %p38 = por %p36, %p37
      %p39 = scmp.ne.s32.totalorder %s28, %s29
      %p40 = scmp.eq.s32.totalorder %s20, 0
      %p41 = por %p39, %p40
      %p42 = scmp.ne.s32.totalorder %s28, %s29
      %p43 = scmp.eq.s32.totalorder %s21, 1
      %p44 = por %p42, %p43
      %p46 = scmp.ne.s32.totalorder %s29, %s45
      %p47 = scmp.eq.s32.totalorder %s21, 0
      %p48 = por %p46, %p47
      %s50 = sadd.s32 %s49, 1
      %p53 = scmp.eq.s32.totalorder %s15, 1
      %p54 = scmp.ne.s32.totalorder %s49, %s51
      %p55 = scmp.eq.s32.totalorder %s15, 0
      %p56 = por %p54, %p55
      %p57 = scmp.ne.s32.totalorder %s49, %s51
      %p58 = scmp.eq.s32.totalorder %s20, 1
      %p59 = por %p57, %p58
      %p60 = scmp.ne.s32.totalorder %s51, %s52
      %p61 = scmp.eq.s32.totalorder %s20, 0
      %p62 = por %p60, %p61
      %p63 = scmp.ne.s32.totalorder %s51, %s52
      %p64 = scmp.eq.s32.totalorder %s21, 1
      %p65 = por %p63, %p64
      %p67 = scmp.ne.s32.totalorder %s52, %s66
      %p68 = scmp.eq.s32.totalorder %s21, 0
      %p69 = por %p67, %p68
      %s71 = sadd.s32 %s70, 1
      %p74 = scmp.eq.s32.totalorder %s15, 1
      %p75 = scmp.ne.s32.totalorder %s70, %s72
      %p76 = scmp.eq.s32.totalorder %s15, 0
      %p77 = por %p75, %p76
      %p78 = scmp.ne.s32.totalorder %s70, %s72
      %p79 = scmp.eq.s32.totalorder %s20, 1
      %p80 = por %p78, %p79
      %p81 = scmp.ne.s32.totalorder %s72, %s73
      %p82 = scmp.eq.s32.totalorder %s20, 0
      %p83 = por %p81, %p82
      %p84 = scmp.ne.s32.totalorder %s72, %s73
      %p85 = scmp.eq.s32.totalorder %s21, 1
      %p86 = por %p84, %p85
      %p88 = scmp.ne.s32.totalorder %s73, %s87
      %p89 = scmp.eq.s32.totalorder %s21, 0
      %p90 = por %p88, %p89
      %s92 = sadd.s32 %s91, 1
      %p95 = scmp.eq.s32.totalorder %s15, 1
      %p96 = scmp.ne.s32.totalorder %s91, %s93
      %p97 = scmp.eq.s32.totalorder %s15, 0
      %p98 = por %p96, %p97
      %p99 = scmp.ne.s32.totalorder %s91, %s93
      %p100 = scmp.eq.s32.totalorder %s20, 1
      %p101 = por %p99, %p100
      %p102 = scmp.ne.s32.totalorder %s93, %s94
      %p103 = scmp.eq.s32.totalorder %s20, 0
      %p104 = por %p102, %p103
      %p105 = scmp.ne.s32.totalorder %s93, %s94
      %p106 = scmp.eq.s32.totalorder %s21, 1
      %p107 = por %p105, %p106
      %p109 = scmp.ne.s32.totalorder %s94, %s108
      %p110 = scmp.eq.s32.totalorder %s21, 0
      %p111 = por %p109, %p110
      %s113 = sadd.s32 %s112, 1
      %p116 = scmp.eq.s32.totalorder %s15, 1
      %p117 = scmp.ne.s32.totalorder %s112, %s114
      %p118 = scmp.eq.s32.totalorder %s15, 0
      %p119 = por %p117, %p118
      %p120 = scmp.ne.s32.totalorder %s112, %s114
      %p121 = scmp.eq.s32.totalorder %s20, 1
      %p122 = por %p120, %p121
      %p123 = scmp.ne.s32.totalorder %s114, %s115
      %p124 = scmp.eq.s32.totalorder %s20, 0
      %p125 = por %p123, %p124
      %p126 = scmp.ne.s32.totalorder %s114, %s115
      %p127 = scmp.eq.s32.totalorder %s21, 1
      %p128 = por %p126, %p127
      %p130 = scmp.ne.s32.totalorder %s115, %s129
      %p131 = scmp.eq.s32.totalorder %s21, 0
      %p132 = por %p130, %p131
      %s133 = ssub.s32 %s15, %s22
      %p134 = scmp.eq.s32.totalorder %s133, 0
      %s136 = sadd.s32 %s135, 1
      %s137 = scalar_select %p134, %s135, %s136
      %p140 = pneg %p134
      %p141 = scmp.eq.s32.totalorder %s15, 1
      %p142 = por %p140, %p141
      %p143 = scmp.ne.s32.totalorder %s135, %s138
      %p144 = scmp.eq.s32.totalorder %s15, 0
      %p145 = por %p143, %p144
      %p146 = scmp.ne.s32.totalorder %s135, %s138
      %p147 = scmp.eq.s32.totalorder %s20, 1
      %p148 = por %p146, %p147
      %p149 = scmp.ne.s32.totalorder %s138, %s139
      %p150 = scmp.eq.s32.totalorder %s20, 0
      %p151 = por %p149, %p150
      %p152 = scmp.ne.s32.totalorder %s138, %s139
      %p153 = scmp.eq.s32.totalorder %s21, 1
      %p154 = por %p152, %p153
      %p156 = scmp.ne.s32.totalorder %s139, %s155
      %p157 = scmp.eq.s32.totalorder %s21, 0
      %p158 = por %p156, %p157
      %s159 = ssub.s32 %s15, %s22
      %p160 = scmp.eq.s32.totalorder %s159, 0
      %s162 = sadd.s32 %s161, 1
      %s163 = scalar_select %p160, %s161, %s162
      %p166 = pneg %p160
      %p167 = scmp.eq.s32.totalorder %s15, 1
      %p168 = por %p166, %p167
      %p169 = scmp.ne.s32.totalorder %s161, %s164
      %p170 = scmp.eq.s32.totalorder %s15, 0
      %p171 = por %p169, %p170
      %p172 = scmp.ne.s32.totalorder %s161, %s164
      %p173 = scmp.eq.s32.totalorder %s20, 1
      %p174 = por %p172, %p173
      %p175 = scmp.ne.s32.totalorder %s164, %s165
      %p176 = scmp.eq.s32.totalorder %s20, 0
      %p177 = por %p175, %p176
      %p178 = scmp.ne.s32.totalorder %s164, %s165
      %p179 = scmp.eq.s32.totalorder %s21, 1
      %p180 = por %p178, %p179
      %p182 = scmp.ne.s32.totalorder %s165, %s181
      %p183 = scmp.eq.s32.totalorder %s21, 0
      %p184 = por %p182, %p183
      %p185 = scmp.le.s32.totalorder 1, %s15
      %p186 = scmp.lt.s32.totalorder %s15, 3
      %p187 = pnand %p185, %p186
      %p188 = pneg %p187
      // Predicated region
      $region9: #{net_forward.3} parent=5 // pred_check
        _
      $region10: #{net_forward.3} parent=5 // pred_check_branch
        %190 = sbr.rel (%p187) target = $region12
      $region11: #{net_forward.3} parent=5 // pred_region
        %s191 = ssub.s32 %s15, 1
        // Predicated region
        $region13: #{net_forward.3} parent=11 // pred_check
          %p192 = pneg %p62
        $region14: #{net_forward.3} parent=11 // pred_check_branch
          %194 = sbr.rel (%p192) target = $region16
        $region15: #{net_forward.3} parent=11 // pred_region
          _
        $region16: #{net_forward.3} parent=11 // pred_fallthru
          _
        // Predicated region
        $region17: #{net_forward.3} parent=11 // pred_check
          %p195 = pneg %p83
        $region18: #{net_forward.3} parent=11 // pred_check_branch
          %197 = sbr.rel (%p195) target = $region20
        $region19: #{net_forward.3} parent=11 // pred_region
          %199 = vsyncadd [#allocation3], 0
          %s201 = sshll.u32 %s2, 4
          %s202 = int_to_ptr.hbm [resolvable:$true] %s201
          %s203 = sshll.u32 [#allocation2], 4
          %s204 = int_to_ptr.vmem [resolvable:$true] %s203
          %206 = dma.hbm_to_vmem [thread:$0]  %s202, 16, %s204, [#allocation3]
        $region20: #{net_forward.3} parent=11 // pred_fallthru
          _
        // Predicated region
        $region21: #{net_forward.3} parent=11 // pred_check
          %p207 = pneg %p104
        $region22: #{net_forward.3} parent=11 // pred_check_branch
          %209 = sbr.rel (%p207) target = $region24
        $region23: #{net_forward.3} parent=11 // pred_region
          _
        $region24: #{net_forward.3} parent=11 // pred_fallthru
          _
        // Predicated region
        $region25: #{net_forward.3} parent=11 // pred_check
          %p210 = pneg %p125
        $region26: #{net_forward.3} parent=11 // pred_check_branch
          %212 = sbr.rel (%p210) target = $region28
        $region27: #{net_forward.3} parent=11 // pred_region
          %214 = vsyncadd [#allocation5], 0
          %s216 = sshll.u32 %s4, 4
          %s217 = int_to_ptr.hbm [resolvable:$true] %s216
          %s218 = sshll.u32 [#allocation4], 4
          %s219 = int_to_ptr.vmem [resolvable:$true] %s218
          %221 = dma.hbm_to_vmem [thread:$0]  %s217, 16, %s219, [#allocation5]
        $region28: #{net_forward.3} parent=11 // pred_fallthru
          _
      $region12: #{net_forward.3} parent=5 // pred_fallthru
        _
      %p222 = scmp.lt.s32.totalorder %s15, 2
      // Predicated region
      $region29: #{net_forward.3} parent=5 // pred_check
        %p223 = pneg %p222
      $region30: #{net_forward.3} parent=5 // pred_check_branch
        %225 = sbr.rel (%p223) target = $region32
      $region31: #{net_forward.3} parent=5 // pred_region
        // Predicated region
        $region33: #{net_forward.3} parent=31 // pred_check
          %p226 = pneg %p35
        $region34: #{net_forward.3} parent=31 // pred_check_branch
          %228 = sbr.rel (%p226) target = $region36
        $region35: #{net_forward.3} parent=31 // pred_region
          %p229 = scmp.lt.s32.totalorder %s15, 1
          %s230 = scalar_select %p229, %s15, 1
          %s231 = smul.addr %s230, 16
          %s232 = smul.addr %s231, 4
          %s233 = scalar_lea.vmem %s0, %s232
        $region36: #{net_forward.3} parent=31 // pred_fallthru
          _
      $region32: #{net_forward.3} parent=5 // pred_fallthru
        _
      %p234 = scmp.le.s32.totalorder 1, %s15
      %p235 = scmp.lt.s32.totalorder %s15, 3
      %p236 = pnand %p234, %p235
      %p237 = pneg %p236
      // Predicated region
      $region37: #{net_forward.3} parent=5 // pred_check
        _
      $region38: #{net_forward.3} parent=5 // pred_check_branch
        %239 = sbr.rel (%p236) target = $region40
      $region39: #{net_forward.3} parent=5 // pred_region
        %s240 = ssub.s32 %s15, 1
        // Predicated region
        $region41: #{net_forward.3} parent=39 // pred_check
          %p241 = pneg %p83
        $region42: #{net_forward.3} parent=39 // pred_check_branch
          %243 = sbr.rel (%p241) target = $region44
        $region43: #{net_forward.3} parent=39 // pred_region
          %245 = dma.done [#allocation3], 16
        $region44: #{net_forward.3} parent=39 // pred_fallthru
          _
        // Predicated region
        $region45: #{net_forward.3} parent=39 // pred_check
          %p246 = pneg %p125
        $region46: #{net_forward.3} parent=39 // pred_check_branch
          %248 = sbr.rel (%p246) target = $region48
        $region47: #{net_forward.3} parent=39 // pred_region
          %250 = dma.done [#allocation5], 16
        $region48: #{net_forward.3} parent=39 // pred_fallthru
          _
        %p251 = scmp.lt.s32.totalorder %s20, 1
        %s252 = scalar_select %p251, %s20, 1
        %s253 = smul.addr %s252, 16
        %s254 = smul.addr %s253, 4
        %s255 = scalar_lea.vmem %s0, %s254
        %p256 = pneg %p41
        %p257 = pneg %p38
        %p258 = pneg %p62
        %p259 = pneg %p59
        %p260 = pneg %p83
        %p261 = pneg %p80
        %p262 = pneg %p104
        %p263 = pneg %p101
        %p264 = pneg %p125
        %p265 = pneg %p122
        %p266 = pneg %p151
        %p267 = pneg %p148
        %p268 = scmp.lt.s32.totalorder %s20, 1
        %s269 = scalar_select %p268, %s20, 1
        %s270 = smul.addr %s269, 16
        %s271 = smul.addr %s270, 8
        %s272 = scalar_lea.vmem %s5, %s271
        %p273 = pneg %p177
        %p274 = pneg %p174
        %p275 = scmp.lt.s32.totalorder %s20, 1
        %s276 = scalar_select %p275, %s20, 1
        %s277 = scalar_lea.vmem %s6, %s276
        %p278 = scmp.lt.s32.totalorder %s20, 1
        %s279 = scalar_select %p278, %s20, 1
        %s280 = smul.addr %s279, 16
        %s281 = smul.addr %s280, 4
        %s282 = scalar_lea.vmem %s0, %s281
        %p283 = scmp.lt.s32.totalorder %s20, 1
        %s284 = scalar_select %p283, %s20, 1
        %s285 = smul.addr %s284, 16
        %s286 = smul.addr %s285, 8
        %s287 = scalar_lea.vmem %s5, %s286
        %p288 = scmp.lt.s32.totalorder %s20, 1
        %s289 = scalar_select %p288, %s20, 1
        %s290 = scalar_lea.vmem %s6, %s289
        %v292 = vld [vmem:[%s282] sm:$0xff]
        %v293 = vld [vmem:[%s282 + $0x8] sm:$0xff]
        %v294 = vld [vmem:[%s282 + $0x10] sm:$0xff]
        %v295 = vld [vmem:[%s282 + $0x18] sm:$0xff]
        %v296 = vld [vmem:[%s282 + $0x20] sm:$0xff]
        %v297 = vld [vmem:[%s282 + $0x28] sm:$0xff]
        %v298 = vld [vmem:[%s282 + $0x30] sm:$0xff]
        %v299 = vld [vmem:[%s282 + $0x38] sm:$0xff]
        %v300 = vld [vmem:[%s1] sm:$0xf]
        %v301 = vld [vmem:[%s1 + $0x4] sm:$0xf]
        %v302 = vld [vmem:[%s1 + $0x8] sm:$0xf]
        %v303 = vld [vmem:[%s1 + $0xc] sm:$0xf]
        %v304 = vld [vmem:[%s1 + $0x10] sm:$0xf]
        %v305 = vld [vmem:[%s1 + $0x14] sm:$0xf]
        %v306 = vld [vmem:[%s1 + $0x18] sm:$0xf]
        %v307 = vld [vmem:[%s1 + $0x1c] sm:$0xf]
        %v308 = vld [vmem:[%s1 + $0x20] sm:$0xf]
        %v309 = vld [vmem:[%s1 + $0x24] sm:$0xf]
        %v310 = vld [vmem:[%s1 + $0x28] sm:$0xf]
        %v311 = vld [vmem:[%s1 + $0x2c] sm:$0xf]
        %v312 = vld [vmem:[%s1 + $0x30] sm:$0xf]
        %v313 = vld [vmem:[%s1 + $0x34] sm:$0xf]
        %v314 = vld [vmem:[%s1 + $0x38] sm:$0xf]
        %v315 = vld [vmem:[%s1 + $0x3c] sm:$0xf]
        %v316 = vld [vmem:[%s1 + $0x40] sm:$0xf]
        %v317 = vld [vmem:[%s1 + $0x44] sm:$0xf]
        %v318 = vld [vmem:[%s1 + $0x48] sm:$0xf]
        %v319 = vld [vmem:[%s1 + $0x4c] sm:$0xf]
        %v320 = vld [vmem:[%s1 + $0x50] sm:$0xf]
        %v321 = vld [vmem:[%s1 + $0x54] sm:$0xf]
        %v322 = vld [vmem:[%s1 + $0x58] sm:$0xf]
        %v323 = vld [vmem:[%s1 + $0x5c] sm:$0xf]
        %v324 = vld [vmem:[#allocation2] sm:$0x1]
        %v326 = vperm.slane %v324, 0
        %v336 = vunpack.c.l.b16 %v292
        %v337 = vunpack.c.h.b16 %v292
        %v338 = vunpack.c.l.b16 %v293
        %v339 = vunpack.c.h.b16 %v293
        %v340 = vunpack.c.l.b16 %v294
        %v341 = vunpack.c.h.b16 %v294
        %v342 = vunpack.c.l.b16 %v295
        %v343 = vunpack.c.h.b16 %v295
        %v344 = vunpack.c.l.b16 %v296
        %v345 = vunpack.c.h.b16 %v296
        %v346 = vunpack.c.l.b16 %v297
        %v347 = vunpack.c.h.b16 %v297
        %v348 = vunpack.c.l.b16 %v298
        %v349 = vunpack.c.h.b16 %v298
        %v350 = vunpack.c.l.b16 %v299
        %v351 = vunpack.c.h.b16 %v299
        %v352 = vpack.c.b16 %v338, %v336
        %v353 = vpack.c.b16 %v339, %v337
        %v354 = vpack.c.b16 %v342, %v340
        %v355 = vpack.c.b16 %v343, %v341
        %v356 = vpack.c.b16 %v346, %v344
        %v357 = vpack.c.b16 %v347, %v345
        %v358 = vpack.c.b16 %v350, %v348
        %v359 = vpack.c.b16 %v351, %v349
        %v388 = vunpack.c.l.b16 %v300
        %v389 = vunpack.c.l.b16 %v301
        %v390 = vunpack.c.l.b16 %v302
        %v391 = vunpack.c.l.b16 %v303
        %v392 = vunpack.c.l.b16 %v304
        %v393 = vunpack.c.l.b16 %v305
        %v394 = vunpack.c.l.b16 %v306
        %v395 = vunpack.c.l.b16 %v307
        %v396 = vunpack.c.l.b16 %v308
        %v397 = vunpack.c.l.b16 %v309
        %v398 = vunpack.c.l.b16 %v310
        %v399 = vunpack.c.l.b16 %v311
        %v400 = vunpack.c.l.b16 %v312
        %v401 = vunpack.c.l.b16 %v313
        %v402 = vunpack.c.l.b16 %v314
        %v403 = vunpack.c.l.b16 %v315
        %v404 = vunpack.c.l.b16 %v316
        %v405 = vunpack.c.l.b16 %v317
        %v406 = vunpack.c.l.b16 %v318
        %v407 = vunpack.c.l.b16 %v319
        %v408 = vunpack.c.l.b16 %v320
        %v409 = vunpack.c.l.b16 %v321
        %v410 = vunpack.c.l.b16 %v322
        %v411 = vunpack.c.l.b16 %v323
        %v412 = vpack.c.b16 %v389, %v388
        %v413 = vpack.c.b16 %v391, %v390
        %v414 = vpack.c.b16 %v393, %v392
        %v415 = vpack.c.b16 %v395, %v394
        %v416 = vpack.c.b16 %v397, %v396
        %v417 = vpack.c.b16 %v399, %v398
        %v418 = vpack.c.b16 %v401, %v400
        %v419 = vpack.c.b16 %v403, %v402
        %v420 = vpack.c.b16 %v405, %v404
        %v421 = vpack.c.b16 %v407, %v406
        %v422 = vpack.c.b16 %v409, %v408
        %v423 = vpack.c.b16 %v411, %v410
        %vm436 = vcmask 523264
        %v438 = vsel %vm436, %v353, 0
        %v441 = vsel %vm436, %v355, 0
        %v444 = vsel %vm436, %v357, 0
        %v447 = vsel %vm436, %v359, 0
        %449 = vmatpush.bf16.msra.mxu0 %v419
        %450 = vmatpush.bf16.msra.mxu0 %v418
        %451 = vmatpush.bf16.msra.mxu0 %v417
        %452 = vmatpush.bf16.msra.mxu0 %v416
        %453 = vmatpush.bf16.msra.mxu0 %v415
        %454 = vmatpush.bf16.msra.mxu0 %v414
        %455 = vmatpush.bf16.msra.mxu0 %v413
        %456 = vmatpush.bf16.msra.mxu0 %v412
        %457 = vmatmul.bf16.gmra.mxu0 %v352
        %v458 = vpop.f32.mrf.mxu0
        %v459 = vadd.f32 %v326, %v458
        %v460 = vpop.f32.mrf.mxu0
        %v461 = vadd.f32 %v326, %v460
        %462 = vmatmul.bf16.gmra.mxu0 %v354
        %v463 = vpop.f32.mrf.mxu0
        %v464 = vadd.f32 %v326, %v463
        %v465 = vpop.f32.mrf.mxu0
        %v466 = vadd.f32 %v326, %v465
        %467 = vmatmul.bf16.gmra.mxu0 %v356
        %v468 = vpop.f32.mrf.mxu0
        %v469 = vadd.f32 %v326, %v468
        %v470 = vpop.f32.mrf.mxu0
        %v471 = vadd.f32 %v326, %v470
        %472 = vmatmul.bf16.gmra.mxu0 %v358
        %v473 = vpop.f32.mrf.mxu0
        %v474 = vadd.f32 %v326, %v473
        %v475 = vpop.f32.mrf.mxu0
        %v476 = vadd.f32 %v326, %v475
        %477 = vdwg.mxu0
        %478 = vmatpush.bf16.msra.mxu0 0
        %479 = vmatpush.bf16.msra.mxu0 0
        %480 = vmatpush.bf16.msra.mxu0 0
        %481 = vmatpush.bf16.msra.mxu0 0
        %482 = vmatpush.bf16.msra.mxu0 %v423
        %483 = vmatpush.bf16.msra.mxu0 %v422
        %484 = vmatpush.bf16.msra.mxu0 %v421
        %485 = vmatpush.bf16.msra.mxu0 %v420
        %486 = vmatmul.bf16.gmra.mxu0 %v438
        %v487 = vpop.f32.mrf.mxu0
        %v488 = vadd.f32 %v459, %v487
        %v489 = vpop.f32.mrf.mxu0
        %v490 = vadd.f32 %v461, %v489
        %491 = vmatmul.bf16.gmra.mxu0 %v441
        %v492 = vpop.f32.mrf.mxu0
        %v493 = vadd.f32 %v464, %v492
        %v494 = vpop.f32.mrf.mxu0
        %v495 = vadd.f32 %v466, %v494
        %496 = vmatmul.bf16.gmra.mxu0 %v444
        %v497 = vpop.f32.mrf.mxu0
        %v498 = vadd.f32 %v469, %v497
        %v499 = vpop.f32.mrf.mxu0
        %v500 = vadd.f32 %v471, %v499
        %501 = vmatmul.bf16.gmra.mxu0 %v447
        %v502 = vpop.f32.mrf.mxu0
        %v503 = vadd.f32 %v474, %v502
        %v504 = vpop.f32.mrf.mxu0
        %v505 = vadd.f32 %v476, %v504
        %506 = vdwg.mxu0
        %507 = vxpose.xlu0.b32.start [1/16] %v488, 128
        %508 = vxpose.xlu0.b32.cont [2/16] %v490, 128
        %509 = vxpose.xlu0.b32.cont [3/16] %v493, 128
        %510 = vxpose.xlu0.b32.cont [4/16] %v495, 128
        %511 = vxpose.xlu0.b32.cont [5/16] %v498, 128
        %512 = vxpose.xlu0.b32.cont [6/16] %v500, 128
        %513 = vxpose.xlu0.b32.cont [7/16] %v503, 128
        %514 = vxpose.xlu0.b32.cont [8/16] %v505, 128
        %515 = vxpose.xlu0.b32.cont [9/16] 0.0, 128
        %516 = vxpose.xlu0.b32.cont [10/16] 0.0, 128
        %517 = vxpose.xlu0.b32.cont [11/16] 0.0, 128
        %518 = vxpose.xlu0.b32.cont [12/16] 0.0, 128
        %519 = vxpose.xlu0.b32.cont [13/16] 0.0, 128
        %520 = vxpose.xlu0.b32.cont [14/16] 0.0, 128
        %521 = vxpose.xlu0.b32.cont [15/16] 0.0, 128
        %522 = vxpose.xlu0.b32.end [16/16] 0.0, 128
        %v523 = vpop.trf.xlu0
        %v524 = vpop.trf.xlu0
        %v525 = vpop.trf.xlu0
        %v526 = vpop.trf.xlu0
        %v527 = vpop.trf.xlu0
        %v528 = vpop.trf.xlu0
        %v529 = vpop.trf.xlu0
        %v530 = vpop.trf.xlu0
        %v531 = vpop.trf.xlu0
        %v532 = vpop.trf.xlu0
        %v533 = vpop.trf.xlu0
        %v534 = vpop.trf.xlu0
        %v535 = vpop.trf.xlu0
        %v536 = vpop.trf.xlu0
        %v537 = vpop.trf.xlu0
        %v538 = vpop.trf.xlu0
        %539 = vst.msk [vmem:[%s287] sm:$0xff] %vm436, %v523
        %540 = vst.msk [vmem:[%s287 + $0x8] sm:$0xff] %vm436, %v524
        %541 = vst.msk [vmem:[%s287 + $0x10] sm:$0xff] %vm436, %v525
        %542 = vst.msk [vmem:[%s287 + $0x18] sm:$0xff] %vm436, %v526
        %543 = vst.msk [vmem:[%s287 + $0x20] sm:$0xff] %vm436, %v527
        %544 = vst.msk [vmem:[%s287 + $0x28] sm:$0xff] %vm436, %v528
        %545 = vst.msk [vmem:[%s287 + $0x30] sm:$0xff] %vm436, %v529
        %546 = vst.msk [vmem:[%s287 + $0x38] sm:$0xff] %vm436, %v530
        %547 = vst.msk [vmem:[%s287 + $0x40] sm:$0xff] %vm436, %v531
        %548 = vst.msk [vmem:[%s287 + $0x48] sm:$0xff] %vm436, %v532
        %549 = vst.msk [vmem:[%s287 + $0x50] sm:$0xff] %vm436, %v533
        %550 = vst.msk [vmem:[%s287 + $0x58] sm:$0xff] %vm436, %v534
        %551 = vst.msk [vmem:[%s287 + $0x60] sm:$0xff] %vm436, %v535
        %552 = vst.msk [vmem:[%s287 + $0x68] sm:$0xff] %vm436, %v536
        %553 = vst.msk [vmem:[%s287 + $0x70] sm:$0xff] %vm436, %v537
        %554 = vst.msk [vmem:[%s287 + $0x78] sm:$0xff] %vm436, %v538
        %v555 = vadd.f32 %v488, %v490
        %v556 = vadd.f32 %v555, %v493
        %v557 = vadd.f32 %v556, %v495
        %v558 = vadd.f32 %v557, %v498
        %v559 = vadd.f32 %v558, %v500
        %v560 = vadd.f32 %v559, %v503
        %v561 = vadd.f32 %v560, %v505
        %v562 = vrot.slane %v561, 4
        %v563 = vadd.f32 %v561, %v562
        %v564 = vrot.slane %v563, 2
        %v565 = vadd.f32 %v563, %v564
        %v566 = vrot.slane %v565, 1
        %v567 = vadd.f32 %v565, %v566
        %v568 = vrcp.pop 64.0
        %v569 = vmul.f32 64.0, %v568
        %v570 = vsub.f32 1.0, %v569
        %v571 = vmul.f32 %v568, %v570
        %v572 = vadd.f32 %v568, %v571
        %vm573 = vweird.f32 %v568
        %v574 = vsel %vm573, %v568, %v572
        %v575 = vmul.f32 %v567, %v574
        %v576 = vpack.c.bf16 %v575, %v575
        %v577 = vld [vmem:[%s3] sm:$0xf]
        %v578 = vld [vmem:[%s3 + $0x4] sm:$0xf]
        %v579 = vld [vmem:[%s3 + $0x8] sm:$0xf]
        %v580 = vld [vmem:[%s3 + $0xc] sm:$0xf]
        %v581 = vld [vmem:[%s3 + $0x10] sm:$0xf]
        %v582 = vld [vmem:[%s3 + $0x14] sm:$0xf]
        %v583 = vld [vmem:[%s3 + $0x18] sm:$0xf]
        %v584 = vld [vmem:[%s3 + $0x1c] sm:$0xf]
        %v585 = vld [vmem:[%s3 + $0x20] sm:$0xf]
        %v586 = vld [vmem:[%s3 + $0x24] sm:$0xf]
        %v587 = vld [vmem:[%s3 + $0x28] sm:$0xf]
        %v588 = vld [vmem:[%s3 + $0x2c] sm:$0xf]
        %v589 = vld [vmem:[%s3 + $0x30] sm:$0xf]
        %v590 = vld [vmem:[%s3 + $0x34] sm:$0xf]
        %v591 = vld [vmem:[%s3 + $0x38] sm:$0xf]
        %v592 = vld [vmem:[%s3 + $0x3c] sm:$0xf]
        %v593 = vld [vmem:[#allocation4] sm:$0x1]
        %v610 = vunpack.c.l.b16 %v577
        %v611 = vunpack.c.l.b16 %v578
        %v612 = vunpack.c.l.b16 %v579
        %v613 = vunpack.c.l.b16 %v580
        %v614 = vunpack.c.l.b16 %v581
        %v615 = vunpack.c.l.b16 %v582
        %v616 = vunpack.c.l.b16 %v583
        %v617 = vunpack.c.l.b16 %v584
        %v618 = vunpack.c.l.b16 %v585
        %v619 = vunpack.c.l.b16 %v586
        %v620 = vunpack.c.l.b16 %v587
        %v621 = vunpack.c.l.b16 %v588
        %v622 = vunpack.c.l.b16 %v589
        %v623 = vunpack.c.l.b16 %v590
        %v624 = vunpack.c.l.b16 %v591
        %v625 = vunpack.c.l.b16 %v592
        %v626 = vpack.c.b16 %v611, %v610
        %v627 = vpack.c.b16 %v613, %v612
        %v628 = vpack.c.b16 %v615, %v614
        %v629 = vpack.c.b16 %v617, %v616
        %v630 = vpack.c.b16 %v619, %v618
        %v631 = vpack.c.b16 %v621, %v620
        %v632 = vpack.c.b16 %v623, %v622
        %v633 = vpack.c.b16 %v625, %v624
        %642 = vmatpush.bf16.msra.mxu0 %v633
        %643 = vmatpush.bf16.msra.mxu0 %v632
        %644 = vmatpush.bf16.msra.mxu0 %v631
        %645 = vmatpush.bf16.msra.mxu0 %v630
        %646 = vmatpush.bf16.msra.mxu0 %v629
        %647 = vmatpush.bf16.msra.mxu0 %v628
        %648 = vmatpush.bf16.msra.mxu0 %v627
        %649 = vmatpush.bf16.msra.mxu0 %v626
        %650 = vmatmul.bf16.gmra.mxu0 %v576
        %v651 = vpop.f32.mrf.mxu0
        %v652 = vadd.f32 %v593, %v651
        %v653 = vpop.f32.mrf.mxu0
        %654 = vdwg.mxu0
        %655 = vst [vmem:[%s290] sm:$0x1] %v652
        %p656 = scmp.lt.s32.totalorder %s20, 1
        %s657 = scalar_select %p656, %s20, 1
        %s658 = smul.addr %s657, 16
        %s659 = smul.addr %s658, 8
        %s660 = scalar_lea.vmem %s5, %s659
        %p661 = scmp.lt.s32.totalorder %s20, 1
        %s662 = scalar_select %p661, %s20, 1
        %s663 = scalar_lea.vmem %s6, %s662
        // Predicated region
        $region49: #{net_forward.3} parent=39 // pred_check
          %p664 = pneg %p148
        $region50: #{net_forward.3} parent=39 // pred_check_branch
          %666 = sbr.rel (%p664) target = $region52
        $region51: #{net_forward.3} parent=39 // pred_region
          _
        $region52: #{net_forward.3} parent=39 // pred_fallthru
          _
        // Predicated region
        $region53: #{net_forward.3} parent=39 // pred_check
          %p667 = pneg %p174
        $region54: #{net_forward.3} parent=39 // pred_check_branch
          %669 = sbr.rel (%p667) target = $region56
        $region55: #{net_forward.3} parent=39 // pred_region
          _
        $region56: #{net_forward.3} parent=39 // pred_fallthru
          _
      $region40: #{net_forward.3} parent=5 // pred_fallthru
        _
      %p670 = scmp.le.s32.totalorder 2, %s15
      // Predicated region
      $region57: #{net_forward.3} parent=5 // pred_check
        %p671 = pneg %p670
      $region58: #{net_forward.3} parent=5 // pred_check_branch
        %673 = sbr.rel (%p671) target = $region60
      $region59: #{net_forward.3} parent=5 // pred_region
        %s674 = ssub.s32 %s15, 2
        // Predicated region
        $region61: #{net_forward.3} parent=59 // pred_check
          %p675 = pneg %p154
        $region62: #{net_forward.3} parent=59 // pred_check_branch
          %677 = sbr.rel (%p675) target = $region64
        $region63: #{net_forward.3} parent=59 // pred_region
          %p678 = scmp.lt.s32.totalorder %s21, 1
          %s679 = scalar_select %p678, %s21, 1
          %s680 = smul.addr %s679, 16
          %s681 = smul.addr %s680, 8
          %s682 = scalar_lea.vmem %s5, %s681
        $region64: #{net_forward.3} parent=59 // pred_fallthru
          _
        // Predicated region
        $region65: #{net_forward.3} parent=59 // pred_check
          %p683 = pneg %p180
        $region66: #{net_forward.3} parent=59 // pred_check_branch
          %685 = sbr.rel (%p683) target = $region68
        $region67: #{net_forward.3} parent=59 // pred_region
          %p686 = scmp.lt.s32.totalorder %s21, 1
          %s687 = scalar_select %p686, %s21, 1
          %s688 = scalar_lea.vmem %s6, %s687
        $region68: #{net_forward.3} parent=59 // pred_fallthru
          _
      $region60: #{net_forward.3} parent=5 // pred_fallthru
        _
    $region6: #{net_forward.3} parent=1 // loop_footer
      %s19 = sadd.s32 1, %s15
    $region7: #{net_forward.3} parent=1 // loop_footer_branch
      %14 = sbr.rel target = $region3
    $region8: #{net_forward.3} parent=1 // loop_exit
      _
    %689 = vsyncpa [#allocation3], 1
    %s690 = scalar_lea.sflag [#allocation3], 1
    %691 = vsyncpa %s690, 1
    %692 = vsyncpa [#allocation5], 1

// kernel: net_forward.5
$region0: #{net_forward.5}
  #allocation0 [shape = 'u32[]', space=smem, size = 0x4, offset = 0x4, fixed_abs, tag = 'smem constant byte address 0x4 - core index']
  #allocation1 [shape = 'u32[72,128]{1,0:T(1,128)}', space=vmem, size = 0x9000, scoped, tag = 'internal scratch']
  %s0 = inlined_call_operand.vmem [shape: f32[2,6,129,64], index: 0, kind: input, shape index: {}]
  %s1 = inlined_call_operand.vmem [shape: f32[2,128,64], index: 1, kind: input, shape index: {}]
  %s2 = inlined_call_operand.vmem [shape: f32[2,6,64], index: 2, kind: output, shape index: {0}]
  %s3 = inlined_call_operand.vmem [shape: f32[2,1,1], index: 3, kind: output, shape index: {1}]
  %4 = xla_tuple %s2, %s3
  %s5 = sld [smem:[#allocation0]]
  $region49: #{net_forward.5} parent=0
    _
  %s7 = ssub.s32 1, %s5
  %s8 = scalar_select 0, %s7, %s5
  loop: start=0, step=1, limit=4
  $region2: #{net_forward.5} parent=0 // loop_pre_header
    _
  $region3: #{net_forward.5} parent=0 // loop_header
    %s10 = sphi 0, %s14
    %p11 = scmp.ge.s32.totalorder %s10, 4
    %s20 = sphi 0, %s22
    %s23 = sphi 0, %s20
    %s24 = sphi 0, %s23
    %s40 = sphi 0, %s24
    %s46 = sphi 0, %s48
    %s49 = sphi 0, %s46
    %s50 = sphi 0, %s49
    %s66 = sphi 0, %s50
    %s72 = sphi 0, %s74
    %s75 = sphi 0, %s72
    %s76 = sphi 0, %s75
    %s92 = sphi 0, %s76
    %s98 = sphi 0, %s100
    %s101 = sphi 0, %s98
    %s102 = sphi 0, %s101
    %s118 = sphi 0, %s102
  $region4: #{net_forward.5} parent=0 // loop_header_branch
    %13 = sbr.rel (%p11) target = $region8
  $region5: #{net_forward.5} parent=0 // loop_body
    %s15 = ssub.s32 %s10, 1
    %s16 = ssub.s32 %s10, 2
    %s17 = sadd.s32 %s10, 1
    %s18 = ssub.s32 %s10, %s17
    %p19 = scmp.eq.s32.totalorder %s18, 0
    %s21 = sadd.s32 %s20, 1
    %s22 = scalar_select %p19, %s20, %s21
    %p25 = pneg %p19
    %p26 = scmp.eq.s32.totalorder %s10, 1
    %p27 = por %p25, %p26
    %p28 = scmp.ne.s32.totalorder %s20, %s23
    %p29 = scmp.eq.s32.totalorder %s10, 0
    %p30 = por %p28, %p29
    %p31 = scmp.ne.s32.totalorder %s20, %s23
    %p32 = scmp.eq.s32.totalorder %s15, 1
    %p33 = por %p31, %p32
    %p34 = scmp.ne.s32.totalorder %s23, %s24
    %p35 = scmp.eq.s32.totalorder %s15, 0
    %p36 = por %p34, %p35
    %p37 = scmp.ne.s32.totalorder %s23, %s24
    %p38 = scmp.eq.s32.totalorder %s16, 1
    %p39 = por %p37, %p38
    %p41 = scmp.ne.s32.totalorder %s24, %s40
    %p42 = scmp.eq.s32.totalorder %s16, 0
    %p43 = por %p41, %p42
    %s44 = ssub.s32 %s10, %s17
    %p45 = scmp.eq.s32.totalorder %s44, 0
    %s47 = sadd.s32 %s46, 1
    %s48 = scalar_select %p45, %s46, %s47
    %p51 = pneg %p45
    %p52 = scmp.eq.s32.totalorder %s10, 1
    %p53 = por %p51, %p52
    %p54 = scmp.ne.s32.totalorder %s46, %s49
    %p55 = scmp.eq.s32.totalorder %s10, 0
    %p56 = por %p54, %p55
    %p57 = scmp.ne.s32.totalorder %s46, %s49
    %p58 = scmp.eq.s32.totalorder %s15, 1
    %p59 = por %p57, %p58
    %p60 = scmp.ne.s32.totalorder %s49, %s50
    %p61 = scmp.eq.s32.totalorder %s15, 0
    %p62 = por %p60, %p61
    %p63 = scmp.ne.s32.totalorder %s49, %s50
    %p64 = scmp.eq.s32.totalorder %s16, 1
    %p65 = por %p63, %p64
    %p67 = scmp.ne.s32.totalorder %s50, %s66
    %p68 = scmp.eq.s32.totalorder %s16, 0
    %p69 = por %p67, %p68
    %s70 = ssub.s32 %s10, %s17
    %p71 = scmp.eq.s32.totalorder %s70, 0
    %s73 = sadd.s32 %s72, 1
    %s74 = scalar_select %p71, %s72, %s73
    %p77 = pneg %p71
    %p78 = scmp.eq.s32.totalorder %s10, 1
    %p79 = por %p77, %p78
    %p80 = scmp.ne.s32.totalorder %s72, %s75
    %p81 = scmp.eq.s32.totalorder %s10, 0
    %p82 = por %p80, %p81
    %p83 = scmp.ne.s32.totalorder %s72, %s75
    %p84 = scmp.eq.s32.totalorder %s15, 1
    %p85 = por %p83, %p84
    %p86 = scmp.ne.s32.totalorder %s75, %s76
    %p87 = scmp.eq.s32.totalorder %s15, 0
    %p88 = por %p86, %p87
    %p89 = scmp.ne.s32.totalorder %s75, %s76
    %p90 = scmp.eq.s32.totalorder %s16, 1
    %p91 = por %p89, %p90
    %p93 = scmp.ne.s32.totalorder %s76, %s92
    %p94 = scmp.eq.s32.totalorder %s16, 0
    %p95 = por %p93, %p94
    %s96 = ssub.s32 %s10, %s17
    %p97 = scmp.eq.s32.totalorder %s96, 0
    %s99 = sadd.s32 %s98, 1
    %s100 = scalar_select %p97, %s98, %s99
    %p103 = pneg %p97
    %p104 = scmp.eq.s32.totalorder %s10, 1
    %p105 = por %p103, %p104
    %p106 = scmp.ne.s32.totalorder %s98, %s101
    %p107 = scmp.eq.s32.totalorder %s10, 0
    %p108 = por %p106, %p107
    %p109 = scmp.ne.s32.totalorder %s98, %s101
    %p110 = scmp.eq.s32.totalorder %s15, 1
    %p111 = por %p109, %p110
    %p112 = scmp.ne.s32.totalorder %s101, %s102
    %p113 = scmp.eq.s32.totalorder %s15, 0
    %p114 = por %p112, %p113
    %p115 = scmp.ne.s32.totalorder %s101, %s102
    %p116 = scmp.eq.s32.totalorder %s16, 1
    %p117 = por %p115, %p116
    %p119 = scmp.ne.s32.totalorder %s102, %s118
    %p120 = scmp.eq.s32.totalorder %s16, 0
    %p121 = por %p119, %p120
    %p122 = scmp.le.s32.totalorder 1, %s10
    %p123 = scmp.lt.s32.totalorder %s10, 3
    %p124 = pnand %p122, %p123
    %p125 = pneg %p124
    // Predicated region
    $region9: #{net_forward.5} parent=5 // pred_check
      _
    $region10: #{net_forward.5} parent=5 // pred_check_branch
      %127 = sbr.rel (%p124) target = $region12
    $region11: #{net_forward.5} parent=5 // pred_region
      %s128 = ssub.s32 %s10, 1
    $region12: #{net_forward.5} parent=5 // pred_fallthru
      _
    %p129 = scmp.lt.s32.totalorder %s10, 2
    // Predicated region
    $region13: #{net_forward.5} parent=5 // pred_check
      %p130 = pneg %p129
    $region14: #{net_forward.5} parent=5 // pred_check_branch
      %132 = sbr.rel (%p130) target = $region16
    $region15: #{net_forward.5} parent=5 // pred_region
      // Predicated region
      $region17: #{net_forward.5} parent=15 // pred_check
        %p133 = pneg %p30
      $region18: #{net_forward.5} parent=15 // pred_check_branch
        %135 = sbr.rel (%p133) target = $region20
      $region19: #{net_forward.5} parent=15 // pred_region
        %p136 = scmp.lt.s32.totalorder %s10, 1
        %s137 = scalar_select %p136, %s10, 1
        %s138 = smul.addr %s137, 102
        %s139 = smul.addr %s138, 8
        %s140 = scalar_lea.vmem %s0, %s139
      $region20: #{net_forward.5} parent=15 // pred_fallthru
        _
      // Predicated region
      $region21: #{net_forward.5} parent=15 // pred_check
        %p141 = pneg %p56
      $region22: #{net_forward.5} parent=15 // pred_check_branch
        %143 = sbr.rel (%p141) target = $region24
      $region23: #{net_forward.5} parent=15 // pred_region
        %p144 = scmp.lt.s32.totalorder %s10, 1
        %s145 = scalar_select %p144, %s10, 1
        %s146 = smul.addr %s145, 16
        %s147 = smul.addr %s146, 8
        %s148 = scalar_lea.vmem %s1, %s147
      $region24: #{net_forward.5} parent=15 // pred_fallthru
        _
    $region16: #{net_forward.5} parent=5 // pred_fallthru
      _
    %p149 = scmp.le.s32.totalorder 1, %s10
    %p150 = scmp.lt.s32.totalorder %s10, 3
    %p151 = pnand %p149, %p150
    %p152 = pneg %p151
    // Predicated region
    $region25: #{net_forward.5} parent=5 // pred_check
      _
    $region26: #{net_forward.5} parent=5 // pred_check_branch
      %154 = sbr.rel (%p151) target = $region28
    $region27: #{net_forward.5} parent=5 // pred_region
      %s155 = ssub.s32 %s10, 1
      %p156 = scmp.lt.s32.totalorder %s15, 1
      %s157 = scalar_select %p156, %s15, 1
      %s158 = smul.addr %s157, 102
      %s159 = smul.addr %s158, 8
      %s160 = scalar_lea.vmem %s0, %s159
      %p161 = pneg %p36
      %p162 = pneg %p33
      %p163 = scmp.lt.s32.totalorder %s15, 1
      %s164 = scalar_select %p163, %s15, 1
      %s165 = smul.addr %s164, 16
      %s166 = smul.addr %s165, 8
      %s167 = scalar_lea.vmem %s1, %s166
      %p168 = pneg %p62
      %p169 = pneg %p59
      %p170 = pneg %p88
      %p171 = pneg %p85
      %p172 = scmp.lt.s32.totalorder %s15, 1
      %s173 = scalar_select %p172, %s15, 1
      %s174 = smul.addr %s173, 8
      %s175 = scalar_lea.vmem %s2, %s174
      %p176 = pneg %p114
      %p177 = pneg %p111
      %p178 = scmp.lt.s32.totalorder %s15, 1
      %s179 = scalar_select %p178, %s15, 1
      %s180 = scalar_lea.vmem %s3, %s179
      %p181 = scmp.lt.s32.totalorder %s15, 1
      %s182 = scalar_select %p181, %s15, 1
      %s183 = smul.addr %s182, 102
      %s184 = smul.addr %s183, 8
      %s185 = scalar_lea.vmem %s0, %s184
      %p186 = scmp.lt.s32.totalorder %s15, 1
      %s187 = scalar_select %p186, %s15, 1
      %s188 = smul.addr %s187, 16
      %s189 = smul.addr %s188, 8
      %s190 = scalar_lea.vmem %s1, %s189
      %p191 = scmp.lt.s32.totalorder %s15, 1
      %s192 = scalar_select %p191, %s15, 1
      %s193 = smul.addr %s192, 8
      %s194 = scalar_lea.vmem %s2, %s193
      %p195 = scmp.lt.s32.totalorder %s15, 1
      %s196 = scalar_select %p195, %s15, 1
      %s197 = scalar_lea.vmem %s3, %s196
      %v198 = vld [vmem:[%s185 + $0x80] sm:$0x1]
      %s199 = scalar_lea.vmem %s185, 136
      %v200 = vld [vmem:[%s199 + $0x80] sm:$0x1]
      %s201 = scalar_lea.vmem %s185, 272
      %v202 = vld [vmem:[%s201 + $0x80] sm:$0x1]
      %s203 = scalar_lea.vmem %s185, 408
      %v204 = vld [vmem:[%s203 + $0x80] sm:$0x1]
      %s205 = scalar_lea.vmem %s185, 544
      %v206 = vld [vmem:[%s205 + $0x80] sm:$0x1]
      %s207 = scalar_lea.vmem %s185, 680
      %v208 = vld [vmem:[%s207 + $0x80] sm:$0x1]
      %v210 = vrot.slane %v200, 7
      %v213 = vrot.slane %v202, 6
      %v216 = vrot.slane %v204, 5
      %v219 = vrot.slane %v206, 4
      %v222 = vrot.slane %v208, 3
      %vm224 = vcmask 1040384
      %v225 = vsel %vm224, %v198, %v210
      %vm226 = vcmask 1041408
      %v227 = vsel %vm226, %v225, %v213
      %vm228 = vcmask 1042432
      %v229 = vsel %vm228, %v227, %v216
      %vm230 = vcmask 1043456
      %v231 = vsel %vm230, %v229, %v219
      %vm232 = vcmask 1044480
      %v233 = vsel %vm232, %v231, %v222
      %vm234 = vcmask 521216
      %v235 = vsel %vm234, %v233, -inf
      %v236 = vrot.slane %v235, 4
      %v237 = vmax.f32 %v235, %v236
      %v238 = vrot.slane %v237, 2
      %v239 = vmax.f32 %v237, %v238
      %v240 = vrot.slane %v239, 1
      %v241 = vmax.f32 %v239, %v240
      %v242 = vsub.f32 %v233, %v241
      %v243 = vmul.f32 %v242, 1.442695
      %v244 = vpow.pop %v243
      %v245 = vsel %vm234, %v244, 0.0
      %v246 = vrot.slane %v245, 4
      %v247 = vadd.f32 %v245, %v246
      %v248 = vrot.slane %v247, 2
      %v249 = vadd.f32 %v247, %v248
      %v250 = vrot.slane %v249, 1
      %v251 = vadd.f32 %v249, %v250
      %v252 = vrcp.pop %v251
      %v253 = vmul.f32 %v244, %v252
      %254 = vst.msk [vmem:[%s194] sm:$0x3f] %vm234, %v253
      %v255 = vld [vmem:[%s185] sm:$0xff]
      %v256 = vld [vmem:[%s185 + $0x8] sm:$0xff]
      %v257 = vld [vmem:[%s185 + $0x10] sm:$0xff]
      %v258 = vld [vmem:[%s185 + $0x18] sm:$0xff]
      %v259 = vld [vmem:[%s185 + $0x20] sm:$0xff]
      %v260 = vld [vmem:[%s185 + $0x28] sm:$0xff]
      %v261 = vld [vmem:[%s185 + $0x30] sm:$0xff]
      %v262 = vld [vmem:[%s185 + $0x38] sm:$0xff]
      %v263 = vld [vmem:[%s185 + $0x40] sm:$0xff]
      %v264 = vld [vmem:[%s185 + $0x48] sm:$0xff]
      %v265 = vld [vmem:[%s185 + $0x50] sm:$0xff]
      %v266 = vld [vmem:[%s185 + $0x58] sm:$0xff]
      %v267 = vld [vmem:[%s185 + $0x60] sm:$0xff]
      %v268 = vld [vmem:[%s185 + $0x68] sm:$0xff]
      %v269 = vld [vmem:[%s185 + $0x70] sm:$0xff]
      %v270 = vld [vmem:[%s185 + $0x78] sm:$0xff]
      %v271 = vperm.slane %v253, 0
      %v272 = vmul.f32 %v271, %v255
      %v273 = vmul.f32 %v271, %v256
      %v274 = vmul.f32 %v271, %v257
      %v275 = vmul.f32 %v271, %v258
      %v276 = vmul.f32 %v271, %v259
      %v277 = vmul.f32 %v271, %v260
      %v278 = vmul.f32 %v271, %v261
      %v279 = vmul.f32 %v271, %v262
      %v280 = vmul.f32 %v271, %v263
      %v281 = vmul.f32 %v271, %v264
      %v282 = vmul.f32 %v271, %v265
      %v283 = vmul.f32 %v271, %v266
      %v284 = vmul.f32 %v271, %v267
      %v285 = vmul.f32 %v271, %v268
      %v286 = vmul.f32 %v271, %v269
      %v287 = vmul.f32 %v271, %v270
      %v288 = vld [vmem:[%s199] sm:$0xff]
      %v289 = vld [vmem:[%s199 + $0x8] sm:$0xff]
      %v290 = vld [vmem:[%s199 + $0x10] sm:$0xff]
      %v291 = vld [vmem:[%s199 + $0x18] sm:$0xff]
      %v292 = vld [vmem:[%s199 + $0x20] sm:$0xff]
      %v293 = vld [vmem:[%s199 + $0x28] sm:$0xff]
      %v294 = vld [vmem:[%s199 + $0x30] sm:$0xff]
      %v295 = vld [vmem:[%s199 + $0x38] sm:$0xff]
      %v296 = vld [vmem:[%s199 + $0x40] sm:$0xff]
      %v297 = vld [vmem:[%s199 + $0x48] sm:$0xff]
      %v298 = vld [vmem:[%s199 + $0x50] sm:$0xff]
      %v299 = vld [vmem:[%s199 + $0x58] sm:$0xff]
      %v300 = vld [vmem:[%s199 + $0x60] sm:$0xff]
      %v301 = vld [vmem:[%s199 + $0x68] sm:$0xff]
      %v302 = vld [vmem:[%s199 + $0x70] sm:$0xff]
      %v303 = vld [vmem:[%s199 + $0x78] sm:$0xff]
      %v304 = vperm.slane %v253, 1
      %v305 = vmul.f32 %v304, %v288
      %v306 = vmul.f32 %v304, %v289
      %v307 = vmul.f32 %v304, %v290
      %v308 = vmul.f32 %v304, %v291
      %v309 = vmul.f32 %v304, %v292
      %v310 = vmul.f32 %v304, %v293
      %v311 = vmul.f32 %v304, %v294
      %v312 = vmul.f32 %v304, %v295
      %v313 = vmul.f32 %v304, %v296
      %v314 = vmul.f32 %v304, %v297
      %v315 = vmul.f32 %v304, %v298
      %v316 = vmul.f32 %v304, %v299
      %v317 = vmul.f32 %v304, %v300
      %v318 = vmul.f32 %v304, %v301
      %v319 = vmul.f32 %v304, %v302
      %v320 = vmul.f32 %v304, %v303
      %v321 = vadd.f32 %v272, %v305
      %v322 = vadd.f32 %v273, %v306
      %v323 = vadd.f32 %v274, %v307
      %v324 = vadd.f32 %v275, %v308
      %v325 = vadd.f32 %v276, %v309
      %v326 = vadd.f32 %v277, %v310
      %v327 = vadd.f32 %v278, %v311
      %v328 = vadd.f32 %v279, %v312
      %v329 = vadd.f32 %v280, %v313
      %v330 = vadd.f32 %v281, %v314
      %v331 = vadd.f32 %v282, %v315
      %v332 = vadd.f32 %v283, %v316
      %v333 = vadd.f32 %v284, %v317
      %v334 = vadd.f32 %v285, %v318
      %v335 = vadd.f32 %v286, %v319
      %v336 = vadd.f32 %v287, %v320
      %v337 = vld [vmem:[%s201] sm:$0xff]
      %v338 = vld [vmem:[%s201 + $0x8] sm:$0xff]
      %v339 = vld [vmem:[%s201 + $0x10] sm:$0xff]
      %v340 = vld [vmem:[%s201 + $0x18] sm:$0xff]
      %v341 = vld [vmem:[%s201 + $0x20] sm:$0xff]
      %v342 = vld [vmem:[%s201 + $0x28] sm:$0xff]
      %v343 = vld [vmem:[%s201 + $0x30] sm:$0xff]
      %v344 = vld [vmem:[%s201 + $0x38] sm:$0xff]
      %v345 = vld [vmem:[%s201 + $0x40] sm:$0xff]
      %v346 = vld [vmem:[%s201 + $0x48] sm:$0xff]
      %v347 = vld [vmem:[%s201 + $0x50] sm:$0xff]
      %v348 = vld [vmem:[%s201 + $0x58] sm:$0xff]
      %v349 = vld [vmem:[%s201 + $0x60] sm:$0xff]
      %v350 = vld [vmem:[%s201 + $0x68] sm:$0xff]
      %v351 = vld [vmem:[%s201 + $0x70] sm:$0xff]
      %v352 = vld [vmem:[%s201 + $0x78] sm:$0xff]
      %v353 = vperm.slane %v253, 2
      %v354 = vmul.f32 %v353, %v337
      %v355 = vmul.f32 %v353, %v338
      %v356 = vmul.f32 %v353, %v339
      %v357 = vmul.f32 %v353, %v340
      %v358 = vmul.f32 %v353, %v341
      %v359 = vmul.f32 %v353, %v342
      %v360 = vmul.f32 %v353, %v343
      %v361 = vmul.f32 %v353, %v344
      %v362 = vmul.f32 %v353, %v345
      %v363 = vmul.f32 %v353, %v346
      %v364 = vmul.f32 %v353, %v347
      %v365 = vmul.f32 %v353, %v348
      %v366 = vmul.f32 %v353, %v349
      %v367 = vmul.f32 %v353, %v350
      %v368 = vmul.f32 %v353, %v351
      %v369 = vmul.f32 %v353, %v352
      %v370 = vadd.f32 %v321, %v354
      %v371 = vadd.f32 %v322, %v355
      %v372 = vadd.f32 %v323, %v356
      %v373 = vadd.f32 %v324, %v357
      %v374 = vadd.f32 %v325, %v358
      %v375 = vadd.f32 %v326, %v359
      %v376 = vadd.f32 %v327, %v360
      %v377 = vadd.f32 %v328, %v361
      %v378 = vadd.f32 %v329, %v362
      %v379 = vadd.f32 %v330, %v363
      %v380 = vadd.f32 %v331, %v364
      %v381 = vadd.f32 %v332, %v365
      %v382 = vadd.f32 %v333, %v366
      %v383 = vadd.f32 %v334, %v367
      %v384 = vadd.f32 %v335, %v368
      %v385 = vadd.f32 %v336, %v369
      %v386 = vld [vmem:[%s203] sm:$0xff]
      %v387 = vld [vmem:[%s203 + $0x8] sm:$0xff]
      %v388 = vld [vmem:[%s203 + $0x10] sm:$0xff]
      %v389 = vld [vmem:[%s203 + $0x18] sm:$0xff]
      %v390 = vld [vmem:[%s203 + $0x20] sm:$0xff]
      %v391 = vld [vmem:[%s203 + $0x28] sm:$0xff]
      %v392 = vld [vmem:[%s203 + $0x30] sm:$0xff]
      %v393 = vld [vmem:[%s203 + $0x38] sm:$0xff]
      %v394 = vld [vmem:[%s203 + $0x40] sm:$0xff]
      %v395 = vld [vmem:[%s203 + $0x48] sm:$0xff]
      %v396 = vld [vmem:[%s203 + $0x50] sm:$0xff]
      %v397 = vld [vmem:[%s203 + $0x58] sm:$0xff]
      %v398 = vld [vmem:[%s203 + $0x60] sm:$0xff]
      %v399 = vld [vmem:[%s203 + $0x68] sm:$0xff]
      %v400 = vld [vmem:[%s203 + $0x70] sm:$0xff]
      %v401 = vld [vmem:[%s203 + $0x78] sm:$0xff]
      %v402 = vperm.slane %v253, 3
      %v403 = vmul.f32 %v402, %v386
      %v404 = vmul.f32 %v402, %v387
      %v405 = vmul.f32 %v402, %v388
      %v406 = vmul.f32 %v402, %v389
      %v407 = vmul.f32 %v402, %v390
      %v408 = vmul.f32 %v402, %v391
      %v409 = vmul.f32 %v402, %v392
      %v410 = vmul.f32 %v402, %v393
      %v411 = vmul.f32 %v402, %v394
      %v412 = vmul.f32 %v402, %v395
      %v413 = vmul.f32 %v402, %v396
      %v414 = vmul.f32 %v402, %v397
      %v415 = vmul.f32 %v402, %v398
      %v416 = vmul.f32 %v402, %v399
      %v417 = vmul.f32 %v402, %v400
      %v418 = vmul.f32 %v402, %v401
      %v419 = vadd.f32 %v370, %v403
      %v420 = vadd.f32 %v371, %v404
      %v421 = vadd.f32 %v372, %v405
      %v422 = vadd.f32 %v373, %v406
      %v423 = vadd.f32 %v374, %v407
      %v424 = vadd.f32 %v375, %v408
      %v425 = vadd.f32 %v376, %v409
      %v426 = vadd.f32 %v377, %v410
      %v427 = vadd.f32 %v378, %v411
      %v428 = vadd.f32 %v379, %v412
      %v429 = vadd.f32 %v380, %v413
      %v430 = vadd.f32 %v381, %v414
      %v431 = vadd.f32 %v382, %v415
      %v432 = vadd.f32 %v383, %v416
      %v433 = vadd.f32 %v384, %v417
      %v434 = vadd.f32 %v385, %v418
      %v435 = vld [vmem:[%s205] sm:$0xff]
      %v436 = vld [vmem:[%s205 + $0x8] sm:$0xff]
      %v437 = vld [vmem:[%s205 + $0x10] sm:$0xff]
      %v438 = vld [vmem:[%s205 + $0x18] sm:$0xff]
      %v439 = vld [vmem:[%s205 + $0x20] sm:$0xff]
      %v440 = vld [vmem:[%s205 + $0x28] sm:$0xff]
      %v441 = vld [vmem:[%s205 + $0x30] sm:$0xff]
      %v442 = vld [vmem:[%s205 + $0x38] sm:$0xff]
      %v443 = vld [vmem:[%s205 + $0x40] sm:$0xff]
      %v444 = vld [vmem:[%s205 + $0x48] sm:$0xff]
      %v445 = vld [vmem:[%s205 + $0x50] sm:$0xff]
      %v446 = vld [vmem:[%s205 + $0x58] sm:$0xff]
      %v447 = vld [vmem:[%s205 + $0x60] sm:$0xff]
      %v448 = vld [vmem:[%s205 + $0x68] sm:$0xff]
      %v449 = vld [vmem:[%s205 + $0x70] sm:$0xff]
      %v450 = vld [vmem:[%s205 + $0x78] sm:$0xff]
      %v451 = vperm.slane %v253, 4
      %v452 = vmul.f32 %v451, %v435
      %v453 = vmul.f32 %v451, %v436
      %v454 = vmul.f32 %v451, %v437
      %v455 = vmul.f32 %v451, %v438
      %v456 = vmul.f32 %v451, %v439
      %v457 = vmul.f32 %v451, %v440
      %v458 = vmul.f32 %v451, %v441
      %v459 = vmul.f32 %v451, %v442
      %v460 = vmul.f32 %v451, %v443
      %v461 = vmul.f32 %v451, %v444
      %v462 = vmul.f32 %v451, %v445
      %v463 = vmul.f32 %v451, %v446
      %v464 = vmul.f32 %v451, %v447
      %v465 = vmul.f32 %v451, %v448
      %v466 = vmul.f32 %v451, %v449
      %v467 = vmul.f32 %v451, %v450
      %v468 = vadd.f32 %v419, %v452
      %v469 = vadd.f32 %v420, %v453
      %v470 = vadd.f32 %v421, %v454
      %v471 = vadd.f32 %v422, %v455
      %v472 = vadd.f32 %v423, %v456
      %v473 = vadd.f32 %v424, %v457
      %v474 = vadd.f32 %v425, %v458
      %v475 = vadd.f32 %v426, %v459
      %v476 = vadd.f32 %v427, %v460
      %v477 = vadd.f32 %v428, %v461
      %v478 = vadd.f32 %v429, %v462
      %v479 = vadd.f32 %v430, %v463
      %v480 = vadd.f32 %v431, %v464
      %v481 = vadd.f32 %v432, %v465
      %v482 = vadd.f32 %v433, %v466
      %v483 = vadd.f32 %v434, %v467
      %v484 = vld [vmem:[%s207] sm:$0xff]
      %v485 = vld [vmem:[%s207 + $0x8] sm:$0xff]
      %v486 = vld [vmem:[%s207 + $0x10] sm:$0xff]
      %v487 = vld [vmem:[%s207 + $0x18] sm:$0xff]
      %v488 = vld [vmem:[%s207 + $0x20] sm:$0xff]
      %v489 = vld [vmem:[%s207 + $0x28] sm:$0xff]
      %v490 = vld [vmem:[%s207 + $0x30] sm:$0xff]
      %v491 = vld [vmem:[%s207 + $0x38] sm:$0xff]
      %v492 = vld [vmem:[%s207 + $0x40] sm:$0xff]
      %v493 = vld [vmem:[%s207 + $0x48] sm:$0xff]
      %v494 = vld [vmem:[%s207 + $0x50] sm:$0xff]
      %v495 = vld [vmem:[%s207 + $0x58] sm:$0xff]
      %v496 = vld [vmem:[%s207 + $0x60] sm:$0xff]
      %v497 = vld [vmem:[%s207 + $0x68] sm:$0xff]
      %v498 = vld [vmem:[%s207 + $0x70] sm:$0xff]
      %v499 = vld [vmem:[%s207 + $0x78] sm:$0xff]
      %v500 = vperm.slane %v253, 5
      %v501 = vmul.f32 %v500, %v484
      %v502 = vmul.f32 %v500, %v485
      %v503 = vmul.f32 %v500, %v486
      %v504 = vmul.f32 %v500, %v487
      %v505 = vmul.f32 %v500, %v488
      %v506 = vmul.f32 %v500, %v489
      %v507 = vmul.f32 %v500, %v490
      %v508 = vmul.f32 %v500, %v491
      %v509 = vmul.f32 %v500, %v492
      %v510 = vmul.f32 %v500, %v493
      %v511 = vmul.f32 %v500, %v494
      %v512 = vmul.f32 %v500, %v495
      %v513 = vmul.f32 %v500, %v496
      %v514 = vmul.f32 %v500, %v497
      %v515 = vmul.f32 %v500, %v498
      %v516 = vmul.f32 %v500, %v499
      %v517 = vadd.f32 %v468, %v501
      %v518 = vadd.f32 %v469, %v502
      %v519 = vadd.f32 %v470, %v503
      %v520 = vadd.f32 %v471, %v504
      %v521 = vadd.f32 %v472, %v505
      %v522 = vadd.f32 %v473, %v506
      %v523 = vadd.f32 %v474, %v507
      %v524 = vadd.f32 %v475, %v508
      %v525 = vadd.f32 %v476, %v509
      %v526 = vadd.f32 %v477, %v510
      %v527 = vadd.f32 %v478, %v511
      %v528 = vadd.f32 %v479, %v512
      %v529 = vadd.f32 %v480, %v513
      %v530 = vadd.f32 %v481, %v514
      %v531 = vadd.f32 %v482, %v515
      %v532 = vadd.f32 %v483, %v516
      %v533 = vld [vmem:[%s190] sm:$0xff]
      %v534 = vld [vmem:[%s190 + $0x8] sm:$0xff]
      %v535 = vld [vmem:[%s190 + $0x10] sm:$0xff]
      %v536 = vld [vmem:[%s190 + $0x18] sm:$0xff]
      %v537 = vld [vmem:[%s190 + $0x20] sm:$0xff]
      %v538 = vld [vmem:[%s190 + $0x28] sm:$0xff]
      %v539 = vld [vmem:[%s190 + $0x30] sm:$0xff]
      %v540 = vld [vmem:[%s190 + $0x38] sm:$0xff]
      %v541 = vld [vmem:[%s190 + $0x40] sm:$0xff]
      %v542 = vld [vmem:[%s190 + $0x48] sm:$0xff]
      %v543 = vld [vmem:[%s190 + $0x50] sm:$0xff]
      %v544 = vld [vmem:[%s190 + $0x58] sm:$0xff]
      %v545 = vld [vmem:[%s190 + $0x60] sm:$0xff]
      %v546 = vld [vmem:[%s190 + $0x68] sm:$0xff]
      %v547 = vld [vmem:[%s190 + $0x70] sm:$0xff]
      %v548 = vld [vmem:[%s190 + $0x78] sm:$0xff]
      %v549 = vsub.f32 %v517, %v533
      %v550 = vsub.f32 %v518, %v534
      %v551 = vsub.f32 %v519, %v535
      %v552 = vsub.f32 %v520, %v536
      %v553 = vsub.f32 %v521, %v537
      %v554 = vsub.f32 %v522, %v538
      %v555 = vsub.f32 %v523, %v539
      %v556 = vsub.f32 %v524, %v540
      %v557 = vsub.f32 %v525, %v541
      %v558 = vsub.f32 %v526, %v542
      %v559 = vsub.f32 %v527, %v543
      %v560 = vsub.f32 %v528, %v544
      %v561 = vsub.f32 %v529, %v545
      %v562 = vsub.f32 %v530, %v546
      %v563 = vsub.f32 %v531, %v547
      %v564 = vsub.f32 %v532, %v548
      %v565 = vmul.f32 %v549, %v549
      %v566 = vmul.f32 %v550, %v550
      %v567 = vmul.f32 %v551, %v551
      %v568 = vmul.f32 %v552, %v552
      %v569 = vmul.f32 %v553, %v553
      %v570 = vmul.f32 %v554, %v554
      %v571 = vmul.f32 %v555, %v555
      %v572 = vmul.f32 %v556, %v556
      %v573 = vmul.f32 %v557, %v557
      %v574 = vmul.f32 %v558, %v558
      %v575 = vmul.f32 %v559, %v559
      %v576 = vmul.f32 %v560, %v560
      %v577 = vmul.f32 %v561, %v561
      %v578 = vmul.f32 %v562, %v562
      %v579 = vmul.f32 %v563, %v563
      %v580 = vmul.f32 %v564, %v564
      %vm581 = vcmask 523264
      %v582 = vsel %vm581, %v565, 0.0
      %v583 = vsel %vm581, %v566, 0.0
      %v584 = vadd.f32 %v582, %v583
      %v585 = vsel %vm581, %v567, 0.0
      %v586 = vadd.f32 %v584, %v585
      %v587 = vsel %vm581, %v568, 0.0
      %v588 = vadd.f32 %v586, %v587
      %v589 = vsel %vm581, %v569, 0.0
      %v590 = vadd.f32 %v588, %v589
      %v591 = vsel %vm581, %v570, 0.0
      %v592 = vadd.f32 %v590, %v591
      %v593 = vsel %vm581, %v571, 0.0
      %v594 = vadd.f32 %v592, %v593
      %v595 = vsel %vm581, %v572, 0.0
      %v596 = vadd.f32 %v594, %v595
      %v597 = vsel %vm581, %v573, 0.0
      %v598 = vadd.f32 %v596, %v597
      %v599 = vsel %vm581, %v574, 0.0
      %v600 = vadd.f32 %v598, %v599
      %v601 = vsel %vm581, %v575, 0.0
      %v602 = vadd.f32 %v600, %v601
      %v603 = vsel %vm581, %v576, 0.0
      %v604 = vadd.f32 %v602, %v603
      %v605 = vsel %vm581, %v577, 0.0
      %v606 = vadd.f32 %v604, %v605
      %v607 = vsel %vm581, %v578, 0.0
      %v608 = vadd.f32 %v606, %v607
      %v609 = vsel %vm581, %v579, 0.0
      %v610 = vadd.f32 %v608, %v609
      %v611 = vsel %vm581, %v580, 0.0
      %v612 = vadd.f32 %v610, %v611
      %613 = vadd.xlane.f32.xlu0 %v612
      %v614 = vpop.xlane.xlu0 %613
      %v615 = vrot.slane %v614, 4
      %v616 = vadd.f32 %v614, %v615
      %v617 = vrot.slane %v616, 2
      %v618 = vadd.f32 %v616, %v617
      %v619 = vrot.slane %v618, 1
      %v620 = vadd.f32 %v618, %v619
      %s621 = vtos %v620
      %v622 = vstv %s621
      %vm623 = vcmask 0
      %624 = vst.msk [vmem:[%s197] sm:$0x1] %vm623, %v622
      %p625 = scmp.lt.s32.totalorder %s15, 1
      %s626 = scalar_select %p625, %s15, 1
      %s627 = smul.addr %s626, 8
      %s628 = scalar_lea.vmem %s2, %s627
      %p629 = scmp.lt.s32.totalorder %s15, 1
      %s630 = scalar_select %p629, %s15, 1
      %s631 = scalar_lea.vmem %s3, %s630
      // Predicated region
      $region29: #{net_forward.5} parent=27 // pred_check
        %p632 = pneg %p85
      $region30: #{net_forward.5} parent=27 // pred_check_branch
        %634 = sbr.rel (%p632) target = $region32
      $region31: #{net_forward.5} parent=27 // pred_region
        _
      $region32: #{net_forward.5} parent=27 // pred_fallthru
        _
      // Predicated region
      $region33: #{net_forward.5} parent=27 // pred_check
        %p635 = pneg %p111
      $region34: #{net_forward.5} parent=27 // pred_check_branch
        %637 = sbr.rel (%p635) target = $region36
      $region35: #{net_forward.5} parent=27 // pred_region
        _
      $region36: #{net_forward.5} parent=27 // pred_fallthru
        _
    $region28: #{net_forward.5} parent=5 // pred_fallthru
      _
    %p638 = scmp.le.s32.totalorder 2, %s10
    // Predicated region
    $region37: #{net_forward.5} parent=5 // pred_check
      %p639 = pneg %p638
    $region38: #{net_forward.5} parent=5 // pred_check_branch
      %641 = sbr.rel (%p639) target = $region40
    $region39: #{net_forward.5} parent=5 // pred_region
      %s642 = ssub.s32 %s10, 2
      // Predicated region
      $region41: #{net_forward.5} parent=39 // pred_check
        %p643 = pneg %p91
      $region42: #{net_forward.5} parent=39 // pred_check_branch
        %645 = sbr.rel (%p643) target = $region44
      $region43: #{net_forward.5} parent=39 // pred_region
        %p646 = scmp.lt.s32.totalorder %s16, 1
        %s647 = scalar_select %p646, %s16, 1
        %s648 = smul.addr %s647, 8
        %s649 = scalar_lea.vmem %s2, %s648
      $region44: #{net_forward.5} parent=39 // pred_fallthru
        _
      // Predicated region
      $region45: #{net_forward.5} parent=39 // pred_check
        %p650 = pneg %p117
      $region46: #{net_forward.5} parent=39 // pred_check_branch
        %652 = sbr.rel (%p650) target = $region48
      $region47: #{net_forward.5} parent=39 // pred_region
        %p653 = scmp.lt.s32.totalorder %s16, 1
        %s654 = scalar_select %p653, %s16, 1
        %s655 = scalar_lea.vmem %s3, %s654
      $region48: #{net_forward.5} parent=39 // pred_fallthru
        _
    $region40: #{net_forward.5} parent=5 // pred_fallthru
      _
  $region6: #{net_forward.5} parent=0 // loop_footer
    %s14 = sadd.s32 1, %s10
  $region7: #{net_forward.5} parent=0 // loop_footer_branch
    %9 = sbr.rel target = $region3
  $region8: #{net_forward.5} parent=0 // loop_exit
    _

// kernel: net_forward.4
$region0: #{net_forward.4}
  #allocation0 [shape = 'u32[]', space=smem, size = 0x4, offset = 0x4, fixed_abs, tag = 'smem constant byte address 0x4 - core index']
  #allocation1 [shape = 'u32[72,128]{1,0:T(1,128)}', space=vmem, size = 0x9000, scoped, tag = 'internal scratch']
  %s0 = inlined_call_operand.vmem [shape: f32[4,3,128], index: 0, kind: input, shape index: {}]
  %s1 = inlined_call_operand.vmem [shape: f32[64,128], index: 1, kind: input, shape index: {}]
  %s2 = inlined_call_operand.vmem [shape: bf16[128,128], index: 2, kind: input, shape index: {}]
  %s3 = inlined_call_operand.hbm [shape: f32[1,128], index: 3, kind: input, shape index: {}]
  %s4 = inlined_call_operand.vmem [shape: bf16[128,128], index: 4, kind: input, shape index: {}]
  %s5 = inlined_call_operand.hbm [shape: f32[1,128], index: 5, kind: input, shape index: {}]
  %s6 = inlined_call_operand.vmem [shape: bf16[128,128], index: 6, kind: input, shape index: {}]
  %s7 = inlined_call_operand.hbm [shape: f32[1,128], index: 7, kind: input, shape index: {}]
  %s8 = inlined_call_operand.vmem [shape: bf16[128,129], index: 8, kind: input, shape index: {}]
  %s9 = inlined_call_operand.hbm [shape: f32[1,129], index: 9, kind: input, shape index: {}]
  %s10 = inlined_call_operand.vmem [shape: f32[768,129], index: 10, kind: output, shape index: {}]
  %s11 = sld [smem:[#allocation0]]
  $region89: #{net_forward.4} parent=0
    _
  %s13 = ssub.s32 1, %s11
  %s14 = scalar_select 0, %s13, %s11
  $region1: #{net_forward.4} parent=0
    #allocation2 [shape = 'u8[512]{0}', space=vmem, size = 0x400, scoped, tag = 'input window, operand 3, single buffered']
    #allocation3 [shape = 's32[2]{0}', space=sflag, size = 0x8, scoped, tag = 'scoped memory for net_forward.4']
    #allocation4 [shape = 'u8[512]{0}', space=vmem, size = 0x400, scoped, tag = 'input window, operand 5, single buffered']
    #allocation5 [shape = 's32[1]{0}', space=sflag, size = 0x4, scoped, tag = 'scoped memory for net_forward.4']
    #allocation6 [shape = 'u8[512]{0}', space=vmem, size = 0x400, scoped, tag = 'input window, operand 7, single buffered']
    #allocation7 [shape = 'u8[1024]{0}', space=vmem, size = 0x400, scoped, tag = 'input window, operand 9, single buffered']
    #allocation8 [shape = 's32[1]{0}', space=sflag, size = 0x4, scoped, tag = 'scoped memory for net_forward.4']
    %15 = vsyncpa [#allocation3], 0
    %16 = vsyncpa [#allocation5], 0
    %17 = vsyncpa [#allocation8], 0
    loop: start=0, step=1, limit=6
    $region2: #{net_forward.4} parent=1 // loop_pre_header
      _
    $region3: #{net_forward.4} parent=1 // loop_header
      %s19 = sphi 0, %s23
      %p20 = scmp.ge.s32.totalorder %s19, 6
      %s29 = sphi 0, %s31
      %s32 = sphi 0, %s29
      %s33 = sphi 0, %s32
      %s49 = sphi 0, %s33
      %s53 = sphi 0, %s53
      %s55 = sphi 0, %s53
      %s56 = sphi 0, %s55
      %s70 = sphi 0, %s56
      %s74 = sphi 0, %s74
      %s76 = sphi 0, %s74
      %s77 = sphi 0, %s76
      %s91 = sphi 0, %s77
      %s95 = sphi 0, %s95
      %s97 = sphi 0, %s95
      %s98 = sphi 0, %s97
      %s112 = sphi 0, %s98
      %s116 = sphi 0, %s116
      %s118 = sphi 0, %s116
      %s119 = sphi 0, %s118
      %s133 = sphi 0, %s119
      %s137 = sphi 0, %s137
      %s139 = sphi 0, %s137
      %s140 = sphi 0, %s139
      %s154 = sphi 0, %s140
      %s158 = sphi 0, %s158
      %s160 = sphi 0, %s158
      %s161 = sphi 0, %s160
      %s175 = sphi 0, %s161
      %s179 = sphi 0, %s179
      %s181 = sphi 0, %s179
      %s182 = sphi 0, %s181
      %s196 = sphi 0, %s182
      %s200 = sphi 0, %s200
      %s202 = sphi 0, %s200
      %s203 = sphi 0, %s202
      %s217 = sphi 0, %s203
      %s221 = sphi 0, %s221
      %s223 = sphi 0, %s221
      %s224 = sphi 0, %s223
      %s238 = sphi 0, %s224
      %s244 = sphi 0, %s246
      %s247 = sphi 0, %s244
      %s248 = sphi 0, %s247
      %s264 = sphi 0, %s248
    $region4: #{net_forward.4} parent=1 // loop_header_branch
      %22 = sbr.rel (%p20) target = $region8
    $region5: #{net_forward.4} parent=1 // loop_body
      %s24 = ssub.s32 %s19, 1
      %s25 = ssub.s32 %s19, 2
      %s26 = sadd.s32 %s19, 1
      %s27 = ssub.s32 %s19, %s26
      %p28 = scmp.eq.s32.totalorder %s27, 0
      %s30 = sadd.s32 %s29, 1
      %s31 = scalar_select %p28, %s29, %s30
      %p34 = pneg %p28
      %p35 = scmp.eq.s32.totalorder %s19, 3
      %p36 = por %p34, %p35
      %p37 = scmp.ne.s32.totalorder %s29, %s32
      %p38 = scmp.eq.s32.totalorder %s19, 0
      %p39 = por %p37, %p38
      %p40 = scmp.ne.s32.totalorder %s29, %s32
      %p41 = scmp.eq.s32.totalorder %s24, 3
      %p42 = por %p40, %p41
      %p43 = scmp.ne.s32.totalorder %s32, %s33
      %p44 = scmp.eq.s32.totalorder %s24, 0
      %p45 = por %p43, %p44
      %p46 = scmp.ne.s32.totalorder %s32, %s33
      %p47 = scmp.eq.s32.totalorder %s25, 3
      %p48 = por %p46, %p47
      %p50 = scmp.ne.s32.totalorder %s33, %s49
      %p51 = scmp.eq.s32.totalorder %s25, 0
      %p52 = por %p50, %p51
      %s54 = sadd.s32 %s53, 1
      %p57 = scmp.eq.s32.totalorder %s19, 3
      %p58 = scmp.ne.s32.totalorder %s53, %s55
      %p59 = scmp.eq.s32.totalorder %s19, 0
      %p60 = por %p58, %p59
      %p61 = scmp.ne.s32.totalorder %s53, %s55
      %p62 = scmp.eq.s32.totalorder %s24, 3
      %p63 = por %p61, %p62
      %p64 = scmp.ne.s32.totalorder %s55, %s56
      %p65 = scmp.eq.s32.totalorder %s24, 0
      %p66 = por %p64, %p65
      %p67 = scmp.ne.s32.totalorder %s55, %s56
      %p68 = scmp.eq.s32.totalorder %s25, 3
      %p69 = por %p67, %p68
      %p71 = scmp.ne.s32.totalorder %s56, %s70
      %p72 = scmp.eq.s32.totalorder %s25, 0
      %p73 = por %p71, %p72
      %s75 = sadd.s32 %s74, 1
      %p78 = scmp.eq.s32.totalorder %s19, 3
      %p79 = scmp.ne.s32.totalorder %s74, %s76
      %p80 = scmp.eq.s32.totalorder %s19, 0
      %p81 = por %p79, %p80
      %p82 = scmp.ne.s32.totalorder %s74, %s76
      %p83 = scmp.eq.s32.totalorder %s24, 3
      %p84 = por %p82, %p83
      %p85 = scmp.ne.s32.totalorder %s76, %s77
      %p86 = scmp.eq.s32.totalorder %s24, 0
      %p87 = por %p85, %p86
      %p88 = scmp.ne.s32.totalorder %s76, %s77
      %p89 = scmp.eq.s32.totalorder %s25, 3
      %p90 = por %p88, %p89
      %p92 = scmp.ne.s32.totalorder %s77, %s91
      %p93 = scmp.eq.s32.totalorder %s25, 0
      %p94 = por %p92, %p93
      %s96 = sadd.s32 %s95, 1
      %p99 = scmp.eq.s32.totalorder %s19, 3
      %p100 = scmp.ne.s32.totalorder %s95, %s97
      %p101 = scmp.eq.s32.totalorder %s19, 0
      %p102 = por %p100, %p101
      %p103 = scmp.ne.s32.totalorder %s95, %s97
      %p104 = scmp.eq.s32.totalorder %s24, 3
      %p105 = por %p103, %p104
      %p106 = scmp.ne.s32.totalorder %s97, %s98
      %p107 = scmp.eq.s32.totalorder %s24, 0
      %p108 = por %p106, %p107
      %p109 = scmp.ne.s32.totalorder %s97, %s98
      %p110 = scmp.eq.s32.totalorder %s25, 3
      %p111 = por %p109, %p110
      %p113 = scmp.ne.s32.totalorder %s98, %s112
      %p114 = scmp.eq.s32.totalorder %s25, 0
      %p115 = por %p113, %p114
      %s117 = sadd.s32 %s116, 1
      %p120 = scmp.eq.s32.totalorder %s19, 3
      %p121 = scmp.ne.s32.totalorder %s116, %s118
      %p122 = scmp.eq.s32.totalorder %s19, 0
      %p123 = por %p121, %p122
      %p124 = scmp.ne.s32.totalorder %s116, %s118
      %p125 = scmp.eq.s32.totalorder %s24, 3
      %p126 = por %p124, %p125
      %p127 = scmp.ne.s32.totalorder %s118, %s119
      %p128 = scmp.eq.s32.totalorder %s24, 0
      %p129 = por %p127, %p128
      %p130 = scmp.ne.s32.totalorder %s118, %s119
      %p131 = scmp.eq.s32.totalorder %s25, 3
      %p132 = por %p130, %p131
      %p134 = scmp.ne.s32.totalorder %s119, %s133
      %p135 = scmp.eq.s32.totalorder %s25, 0
      %p136 = por %p134, %p135
      %s138 = sadd.s32 %s137, 1
      %p141 = scmp.eq.s32.totalorder %s19, 3
      %p142 = scmp.ne.s32.totalorder %s137, %s139
      %p143 = scmp.eq.s32.totalorder %s19, 0
      %p144 = por %p142, %p143
      %p145 = scmp.ne.s32.totalorder %s137, %s139
      %p146 = scmp.eq.s32.totalorder %s24, 3
      %p147 = por %p145, %p146
      %p148 = scmp.ne.s32.totalorder %s139, %s140
      %p149 = scmp.eq.s32.totalorder %s24, 0
      %p150 = por %p148, %p149
      %p151 = scmp.ne.s32.totalorder %s139, %s140
      %p152 = scmp.eq.s32.totalorder %s25, 3
      %p153 = por %p151, %p152
      %p155 = scmp.ne.s32.totalorder %s140, %s154
      %p156 = scmp.eq.s32.totalorder %s25, 0
      %p157 = por %p155, %p156
      %s159 = sadd.s32 %s158, 1
      %p162 = scmp.eq.s32.totalorder %s19, 3
      %p163 = scmp.ne.s32.totalorder %s158, %s160
      %p164 = scmp.eq.s32.totalorder %s19, 0
      %p165 = por %p163, %p164
      %p166 = scmp.ne.s32.totalorder %s158, %s160
      %p167 = scmp.eq.s32.totalorder %s24, 3
      %p168 = por %p166, %p167
      %p169 = scmp.ne.s32.totalorder %s160, %s161
      %p170 = scmp.eq.s32.totalorder %s24, 0
      %p171 = por %p169, %p170
      %p172 = scmp.ne.s32.totalorder %s160, %s161
      %p173 = scmp.eq.s32.totalorder %s25, 3
      %p174 = por %p172, %p173
      %p176 = scmp.ne.s32.totalorder %s161, %s175
      %p177 = scmp.eq.s32.totalorder %s25, 0
      %p178 = por %p176, %p177
      %s180 = sadd.s32 %s179, 1
      %p183 = scmp.eq.s32.totalorder %s19, 3
      %p184 = scmp.ne.s32.totalorder %s179, %s181
      %p185 = scmp.eq.s32.totalorder %s19, 0
      %p186 = por %p184, %p185
      %p187 = scmp.ne.s32.totalorder %s179, %s181
      %p188 = scmp.eq.s32.totalorder %s24, 3
      %p189 = por %p187, %p188
      %p190 = scmp.ne.s32.totalorder %s181, %s182
      %p191 = scmp.eq.s32.totalorder %s24, 0
      %p192 = por %p190, %p191
      %p193 = scmp.ne.s32.totalorder %s181, %s182
      %p194 = scmp.eq.s32.totalorder %s25, 3
      %p195 = por %p193, %p194
      %p197 = scmp.ne.s32.totalorder %s182, %s196
      %p198 = scmp.eq.s32.totalorder %s25, 0
      %p199 = por %p197, %p198
      %s201 = sadd.s32 %s200, 1
      %p204 = scmp.eq.s32.totalorder %s19, 3
      %p205 = scmp.ne.s32.totalorder %s200, %s202
      %p206 = scmp.eq.s32.totalorder %s19, 0
      %p207 = por %p205, %p206
      %p208 = scmp.ne.s32.totalorder %s200, %s202
      %p209 = scmp.eq.s32.totalorder %s24, 3
      %p210 = por %p208, %p209
      %p211 = scmp.ne.s32.totalorder %s202, %s203
      %p212 = scmp.eq.s32.totalorder %s24, 0
      %p213 = por %p211, %p212
      %p214 = scmp.ne.s32.totalorder %s202, %s203
      %p215 = scmp.eq.s32.totalorder %s25, 3
      %p216 = por %p214, %p215
      %p218 = scmp.ne.s32.totalorder %s203, %s217
      %p219 = scmp.eq.s32.totalorder %s25, 0
      %p220 = por %p218, %p219
      %s222 = sadd.s32 %s221, 1
      %p225 = scmp.eq.s32.totalorder %s19, 3
      %p226 = scmp.ne.s32.totalorder %s221, %s223
      %p227 = scmp.eq.s32.totalorder %s19, 0
      %p228 = por %p226, %p227
      %p229 = scmp.ne.s32.totalorder %s221, %s223
      %p230 = scmp.eq.s32.totalorder %s24, 3
      %p231 = por %p229, %p230
      %p232 = scmp.ne.s32.totalorder %s223, %s224
      %p233 = scmp.eq.s32.totalorder %s24, 0
      %p234 = por %p232, %p233
      %p235 = scmp.ne.s32.totalorder %s223, %s224
      %p236 = scmp.eq.s32.totalorder %s25, 3
      %p237 = por %p235, %p236
      %p239 = scmp.ne.s32.totalorder %s224, %s238
      %p240 = scmp.eq.s32.totalorder %s25, 0
      %p241 = por %p239, %p240
      %s242 = ssub.s32 %s19, %s26
      %p243 = scmp.eq.s32.totalorder %s242, 0
      %s245 = sadd.s32 %s244, 1
      %s246 = scalar_select %p243, %s244, %s245
      %p249 = pneg %p243
      %p250 = scmp.eq.s32.totalorder %s19, 3
      %p251 = por %p249, %p250
      %p252 = scmp.ne.s32.totalorder %s244, %s247
      %p253 = scmp.eq.s32.totalorder %s19, 0
      %p254 = por %p252, %p253
      %p255 = scmp.ne.s32.totalorder %s244, %s247
      %p256 = scmp.eq.s32.totalorder %s24, 3
      %p257 = por %p255, %p256
      %p258 = scmp.ne.s32.totalorder %s247, %s248
      %p259 = scmp.eq.s32.totalorder %s24, 0
      %p260 = por %p258, %p259
      %p261 = scmp.ne.s32.totalorder %s247, %s248
      %p262 = scmp.eq.s32.totalorder %s25, 3
      %p263 = por %p261, %p262
      %p265 = scmp.ne.s32.totalorder %s248, %s264
      %p266 = scmp.eq.s32.totalorder %s25, 0
      %p267 = por %p265, %p266
      %p268 = scmp.le.s32.totalorder 1, %s19
      %p269 = scmp.lt.s32.totalorder %s19, 5
      %p270 = pnand %p268, %p269
      %p271 = pneg %p270
      // Predicated region
      $region9: #{net_forward.4} parent=5 // pred_check
        _
      $region10: #{net_forward.4} parent=5 // pred_check_branch
        %273 = sbr.rel (%p270) target = $region12
      $region11: #{net_forward.4} parent=5 // pred_region
        %s274 = ssub.s32 %s19, 1
        // Predicated region
        $region13: #{net_forward.4} parent=11 // pred_check
          %p275 = pneg %p66
        $region14: #{net_forward.4} parent=11 // pred_check_branch
          %277 = sbr.rel (%p275) target = $region16
        $region15: #{net_forward.4} parent=11 // pred_region
          _
        $region16: #{net_forward.4} parent=11 // pred_fallthru
          _
        // Predicated region
        $region17: #{net_forward.4} parent=11 // pred_check
          %p278 = pneg %p87
        $region18: #{net_forward.4} parent=11 // pred_check_branch
          %280 = sbr.rel (%p278) target = $region20
        $region19: #{net_forward.4} parent=11 // pred_region
          _
        $region20: #{net_forward.4} parent=11 // pred_fallthru
          _
        // Predicated region
        $region21: #{net_forward.4} parent=11 // pred_check
          %p281 = pneg %p108
        $region22: #{net_forward.4} parent=11 // pred_check_branch
          %283 = sbr.rel (%p281) target = $region24
        $region23: #{net_forward.4} parent=11 // pred_region
          %285 = vsyncadd [#allocation3], 0
          %s287 = sshll.u32 %s3, 4
          %s288 = int_to_ptr.hbm [resolvable:$true] %s287
          %s289 = sshll.u32 [#allocation2], 4
          %s290 = int_to_ptr.vmem [resolvable:$true] %s289
          %292 = dma.hbm_to_vmem [thread:$0]  %s288, 16, %s290, [#allocation3]
        $region24: #{net_forward.4} parent=11 // pred_fallthru
          _
        // Predicated region
        $region25: #{net_forward.4} parent=11 // pred_check
          %p293 = pneg %p129
        $region26: #{net_forward.4} parent=11 // pred_check_branch
          %295 = sbr.rel (%p293) target = $region28
        $region27: #{net_forward.4} parent=11 // pred_region
          _
        $region28: #{net_forward.4} parent=11 // pred_fallthru
          _
        // Predicated region
        $region29: #{net_forward.4} parent=11 // pred_check
          %p296 = pneg %p150
        $region30: #{net_forward.4} parent=11 // pred_check_branch
          %298 = sbr.rel (%p296) target = $region32
        $region31: #{net_forward.4} parent=11 // pred_region
          %300 = vsyncadd [#allocation5], 0
          %s302 = sshll.u32 %s5, 4
          %s303 = int_to_ptr.hbm [resolvable:$true] %s302
          %s304 = sshll.u32 [#allocation4], 4
          %s305 = int_to_ptr.vmem [resolvable:$true] %s304
          %307 = dma.hbm_to_vmem [thread:$0]  %s303, 16, %s305, [#allocation5]
        $region32: #{net_forward.4} parent=11 // pred_fallthru
          _
        // Predicated region
        $region33: #{net_forward.4} parent=11 // pred_check
          %p308 = pneg %p171
        $region34: #{net_forward.4} parent=11 // pred_check_branch
          %310 = sbr.rel (%p308) target = $region36
        $region35: #{net_forward.4} parent=11 // pred_region
          _
        $region36: #{net_forward.4} parent=11 // pred_fallthru
          _
        // Predicated region
        $region37: #{net_forward.4} parent=11 // pred_check
          %p311 = pneg %p192
        $region38: #{net_forward.4} parent=11 // pred_check_branch
          %313 = sbr.rel (%p311) target = $region40
        $region39: #{net_forward.4} parent=11 // pred_region
          %315 = vsyncadd [#allocation5], 0
          %s317 = sshll.u32 %s7, 4
          %s318 = int_to_ptr.hbm [resolvable:$true] %s317
          %s319 = sshll.u32 [#allocation6], 4
          %s320 = int_to_ptr.vmem [resolvable:$true] %s319
          %322 = dma.hbm_to_vmem [thread:$0]  %s318, 16, %s320, [#allocation5]
        $region40: #{net_forward.4} parent=11 // pred_fallthru
          _
        // Predicated region
        $region41: #{net_forward.4} parent=11 // pred_check
          %p323 = pneg %p213
        $region42: #{net_forward.4} parent=11 // pred_check_branch
          %325 = sbr.rel (%p323) target = $region44
        $region43: #{net_forward.4} parent=11 // pred_region
          _
        $region44: #{net_forward.4} parent=11 // pred_fallthru
          _
        // Predicated region
        $region45: #{net_forward.4} parent=11 // pred_check
          %p326 = pneg %p234
        $region46: #{net_forward.4} parent=11 // pred_check_branch
          %328 = sbr.rel (%p326) target = $region48
        $region47: #{net_forward.4} parent=11 // pred_region
          %330 = vsyncadd [#allocation8], 0
          %s332 = sshll.u32 %s9, 4
          %s333 = int_to_ptr.hbm [resolvable:$true] %s332
          %s334 = sshll.u32 [#allocation7], 4
          %s335 = int_to_ptr.vmem [resolvable:$true] %s334
          %337 = dma.hbm_to_vmem [thread:$0]  %s333, 32, %s335, [#allocation8]
        $region48: #{net_forward.4} parent=11 // pred_fallthru
          _
      $region12: #{net_forward.4} parent=5 // pred_fallthru
        _
      %p338 = scmp.lt.s32.totalorder %s19, 4
      // Predicated region
      $region49: #{net_forward.4} parent=5 // pred_check
        %p339 = pneg %p338
      $region50: #{net_forward.4} parent=5 // pred_check_branch
        %341 = sbr.rel (%p339) target = $region52
      $region51: #{net_forward.4} parent=5 // pred_region
        // Predicated region
        $region53: #{net_forward.4} parent=51 // pred_check
          %p342 = pneg %p39
        $region54: #{net_forward.4} parent=51 // pred_check_branch
          %344 = sbr.rel (%p342) target = $region56
        $region55: #{net_forward.4} parent=51 // pred_region
          %p345 = scmp.lt.s32.totalorder %s19, 3
          %s346 = scalar_select %p345, %s19, 3
          %s347 = smul.addr %s346, 4
          %s348 = scalar_lea.vmem %s0, %s347
        $region56: #{net_forward.4} parent=51 // pred_fallthru
          _
      $region52: #{net_forward.4} parent=5 // pred_fallthru
        _
      %p349 = scmp.le.s32.totalorder 1, %s19
      %p350 = scmp.lt.s32.totalorder %s19, 5
      %p351 = pnand %p349, %p350
      %p352 = pneg %p351
      // Predicated region
      $region57: #{net_forward.4} parent=5 // pred_check
        _
      $region58: #{net_forward.4} parent=5 // pred_check_branch
        %354 = sbr.rel (%p351) target = $region60
      $region59: #{net_forward.4} parent=5 // pred_region
        %s355 = ssub.s32 %s19, 1
        // Predicated region
        $region61: #{net_forward.4} parent=59 // pred_check
          %p356 = pneg %p108
        $region62: #{net_forward.4} parent=59 // pred_check_branch
          %358 = sbr.rel (%p356) target = $region64
        $region63: #{net_forward.4} parent=59 // pred_region
          %360 = dma.done [#allocation3], 16
        $region64: #{net_forward.4} parent=59 // pred_fallthru
          _
        // Predicated region
        $region65: #{net_forward.4} parent=59 // pred_check
          %p361 = pneg %p150
        $region66: #{net_forward.4} parent=59 // pred_check_branch
          %363 = sbr.rel (%p361) target = $region68
        $region67: #{net_forward.4} parent=59 // pred_region
          %365 = dma.done [#allocation5], 16
        $region68: #{net_forward.4} parent=59 // pred_fallthru
          _
        // Predicated region
        $region69: #{net_forward.4} parent=59 // pred_check
          %p366 = pneg %p192
        $region70: #{net_forward.4} parent=59 // pred_check_branch
          %368 = sbr.rel (%p366) target = $region72
        $region71: #{net_forward.4} parent=59 // pred_region
          %370 = dma.done [#allocation5], 16
        $region72: #{net_forward.4} parent=59 // pred_fallthru
          _
        // Predicated region
        $region73: #{net_forward.4} parent=59 // pred_check
          %p371 = pneg %p234
        $region74: #{net_forward.4} parent=59 // pred_check_branch
          %373 = sbr.rel (%p371) target = $region76
        $region75: #{net_forward.4} parent=59 // pred_region
          %375 = dma.done [#allocation8], 32
        $region76: #{net_forward.4} parent=59 // pred_fallthru
          _
        %p376 = scmp.lt.s32.totalorder %s24, 3
        %s377 = scalar_select %p376, %s24, 3
        %s378 = smul.addr %s377, 4
        %s379 = scalar_lea.vmem %s0, %s378
        %p380 = pneg %p45
        %p381 = pneg %p42
        %p382 = pneg %p66
        %p383 = pneg %p63
        %p384 = pneg %p87
        %p385 = pneg %p84
        %p386 = pneg %p108
        %p387 = pneg %p105
        %p388 = pneg %p129
        %p389 = pneg %p126
        %p390 = pneg %p150
        %p391 = pneg %p147
        %p392 = pneg %p171
        %p393 = pneg %p168
        %p394 = pneg %p192
        %p395 = pneg %p189
        %p396 = pneg %p213
        %p397 = pneg %p210
        %p398 = pneg %p234
        %p399 = pneg %p231
        %p400 = pneg %p260
        %p401 = pneg %p257
        %s402 = smul.u32 24, %s24
        %p403 = scmp.lt.s32.totalorder %s402, 95
        %s404 = scalar_select %p403, %s402, 95
        %s405 = smul.addr %s404, 2
        %s406 = smul.addr %s405, 8
        %s407 = scalar_lea.vmem %s10, %s406
        %p408 = scmp.lt.s32.totalorder %s24, 3
        %s409 = scalar_select %p408, %s24, 3
        %s410 = smul.addr %s409, 4
        %s411 = scalar_lea.vmem %s0, %s410
        %s412 = smul.u32 24, %s24
        %p413 = scmp.lt.s32.totalorder %s412, 95
        %s414 = scalar_select %p413, %s412, 95
        %s415 = smul.addr %s414, 2
        %s416 = smul.addr %s415, 8
        %s417 = scalar_lea.vmem %s10, %s416
        %s418 = smul.u32 24, %s24
        %v419 = vld [vmem:[%s411] sm:$0x7]
        %v420 = vld [vmem:[%s1] sm:$0xff]
        %v421 = vld [vmem:[%s1 + $0x8] sm:$0xff]
        %v422 = vld [vmem:[%s1 + $0x10] sm:$0xff]
        %v423 = vld [vmem:[%s1 + $0x18] sm:$0xff]
        %v424 = vld [vmem:[%s1 + $0x20] sm:$0xff]
        %v425 = vld [vmem:[%s1 + $0x28] sm:$0xff]
        %v426 = vld [vmem:[%s1 + $0x30] sm:$0xff]
        %v427 = vld [vmem:[%s1 + $0x38] sm:$0xff]
        %v428 = vperm.slane %v419, 0
        %v429 = vadd.f32 %v420, %v428
        %v430 = vadd.f32 %v421, %v428
        %v431 = vadd.f32 %v422, %v428
        %v432 = vadd.f32 %v423, %v428
        %v433 = vadd.f32 %v424, %v428
        %v434 = vadd.f32 %v425, %v428
        %v435 = vadd.f32 %v426, %v428
        %v436 = vadd.f32 %v427, %v428
        %v437 = vpack.c.bf16 %v430, %v429
        %v438 = vpack.c.bf16 %v432, %v431
        %v439 = vpack.c.bf16 %v434, %v433
        %v440 = vpack.c.bf16 %v436, %v435
        %v441 = vld [vmem:[%s2] sm:$0xf]
        %v442 = vld [vmem:[%s2 + $0x4] sm:$0xf]
        %v443 = vld [vmem:[%s2 + $0x8] sm:$0xf]
        %v444 = vld [vmem:[%s2 + $0xc] sm:$0xf]
        %v445 = vld [vmem:[%s2 + $0x10] sm:$0xf]
        %v446 = vld [vmem:[%s2 + $0x14] sm:$0xf]
        %v447 = vld [vmem:[%s2 + $0x18] sm:$0xf]
        %v448 = vld [vmem:[%s2 + $0x1c] sm:$0xf]
        %v449 = vld [vmem:[%s2 + $0x20] sm:$0xf]
        %v450 = vld [vmem:[%s2 + $0x24] sm:$0xf]
        %v451 = vld [vmem:[%s2 + $0x28] sm:$0xf]
        %v452 = vld [vmem:[%s2 + $0x2c] sm:$0xf]
        %v453 = vld [vmem:[%s2 + $0x30] sm:$0xf]
        %v454 = vld [vmem:[%s2 + $0x34] sm:$0xf]
        %v455 = vld [vmem:[%s2 + $0x38] sm:$0xf]
        %v456 = vld [vmem:[%s2 + $0x3c] sm:$0xf]
        %v457 = vld [vmem:[#allocation2] sm:$0x1]
        %v459 = vperm.slane %v457, 0
        %v477 = vunpack.c.l.b16 %v441
        %v478 = vunpack.c.l.b16 %v442
        %v479 = vunpack.c.l.b16 %v443
        %v480 = vunpack.c.l.b16 %v444
        %v481 = vunpack.c.l.b16 %v445
        %v482 = vunpack.c.l.b16 %v446
        %v483 = vunpack.c.l.b16 %v447
        %v484 = vunpack.c.l.b16 %v448
        %v485 = vunpack.c.l.b16 %v449
        %v486 = vunpack.c.l.b16 %v450
        %v487 = vunpack.c.l.b16 %v451
        %v488 = vunpack.c.l.b16 %v452
        %v489 = vunpack.c.l.b16 %v453
        %v490 = vunpack.c.l.b16 %v454
        %v491 = vunpack.c.l.b16 %v455
        %v492 = vunpack.c.l.b16 %v456
        %v493 = vpack.c.b16 %v478, %v477
        %v494 = vpack.c.b16 %v480, %v479
        %v495 = vpack.c.b16 %v482, %v481
        %v496 = vpack.c.b16 %v484, %v483
        %v497 = vpack.c.b16 %v486, %v485
        %v498 = vpack.c.b16 %v488, %v487
        %v499 = vpack.c.b16 %v490, %v489
        %v500 = vpack.c.b16 %v492, %v491
        %509 = vmatpush.bf16.msra.mxu0 %v500
        %510 = vmatpush.bf16.msra.mxu0 %v499
        %511 = vmatpush.bf16.msra.mxu0 %v498
        %512 = vmatpush.bf16.msra.mxu0 %v497
        %513 = vmatpush.bf16.msra.mxu0 %v496
        %514 = vmatpush.bf16.msra.mxu0 %v495
        %515 = vmatpush.bf16.msra.mxu0 %v494
        %516 = vmatpush.bf16.msra.mxu0 %v493
        %517 = vmatmul.bf16.gmra.mxu0 %v437
        %v518 = vpop.f32.mrf.mxu0
        %v519 = vadd.f32 %v459, %v518
        %v520 = vpop.f32.mrf.mxu0
        %v521 = vadd.f32 %v459, %v520
        %522 = vmatmul.bf16.gmra.mxu0 %v438
        %v523 = vpop.f32.mrf.mxu0
        %v524 = vadd.f32 %v459, %v523
        %v525 = vpop.f32.mrf.mxu0
        %v526 = vadd.f32 %v459, %v525
        %527 = vmatmul.bf16.gmra.mxu0 %v439
        %v528 = vpop.f32.mrf.mxu0
        %v529 = vadd.f32 %v459, %v528
        %v530 = vpop.f32.mrf.mxu0
        %v531 = vadd.f32 %v459, %v530
        %532 = vmatmul.bf16.gmra.mxu0 %v440
        %v533 = vpop.f32.mrf.mxu0
        %v534 = vadd.f32 %v459, %v533
        %v535 = vpop.f32.mrf.mxu0
        %v536 = vadd.f32 %v459, %v535
        %537 = vdwg.mxu0
        %v538 = vpack.c.bf16 %v521, %v519
        %v539 = vpack.c.bf16 %v526, %v524
        %v540 = vpack.c.bf16 %v531, %v529
        %v541 = vpack.c.bf16 %v536, %v534
        %v542 = vld [vmem:[%s4] sm:$0xf]
        %v543 = vld [vmem:[%s4 + $0x4] sm:$0xf]
        %v544 = vld [vmem:[%s4 + $0x8] sm:$0xf]
        %v545 = vld [vmem:[%s4 + $0xc] sm:$0xf]
        %v546 = vld [vmem:[%s4 + $0x10] sm:$0xf]
        %v547 = vld [vmem:[%s4 + $0x14] sm:$0xf]
        %v548 = vld [vmem:[%s4 + $0x18] sm:$0xf]
        %v549 = vld [vmem:[%s4 + $0x1c] sm:$0xf]
        %v550 = vld [vmem:[%s4 + $0x20] sm:$0xf]
        %v551 = vld [vmem:[%s4 + $0x24] sm:$0xf]
        %v552 = vld [vmem:[%s4 + $0x28] sm:$0xf]
        %v553 = vld [vmem:[%s4 + $0x2c] sm:$0xf]
        %v554 = vld [vmem:[%s4 + $0x30] sm:$0xf]
        %v555 = vld [vmem:[%s4 + $0x34] sm:$0xf]
        %v556 = vld [vmem:[%s4 + $0x38] sm:$0xf]
        %v557 = vld [vmem:[%s4 + $0x3c] sm:$0xf]
        %v558 = vld [vmem:[#allocation4] sm:$0x1]
        %v560 = vperm.slane %v558, 0
        %v578 = vunpack.c.l.b16 %v542
        %v579 = vunpack.c.l.b16 %v543
        %v580 = vunpack.c.l.b16 %v544
        %v581 = vunpack.c.l.b16 %v545
        %v582 = vunpack.c.l.b16 %v546
        %v583 = vunpack.c.l.b16 %v547
        %v584 = vunpack.c.l.b16 %v548
        %v585 = vunpack.c.l.b16 %v549
        %v586 = vunpack.c.l.b16 %v550
        %v587 = vunpack.c.l.b16 %v551
        %v588 = vunpack.c.l.b16 %v552
        %v589 = vunpack.c.l.b16 %v553
        %v590 = vunpack.c.l.b16 %v554
        %v591 = vunpack.c.l.b16 %v555
        %v592 = vunpack.c.l.b16 %v556
        %v593 = vunpack.c.l.b16 %v557
        %v594 = vpack.c.b16 %v579, %v578
        %v595 = vpack.c.b16 %v581, %v580
        %v596 = vpack.c.b16 %v583, %v582
        %v597 = vpack.c.b16 %v585, %v584
        %v598 = vpack.c.b16 %v587, %v586
        %v599 = vpack.c.b16 %v589, %v588
        %v600 = vpack.c.b16 %v591, %v590
        %v601 = vpack.c.b16 %v593, %v592
        %610 = vmatpush.bf16.msra.mxu0 %v601
        %611 = vmatpush.bf16.msra.mxu0 %v600
        %612 = vmatpush.bf16.msra.mxu0 %v599
        %613 = vmatpush.bf16.msra.mxu0 %v598
        %614 = vmatpush.bf16.msra.mxu0 %v597
        %615 = vmatpush.bf16.msra.mxu0 %v596
        %616 = vmatpush.bf16.msra.mxu0 %v595
        %617 = vmatpush.bf16.msra.mxu0 %v594
        %618 = vmatmul.bf16.gmra.mxu0 %v538
        %v619 = vpop.f32.mrf.mxu0
        %v620 = vadd.f32 %v560, %v619
        %v621 = vpop.f32.mrf.mxu0
        %v622 = vadd.f32 %v560, %v621
        %623 = vmatmul.bf16.gmra.mxu0 %v539
        %v624 = vpop.f32.mrf.mxu0
        %v625 = vadd.f32 %v560, %v624
        %v626 = vpop.f32.mrf.mxu0
        %v627 = vadd.f32 %v560, %v626
        %628 = vmatmul.bf16.gmra.mxu0 %v540
        %v629 = vpop.f32.mrf.mxu0
        %v630 = vadd.f32 %v560, %v629
        %v631 = vpop.f32.mrf.mxu0
        %v632 = vadd.f32 %v560, %v631
        %633 = vmatmul.bf16.gmra.mxu0 %v541
        %v634 = vpop.f32.mrf.mxu0
        %v635 = vadd.f32 %v560, %v634
        %v636 = vpop.f32.mrf.mxu0
        %v637 = vadd.f32 %v560, %v636
        %638 = vdwg.mxu0
        %v639 = vmax.f32 %v620, 0.0
        %v640 = vmax.f32 %v622, 0.0
        %v641 = vmax.f32 %v625, 0.0
        %v642 = vmax.f32 %v627, 0.0
        %v643 = vmax.f32 %v630, 0.0
        %v644 = vmax.f32 %v632, 0.0
        %v645 = vmax.f32 %v635, 0.0
        %v646 = vmax.f32 %v637, 0.0
        %v647 = vpack.c.bf16 %v640, %v639
        %v648 = vpack.c.bf16 %v642, %v641
        %v649 = vpack.c.bf16 %v644, %v643
        %v650 = vpack.c.bf16 %v646, %v645
        %v651 = vld [vmem:[%s6] sm:$0xf]
        %v652 = vld [vmem:[%s6 + $0x4] sm:$0xf]
        %v653 = vld [vmem:[%s6 + $0x8] sm:$0xf]
        %v654 = vld [vmem:[%s6 + $0xc] sm:$0xf]
        %v655 = vld [vmem:[%s6 + $0x10] sm:$0xf]
        %v656 = vld [vmem:[%s6 + $0x14] sm:$0xf]
        %v657 = vld [vmem:[%s6 + $0x18] sm:$0xf]
        %v658 = vld [vmem:[%s6 + $0x1c] sm:$0xf]
        %v659 = vld [vmem:[%s6 + $0x20] sm:$0xf]
        %v660 = vld [vmem:[%s6 + $0x24] sm:$0xf]
        %v661 = vld [vmem:[%s6 + $0x28] sm:$0xf]
        %v662 = vld [vmem:[%s6 + $0x2c] sm:$0xf]
        %v663 = vld [vmem:[%s6 + $0x30] sm:$0xf]
        %v664 = vld [vmem:[%s6 + $0x34] sm:$0xf]
        %v665 = vld [vmem:[%s6 + $0x38] sm:$0xf]
        %v666 = vld [vmem:[%s6 + $0x3c] sm:$0xf]
        %v667 = vld [vmem:[#allocation6] sm:$0x1]
        %v669 = vperm.slane %v667, 0
        %v687 = vunpack.c.l.b16 %v651
        %v688 = vunpack.c.l.b16 %v652
        %v689 = vunpack.c.l.b16 %v653
        %v690 = vunpack.c.l.b16 %v654
        %v691 = vunpack.c.l.b16 %v655
        %v692 = vunpack.c.l.b16 %v656
        %v693 = vunpack.c.l.b16 %v657
        %v694 = vunpack.c.l.b16 %v658
        %v695 = vunpack.c.l.b16 %v659
        %v696 = vunpack.c.l.b16 %v660
        %v697 = vunpack.c.l.b16 %v661
        %v698 = vunpack.c.l.b16 %v662
        %v699 = vunpack.c.l.b16 %v663
        %v700 = vunpack.c.l.b16 %v664
        %v701 = vunpack.c.l.b16 %v665
        %v702 = vunpack.c.l.b16 %v666
        %v703 = vpack.c.b16 %v688, %v687
        %v704 = vpack.c.b16 %v690, %v689
        %v705 = vpack.c.b16 %v692, %v691
        %v706 = vpack.c.b16 %v694, %v693
        %v707 = vpack.c.b16 %v696, %v695
        %v708 = vpack.c.b16 %v698, %v697
        %v709 = vpack.c.b16 %v700, %v699
        %v710 = vpack.c.b16 %v702, %v701
        %719 = vmatpush.bf16.msra.mxu0 %v710
        %720 = vmatpush.bf16.msra.mxu0 %v709
        %721 = vmatpush.bf16.msra.mxu0 %v708
        %722 = vmatpush.bf16.msra.mxu0 %v707
        %723 = vmatpush.bf16.msra.mxu0 %v706
        %724 = vmatpush.bf16.msra.mxu0 %v705
        %725 = vmatpush.bf16.msra.mxu0 %v704
        %726 = vmatpush.bf16.msra.mxu0 %v703
        %727 = vmatmul.bf16.gmra.mxu0 %v647
        %v728 = vpop.f32.mrf.mxu0
        %v729 = vadd.f32 %v669, %v728
        %v730 = vpop.f32.mrf.mxu0
        %v731 = vadd.f32 %v669, %v730
        %732 = vmatmul.bf16.gmra.mxu0 %v648
        %v733 = vpop.f32.mrf.mxu0
        %v734 = vadd.f32 %v669, %v733
        %v735 = vpop.f32.mrf.mxu0
        %v736 = vadd.f32 %v669, %v735
        %737 = vmatmul.bf16.gmra.mxu0 %v649
        %v738 = vpop.f32.mrf.mxu0
        %v739 = vadd.f32 %v669, %v738
        %v740 = vpop.f32.mrf.mxu0
        %v741 = vadd.f32 %v669, %v740
        %742 = vmatmul.bf16.gmra.mxu0 %v650
        %v743 = vpop.f32.mrf.mxu0
        %v744 = vadd.f32 %v669, %v743
        %v745 = vpop.f32.mrf.mxu0
        %v746 = vadd.f32 %v669, %v745
        %747 = vdwg.mxu0
        %v748 = vmax.f32 %v729, 0.0
        %v749 = vmax.f32 %v731, 0.0
        %v750 = vmax.f32 %v734, 0.0
        %v751 = vmax.f32 %v736, 0.0
        %v752 = vmax.f32 %v739, 0.0
        %v753 = vmax.f32 %v741, 0.0
        %v754 = vmax.f32 %v744, 0.0
        %v755 = vmax.f32 %v746, 0.0
        %v756 = vpack.c.bf16 %v749, %v748
        %v757 = vpack.c.bf16 %v751, %v750
        %v758 = vpack.c.bf16 %v753, %v752
        %v759 = vpack.c.bf16 %v755, %v754
        %v760 = vld [vmem:[%s8] sm:$0xff]
        %v761 = vld [vmem:[%s8 + $0x8] sm:$0xff]
        %v762 = vld [vmem:[%s8 + $0x10] sm:$0xff]
        %v763 = vld [vmem:[%s8 + $0x18] sm:$0xff]
        %v764 = vld [vmem:[%s8 + $0x20] sm:$0xff]
        %v765 = vld [vmem:[%s8 + $0x28] sm:$0xff]
        %v766 = vld [vmem:[%s8 + $0x30] sm:$0xff]
        %v767 = vld [vmem:[%s8 + $0x38] sm:$0xff]
        %v768 = vld [vmem:[%s8 + $0x40] sm:$0xff]
        %v769 = vld [vmem:[%s8 + $0x48] sm:$0xff]
        %v770 = vld [vmem:[%s8 + $0x50] sm:$0xff]
        %v771 = vld [vmem:[%s8 + $0x58] sm:$0xff]
        %v772 = vld [vmem:[%s8 + $0x60] sm:$0xff]
        %v773 = vld [vmem:[%s8 + $0x68] sm:$0xff]
        %v774 = vld [vmem:[%s8 + $0x70] sm:$0xff]
        %v775 = vld [vmem:[%s8 + $0x78] sm:$0xff]
        %v776 = vld [vmem:[#allocation7] sm:$0x3]
        %v778 = vperm.slane %v776, 0
        %v779 = vperm.slane %v776, 1
        %v798 = vunpack.c.l.b16 %v760
        %v799 = vunpack.c.h.b16 %v760
        %v800 = vunpack.c.l.b16 %v761
        %v801 = vunpack.c.h.b16 %v761
        %v802 = vunpack.c.l.b16 %v762
        %v803 = vunpack.c.h.b16 %v762
        %v804 = vunpack.c.l.b16 %v763
        %v805 = vunpack.c.h.b16 %v763
        %v806 = vunpack.c.l.b16 %v764
        %v807 = vunpack.c.h.b16 %v764
        %v808 = vunpack.c.l.b16 %v765
        %v809 = vunpack.c.h.b16 %v765
        %v810 = vunpack.c.l.b16 %v766
        %v811 = vunpack.c.h.b16 %v766
        %v812 = vunpack.c.l.b16 %v767
        %v813 = vunpack.c.h.b16 %v767
        %v814 = vunpack.c.l.b16 %v768
        %v815 = vunpack.c.h.b16 %v768
        %v816 = vunpack.c.l.b16 %v769
        %v817 = vunpack.c.h.b16 %v769
        %v818 = vunpack.c.l.b16 %v770
        %v819 = vunpack.c.h.b16 %v770
        %v820 = vunpack.c.l.b16 %v771
        %v821 = vunpack.c.h.b16 %v771
        %v822 = vunpack.c.l.b16 %v772
        %v823 = vunpack.c.h.b16 %v772
        %v824 = vunpack.c.l.b16 %v773
        %v825 = vunpack.c.h.b16 %v773
        %v826 = vunpack.c.l.b16 %v774
        %v827 = vunpack.c.h.b16 %v774
        %v828 = vunpack.c.l.b16 %v775
        %v829 = vunpack.c.h.b16 %v775
        %v830 = vpack.c.b16 %v800, %v798
        %v831 = vpack.c.b16 %v801, %v799
        %v832 = vpack.c.b16 %v804, %v802
        %v833 = vpack.c.b16 %v805, %v803
        %v834 = vpack.c.b16 %v808, %v806
        %v835 = vpack.c.b16 %v809, %v807
        %v836 = vpack.c.b16 %v812, %v810
        %v837 = vpack.c.b16 %v813, %v811
        %v838 = vpack.c.b16 %v816, %v814
        %v839 = vpack.c.b16 %v817, %v815
        %v840 = vpack.c.b16 %v820, %v818
        %v841 = vpack.c.b16 %v821, %v819
        %v842 = vpack.c.b16 %v824, %v822
        %v843 = vpack.c.b16 %v825, %v823
        %v844 = vpack.c.b16 %v828, %v826
        %v845 = vpack.c.b16 %v829, %v827
        %862 = vmatpush.bf16.msra.mxu0 %v844
        %863 = vmatpush.bf16.msra.mxu0 %v842
        %864 = vmatpush.bf16.msra.mxu0 %v840
        %865 = vmatpush.bf16.msra.mxu0 %v838
        %866 = vmatpush.bf16.msra.mxu0 %v836
        %867 = vmatpush.bf16.msra.mxu0 %v834
        %868 = vmatpush.bf16.msra.mxu0 %v832
        %869 = vmatpush.bf16.msra.mxu0 %v830
        %870 = vmatmul.bf16.gmra.mxu0 %v756
        %v871 = vpop.f32.mrf.mxu0
        %v872 = vadd.f32 %v778, %v871
        %v873 = vpop.f32.mrf.mxu0
        %v874 = vadd.f32 %v778, %v873
        %875 = vmatmul.bf16.gmra.mxu0 %v757
        %v876 = vpop.f32.mrf.mxu0
        %v877 = vadd.f32 %v778, %v876
        %v878 = vpop.f32.mrf.mxu0
        %v879 = vadd.f32 %v778, %v878
        %880 = vmatmul.bf16.gmra.mxu0 %v758
        %v881 = vpop.f32.mrf.mxu0
        %v882 = vadd.f32 %v778, %v881
        %v883 = vpop.f32.mrf.mxu0
        %v884 = vadd.f32 %v778, %v883
        %885 = vmatmul.bf16.gmra.mxu0 %v759
        %v886 = vpop.f32.mrf.mxu0
        %v887 = vadd.f32 %v778, %v886
        %v888 = vpop.f32.mrf.mxu0
        %v889 = vadd.f32 %v778, %v888
        %890 = vdwg.mxu0
        %891 = vmatpush.bf16.msra.mxu0 %v845
        %892 = vmatpush.bf16.msra.mxu0 %v843
        %893 = vmatpush.bf16.msra.mxu0 %v841
        %894 = vmatpush.bf16.msra.mxu0 %v839
        %895 = vmatpush.bf16.msra.mxu0 %v837
        %896 = vmatpush.bf16.msra.mxu0 %v835
        %897 = vmatpush.bf16.msra.mxu0 %v833
        %898 = vmatpush.bf16.msra.mxu0 %v831
        %899 = vmatmul.bf16.gmra.mxu0 %v756
        %v900 = vpop.f32.mrf.mxu0
        %v901 = vadd.f32 %v779, %v900
        %v902 = vpop.f32.mrf.mxu0
        %v903 = vadd.f32 %v779, %v902
        %904 = vmatmul.bf16.gmra.mxu0 %v757
        %v905 = vpop.f32.mrf.mxu0
        %v906 = vadd.f32 %v779, %v905
        %v907 = vpop.f32.mrf.mxu0
        %v908 = vadd.f32 %v779, %v907
        %909 = vmatmul.bf16.gmra.mxu0 %v758
        %v910 = vpop.f32.mrf.mxu0
        %v911 = vadd.f32 %v779, %v910
        %v912 = vpop.f32.mrf.mxu0
        %v913 = vadd.f32 %v779, %v912
        %914 = vmatmul.bf16.gmra.mxu0 %v759
        %v915 = vpop.f32.mrf.mxu0
        %v916 = vadd.f32 %v779, %v915
        %v917 = vpop.f32.mrf.mxu0
        %v918 = vadd.f32 %v779, %v917
        %919 = vdwg.mxu0
        %920 = vst [vmem:[%s417] sm:$0xff] %v872
        %vm921 = vcmask 7168
        %922 = vst.msk [vmem:[%s417 + $0x8] sm:$0xff] %vm921, %v901
        %923 = vst [vmem:[%s417 + $0x10] sm:$0xff] %v874
        %924 = vst.msk [vmem:[%s417 + $0x18] sm:$0xff] %vm921, %v903
        %925 = vst [vmem:[%s417 + $0x20] sm:$0xff] %v877
        %926 = vst.msk [vmem:[%s417 + $0x28] sm:$0xff] %vm921, %v906
        %927 = vst [vmem:[%s417 + $0x30] sm:$0xff] %v879
        %928 = vst.msk [vmem:[%s417 + $0x38] sm:$0xff] %vm921, %v908
        %929 = vst [vmem:[%s417 + $0x40] sm:$0xff] %v882
        %930 = vst.msk [vmem:[%s417 + $0x48] sm:$0xff] %vm921, %v911
        %931 = vst [vmem:[%s417 + $0x50] sm:$0xff] %v884
        %932 = vst.msk [vmem:[%s417 + $0x58] sm:$0xff] %vm921, %v913
        %933 = vst [vmem:[%s417 + $0x60] sm:$0xff] %v887
        %934 = vst.msk [vmem:[%s417 + $0x68] sm:$0xff] %vm921, %v916
        %935 = vst [vmem:[%s417 + $0x70] sm:$0xff] %v889
        %936 = vst.msk [vmem:[%s417 + $0x78] sm:$0xff] %vm921, %v918
        %v937 = vperm.slane %v419, 1
        %v938 = vadd.f32 %v420, %v937
        %v939 = vadd.f32 %v421, %v937
        %v940 = vadd.f32 %v422, %v937
        %v941 = vadd.f32 %v423, %v937
        %v942 = vadd.f32 %v424, %v937
        %v943 = vadd.f32 %v425, %v937
        %v944 = vadd.f32 %v426, %v937
        %v945 = vadd.f32 %v427, %v937
        %v946 = vpack.c.bf16 %v939, %v938
        %v947 = vpack.c.bf16 %v941, %v940
        %v948 = vpack.c.bf16 %v943, %v942
        %v949 = vpack.c.bf16 %v945, %v944
        %v950 = vld [vmem:[%s2] sm:$0xf]
        %v951 = vld [vmem:[%s2 + $0x4] sm:$0xf]
        %v952 = vld [vmem:[%s2 + $0x8] sm:$0xf]
        %v953 = vld [vmem:[%s2 + $0xc] sm:$0xf]
        %v954 = vld [vmem:[%s2 + $0x10] sm:$0xf]
        %v955 = vld [vmem:[%s2 + $0x14] sm:$0xf]
        %v956 = vld [vmem:[%s2 + $0x18] sm:$0xf]
        %v957 = vld [vmem:[%s2 + $0x1c] sm:$0xf]
        %v958 = vld [vmem:[%s2 + $0x20] sm:$0xf]
        %v959 = vld [vmem:[%s2 + $0x24] sm:$0xf]
        %v960 = vld [vmem:[%s2 + $0x28] sm:$0xf]
        %v961 = vld [vmem:[%s2 + $0x2c] sm:$0xf]
        %v962 = vld [vmem:[%s2 + $0x30] sm:$0xf]
        %v963 = vld [vmem:[%s2 + $0x34] sm:$0xf]
        %v964 = vld [vmem:[%s2 + $0x38] sm:$0xf]
        %v965 = vld [vmem:[%s2 + $0x3c] sm:$0xf]
        %v966 = vld [vmem:[#allocation2] sm:$0x1]
        %v968 = vperm.slane %v966, 0
        %v986 = vunpack.c.l.b16 %v950
        %v987 = vunpack.c.l.b16 %v951
        %v988 = vunpack.c.l.b16 %v952
        %v989 = vunpack.c.l.b16 %v953
        %v990 = vunpack.c.l.b16 %v954
        %v991 = vunpack.c.l.b16 %v955
        %v992 = vunpack.c.l.b16 %v956
        %v993 = vunpack.c.l.b16 %v957
        %v994 = vunpack.c.l.b16 %v958
        %v995 = vunpack.c.l.b16 %v959
        %v996 = vunpack.c.l.b16 %v960
        %v997 = vunpack.c.l.b16 %v961
        %v998 = vunpack.c.l.b16 %v962
        %v999 = vunpack.c.l.b16 %v963
        %v1000 = vunpack.c.l.b16 %v964
        %v1001 = vunpack.c.l.b16 %v965
        %v1002 = vpack.c.b16 %v987, %v986
        %v1003 = vpack.c.b16 %v989, %v988
        %v1004 = vpack.c.b16 %v991, %v990
        %v1005 = vpack.c.b16 %v993, %v992
        %v1006 = vpack.c.b16 %v995, %v994
        %v1007 = vpack.c.b16 %v997, %v996
        %v1008 = vpack.c.b16 %v999, %v998
        %v1009 = vpack.c.b16 %v1001, %v1000
        %1018 = vmatpush.bf16.msra.mxu0 %v1009
        %1019 = vmatpush.bf16.msra.mxu0 %v1008
        %1020 = vmatpush.bf16.msra.mxu0 %v1007
        %1021 = vmatpush.bf16.msra.mxu0 %v1006
        %1022 = vmatpush.bf16.msra.mxu0 %v1005
        %1023 = vmatpush.bf16.msra.mxu0 %v1004
        %1024 = vmatpush.bf16.msra.mxu0 %v1003
        %1025 = vmatpush.bf16.msra.mxu0 %v1002
        %1026 = vmatmul.bf16.gmra.mxu0 %v946
        %v1027 = vpop.f32.mrf.mxu0
        %v1028 = vadd.f32 %v968, %v1027
        %v1029 = vpop.f32.mrf.mxu0
        %v1030 = vadd.f32 %v968, %v1029
        %1031 = vmatmul.bf16.gmra.mxu0 %v947
        %v1032 = vpop.f32.mrf.mxu0
        %v1033 = vadd.f32 %v968, %v1032
        %v1034 = vpop.f32.mrf.mxu0
        %v1035 = vadd.f32 %v968, %v1034
        %1036 = vmatmul.bf16.gmra.mxu0 %v948
        %v1037 = vpop.f32.mrf.mxu0
        %v1038 = vadd.f32 %v968, %v1037
        %v1039 = vpop.f32.mrf.mxu0
        %v1040 = vadd.f32 %v968, %v1039
        %1041 = vmatmul.bf16.gmra.mxu0 %v949
        %v1042 = vpop.f32.mrf.mxu0
        %v1043 = vadd.f32 %v968, %v1042
        %v1044 = vpop.f32.mrf.mxu0
        %v1045 = vadd.f32 %v968, %v1044
        %1046 = vdwg.mxu0
        %v1047 = vpack.c.bf16 %v1030, %v1028
        %v1048 = vpack.c.bf16 %v1035, %v1033
        %v1049 = vpack.c.bf16 %v1040, %v1038
        %v1050 = vpack.c.bf16 %v1045, %v1043
        %v1051 = vld [vmem:[%s4] sm:$0xf]
        %v1052 = vld [vmem:[%s4 + $0x4] sm:$0xf]
        %v1053 = vld [vmem:[%s4 + $0x8] sm:$0xf]
        %v1054 = vld [vmem:[%s4 + $0xc] sm:$0xf]
        %v1055 = vld [vmem:[%s4 + $0x10] sm:$0xf]
        %v1056 = vld [vmem:[%s4 + $0x14] sm:$0xf]
        %v1057 = vld [vmem:[%s4 + $0x18] sm:$0xf]
        %v1058 = vld [vmem:[%s4 + $0x1c] sm:$0xf]
        %v1059 = vld [vmem:[%s4 + $0x20] sm:$0xf]
        %v1060 = vld [vmem:[%s4 + $0x24] sm:$0xf]
        %v1061 = vld [vmem:[%s4 + $0x28] sm:$0xf]
        %v1062 = vld [vmem:[%s4 + $0x2c] sm:$0xf]
        %v1063 = vld [vmem:[%s4 + $0x30] sm:$0xf]
        %v1064 = vld [vmem:[%s4 + $0x34] sm:$0xf]
        %v1065 = vld [vmem:[%s4 + $0x38] sm:$0xf]
        %v1066 = vld [vmem:[%s4 + $0x3c] sm:$0xf]
        %v1067 = vld [vmem:[#allocation4] sm:$0x1]
        %v1069 = vperm.slane %v1067, 0
        %v1087 = vunpack.c.l.b16 %v1051
        %v1088 = vunpack.c.l.b16 %v1052
        %v1089 = vunpack.c.l.b16 %v1053
        %v1090 = vunpack.c.l.b16 %v1054
        %v1091 = vunpack.c.l.b16 %v1055
        %v1092 = vunpack.c.l.b16 %v1056
        %v1093 = vunpack.c.l.b16 %v1057
        %v1094 = vunpack.c.l.b16 %v1058
        %v1095 = vunpack.c.l.b16 %v1059
        %v1096 = vunpack.c.l.b16 %v1060
        %v1097 = vunpack.c.l.b16 %v1061
        %v1098 = vunpack.c.l.b16 %v1062
        %v1099 = vunpack.c.l.b16 %v1063
        %v1100 = vunpack.c.l.b16 %v1064
        %v1101 = vunpack.c.l.b16 %v1065
        %v1102 = vunpack.c.l.b16 %v1066
        %v1103 = vpack.c.b16 %v1088, %v1087
        %v1104 = vpack.c.b16 %v1090, %v1089
        %v1105 = vpack.c.b16 %v1092, %v1091
        %v1106 = vpack.c.b16 %v1094, %v1093
        %v1107 = vpack.c.b16 %v1096, %v1095
        %v1108 = vpack.c.b16 %v1098, %v1097
        %v1109 = vpack.c.b16 %v1100, %v1099
        %v1110 = vpack.c.b16 %v1102, %v1101
        %1119 = vmatpush.bf16.msra.mxu0 %v1110
        %1120 = vmatpush.bf16.msra.mxu0 %v1109
        %1121 = vmatpush.bf16.msra.mxu0 %v1108
        %1122 = vmatpush.bf16.msra.mxu0 %v1107
        %1123 = vmatpush.bf16.msra.mxu0 %v1106
        %1124 = vmatpush.bf16.msra.mxu0 %v1105
        %1125 = vmatpush.bf16.msra.mxu0 %v1104
        %1126 = vmatpush.bf16.msra.mxu0 %v1103
        %1127 = vmatmul.bf16.gmra.mxu0 %v1047
        %v1128 = vpop.f32.mrf.mxu0
        %v1129 = vadd.f32 %v1069, %v1128
        %v1130 = vpop.f32.mrf.mxu0
        %v1131 = vadd.f32 %v1069, %v1130
        %1132 = vmatmul.bf16.gmra.mxu0 %v1048
        %v1133 = vpop.f32.mrf.mxu0
        %v1134 = vadd.f32 %v1069, %v1133
        %v1135 = vpop.f32.mrf.mxu0
        %v1136 = vadd.f32 %v1069, %v1135
        %1137 = vmatmul.bf16.gmra.mxu0 %v1049
        %v1138 = vpop.f32.mrf.mxu0
        %v1139 = vadd.f32 %v1069, %v1138
        %v1140 = vpop.f32.mrf.mxu0
        %v1141 = vadd.f32 %v1069, %v1140
        %1142 = vmatmul.bf16.gmra.mxu0 %v1050
        %v1143 = vpop.f32.mrf.mxu0
        %v1144 = vadd.f32 %v1069, %v1143
        %v1145 = vpop.f32.mrf.mxu0
        %v1146 = vadd.f32 %v1069, %v1145
        %1147 = vdwg.mxu0
        %v1148 = vmax.f32 %v1129, 0.0
        %v1149 = vmax.f32 %v1131, 0.0
        %v1150 = vmax.f32 %v1134, 0.0
        %v1151 = vmax.f32 %v1136, 0.0
        %v1152 = vmax.f32 %v1139, 0.0
        %v1153 = vmax.f32 %v1141, 0.0
        %v1154 = vmax.f32 %v1144, 0.0
        %v1155 = vmax.f32 %v1146, 0.0
        %v1156 = vpack.c.bf16 %v1149, %v1148
        %v1157 = vpack.c.bf16 %v1151, %v1150
        %v1158 = vpack.c.bf16 %v1153, %v1152
        %v1159 = vpack.c.bf16 %v1155, %v1154
        %v1160 = vld [vmem:[%s6] sm:$0xf]
        %v1161 = vld [vmem:[%s6 + $0x4] sm:$0xf]
        %v1162 = vld [vmem:[%s6 + $0x8] sm:$0xf]
        %v1163 = vld [vmem:[%s6 + $0xc] sm:$0xf]
        %v1164 = vld [vmem:[%s6 + $0x10] sm:$0xf]
        %v1165 = vld [vmem:[%s6 + $0x14] sm:$0xf]
        %v1166 = vld [vmem:[%s6 + $0x18] sm:$0xf]
        %v1167 = vld [vmem:[%s6 + $0x1c] sm:$0xf]
        %v1168 = vld [vmem:[%s6 + $0x20] sm:$0xf]
        %v1169 = vld [vmem:[%s6 + $0x24] sm:$0xf]
        %v1170 = vld [vmem:[%s6 + $0x28] sm:$0xf]
        %v1171 = vld [vmem:[%s6 + $0x2c] sm:$0xf]
        %v1172 = vld [vmem:[%s6 + $0x30] sm:$0xf]
        %v1173 = vld [vmem:[%s6 + $0x34] sm:$0xf]
        %v1174 = vld [vmem:[%s6 + $0x38] sm:$0xf]
        %v1175 = vld [vmem:[%s6 + $0x3c] sm:$0xf]
        %v1176 = vld [vmem:[#allocation6] sm:$0x1]
        %v1178 = vperm.slane %v1176, 0
        %v1196 = vunpack.c.l.b16 %v1160
        %v1197 = vunpack.c.l.b16 %v1161
        %v1198 = vunpack.c.l.b16 %v1162
        %v1199 = vunpack.c.l.b16 %v1163
        %v1200 = vunpack.c.l.b16 %v1164
        %v1201 = vunpack.c.l.b16 %v1165
        %v1202 = vunpack.c.l.b16 %v1166
        %v1203 = vunpack.c.l.b16 %v1167
        %v1204 = vunpack.c.l.b16 %v1168
        %v1205 = vunpack.c.l.b16 %v1169
        %v1206 = vunpack.c.l.b16 %v1170
        %v1207 = vunpack.c.l.b16 %v1171
        %v1208 = vunpack.c.l.b16 %v1172
        %v1209 = vunpack.c.l.b16 %v1173
        %v1210 = vunpack.c.l.b16 %v1174
        %v1211 = vunpack.c.l.b16 %v1175
        %v1212 = vpack.c.b16 %v1197, %v1196
        %v1213 = vpack.c.b16 %v1199, %v1198
        %v1214 = vpack.c.b16 %v1201, %v1200
        %v1215 = vpack.c.b16 %v1203, %v1202
        %v1216 = vpack.c.b16 %v1205, %v1204
        %v1217 = vpack.c.b16 %v1207, %v1206
        %v1218 = vpack.c.b16 %v1209, %v1208
        %v1219 = vpack.c.b16 %v1211, %v1210
        %1228 = vmatpush.bf16.msra.mxu0 %v1219
        %1229 = vmatpush.bf16.msra.mxu0 %v1218
        %1230 = vmatpush.bf16.msra.mxu0 %v1217
        %1231 = vmatpush.bf16.msra.mxu0 %v1216
        %1232 = vmatpush.bf16.msra.mxu0 %v1215
        %1233 = vmatpush.bf16.msra.mxu0 %v1214
        %1234 = vmatpush.bf16.msra.mxu0 %v1213
        %1235 = vmatpush.bf16.msra.mxu0 %v1212
        %1236 = vmatmul.bf16.gmra.mxu0 %v1156
        %v1237 = vpop.f32.mrf.mxu0
        %v1238 = vadd.f32 %v1178, %v1237
        %v1239 = vpop.f32.mrf.mxu0
        %v1240 = vadd.f32 %v1178, %v1239
        %1241 = vmatmul.bf16.gmra.mxu0 %v1157
        %v1242 = vpop.f32.mrf.mxu0
        %v1243 = vadd.f32 %v1178, %v1242
        %v1244 = vpop.f32.mrf.mxu0
        %v1245 = vadd.f32 %v1178, %v1244
        %1246 = vmatmul.bf16.gmra.mxu0 %v1158
        %v1247 = vpop.f32.mrf.mxu0
        %v1248 = vadd.f32 %v1178, %v1247
        %v1249 = vpop.f32.mrf.mxu0
        %v1250 = vadd.f32 %v1178, %v1249
        %1251 = vmatmul.bf16.gmra.mxu0 %v1159
        %v1252 = vpop.f32.mrf.mxu0
        %v1253 = vadd.f32 %v1178, %v1252
        %v1254 = vpop.f32.mrf.mxu0
        %v1255 = vadd.f32 %v1178, %v1254
        %1256 = vdwg.mxu0
        %v1257 = vmax.f32 %v1238, 0.0
        %v1258 = vmax.f32 %v1240, 0.0
        %v1259 = vmax.f32 %v1243, 0.0
        %v1260 = vmax.f32 %v1245, 0.0
        %v1261 = vmax.f32 %v1248, 0.0
        %v1262 = vmax.f32 %v1250, 0.0
        %v1263 = vmax.f32 %v1253, 0.0
        %v1264 = vmax.f32 %v1255, 0.0
        %v1265 = vpack.c.bf16 %v1258, %v1257
        %v1266 = vpack.c.bf16 %v1260, %v1259
        %v1267 = vpack.c.bf16 %v1262, %v1261
        %v1268 = vpack.c.bf16 %v1264, %v1263
        %v1269 = vld [vmem:[%s8] sm:$0xff]
        %v1270 = vld [vmem:[%s8 + $0x8] sm:$0xff]
        %v1271 = vld [vmem:[%s8 + $0x10] sm:$0xff]
        %v1272 = vld [vmem:[%s8 + $0x18] sm:$0xff]
        %v1273 = vld [vmem:[%s8 + $0x20] sm:$0xff]
        %v1274 = vld [vmem:[%s8 + $0x28] sm:$0xff]
        %v1275 = vld [vmem:[%s8 + $0x30] sm:$0xff]
        %v1276 = vld [vmem:[%s8 + $0x38] sm:$0xff]
        %v1277 = vld [vmem:[%s8 + $0x40] sm:$0xff]
        %v1278 = vld [vmem:[%s8 + $0x48] sm:$0xff]
        %v1279 = vld [vmem:[%s8 + $0x50] sm:$0xff]
        %v1280 = vld [vmem:[%s8 + $0x58] sm:$0xff]
        %v1281 = vld [vmem:[%s8 + $0x60] sm:$0xff]
        %v1282 = vld [vmem:[%s8 + $0x68] sm:$0xff]
        %v1283 = vld [vmem:[%s8 + $0x70] sm:$0xff]
        %v1284 = vld [vmem:[%s8 + $0x78] sm:$0xff]
        %v1285 = vld [vmem:[#allocation7] sm:$0x3]
        %v1287 = vperm.slane %v1285, 0
        %v1288 = vperm.slane %v1285, 1
        %v1307 = vunpack.c.l.b16 %v1269
        %v1308 = vunpack.c.h.b16 %v1269
        %v1309 = vunpack.c.l.b16 %v1270
        %v1310 = vunpack.c.h.b16 %v1270
        %v1311 = vunpack.c.l.b16 %v1271
        %v1312 = vunpack.c.h.b16 %v1271
        %v1313 = vunpack.c.l.b16 %v1272
        %v1314 = vunpack.c.h.b16 %v1272
        %v1315 = vunpack.c.l.b16 %v1273
        %v1316 = vunpack.c.h.b16 %v1273
        %v1317 = vunpack.c.l.b16 %v1274
        %v1318 = vunpack.c.h.b16 %v1274
        %v1319 = vunpack.c.l.b16 %v1275
        %v1320 = vunpack.c.h.b16 %v1275
        %v1321 = vunpack.c.l.b16 %v1276
        %v1322 = vunpack.c.h.b16 %v1276
        %v1323 = vunpack.c.l.b16 %v1277
        %v1324 = vunpack.c.h.b16 %v1277
        %v1325 = vunpack.c.l.b16 %v1278
        %v1326 = vunpack.c.h.b16 %v1278
        %v1327 = vunpack.c.l.b16 %v1279
        %v1328 = vunpack.c.h.b16 %v1279
        %v1329 = vunpack.c.l.b16 %v1280
        %v1330 = vunpack.c.h.b16 %v1280
        %v1331 = vunpack.c.l.b16 %v1281
        %v1332 = vunpack.c.h.b16 %v1281
        %v1333 = vunpack.c.l.b16 %v1282
        %v1334 = vunpack.c.h.b16 %v1282
        %v1335 = vunpack.c.l.b16 %v1283
        %v1336 = vunpack.c.h.b16 %v1283
        %v1337 = vunpack.c.l.b16 %v1284
        %v1338 = vunpack.c.h.b16 %v1284
        %v1339 = vpack.c.b16 %v1309, %v1307
        %v1340 = vpack.c.b16 %v1310, %v1308
        %v1341 = vpack.c.b16 %v1313, %v1311
        %v1342 = vpack.c.b16 %v1314, %v1312
        %v1343 = vpack.c.b16 %v1317, %v1315
        %v1344 = vpack.c.b16 %v1318, %v1316
        %v1345 = vpack.c.b16 %v1321, %v1319
        %v1346 = vpack.c.b16 %v1322, %v1320
        %v1347 = vpack.c.b16 %v1325, %v1323
        %v1348 = vpack.c.b16 %v1326, %v1324
        %v1349 = vpack.c.b16 %v1329, %v1327
        %v1350 = vpack.c.b16 %v1330, %v1328
        %v1351 = vpack.c.b16 %v1333, %v1331
        %v1352 = vpack.c.b16 %v1334, %v1332
        %v1353 = vpack.c.b16 %v1337, %v1335
        %v1354 = vpack.c.b16 %v1338, %v1336
        %1371 = vmatpush.bf16.msra.mxu0 %v1353
        %1372 = vmatpush.bf16.msra.mxu0 %v1351
        %1373 = vmatpush.bf16.msra.mxu0 %v1349
        %1374 = vmatpush.bf16.msra.mxu0 %v1347
        %1375 = vmatpush.bf16.msra.mxu0 %v1345
        %1376 = vmatpush.bf16.msra.mxu0 %v1343
        %1377 = vmatpush.bf16.msra.mxu0 %v1341
        %1378 = vmatpush.bf16.msra.mxu0 %v1339
        %1379 = vmatmul.bf16.gmra.mxu0 %v1265
        %v1380 = vpop.f32.mrf.mxu0
        %v1381 = vadd.f32 %v1287, %v1380
        %v1382 = vpop.f32.mrf.mxu0
        %v1383 = vadd.f32 %v1287, %v1382
        %1384 = vmatmul.bf16.gmra.mxu0 %v1266
        %v1385 = vpop.f32.mrf.mxu0
        %v1386 = vadd.f32 %v1287, %v1385
        %v1387 = vpop.f32.mrf.mxu0
        %v1388 = vadd.f32 %v1287, %v1387
        %1389 = vmatmul.bf16.gmra.mxu0 %v1267
        %v1390 = vpop.f32.mrf.mxu0
        %v1391 = vadd.f32 %v1287, %v1390
        %v1392 = vpop.f32.mrf.mxu0
        %v1393 = vadd.f32 %v1287, %v1392
        %1394 = vmatmul.bf16.gmra.mxu0 %v1268
        %v1395 = vpop.f32.mrf.mxu0
        %v1396 = vadd.f32 %v1287, %v1395
        %v1397 = vpop.f32.mrf.mxu0
        %v1398 = vadd.f32 %v1287, %v1397
        %1399 = vdwg.mxu0
        %1400 = vmatpush.bf16.msra.mxu0 %v1354
        %1401 = vmatpush.bf16.msra.mxu0 %v1352
        %1402 = vmatpush.bf16.msra.mxu0 %v1350
        %1403 = vmatpush.bf16.msra.mxu0 %v1348
        %1404 = vmatpush.bf16.msra.mxu0 %v1346
        %1405 = vmatpush.bf16.msra.mxu0 %v1344
        %1406 = vmatpush.bf16.msra.mxu0 %v1342
        %1407 = vmatpush.bf16.msra.mxu0 %v1340
        %1408 = vmatmul.bf16.gmra.mxu0 %v1265
        %v1409 = vpop.f32.mrf.mxu0
        %v1410 = vadd.f32 %v1288, %v1409
        %v1411 = vpop.f32.mrf.mxu0
        %v1412 = vadd.f32 %v1288, %v1411
        %1413 = vmatmul.bf16.gmra.mxu0 %v1266
        %v1414 = vpop.f32.mrf.mxu0
        %v1415 = vadd.f32 %v1288, %v1414
        %v1416 = vpop.f32.mrf.mxu0
        %v1417 = vadd.f32 %v1288, %v1416
        %1418 = vmatmul.bf16.gmra.mxu0 %v1267
        %v1419 = vpop.f32.mrf.mxu0
        %v1420 = vadd.f32 %v1288, %v1419
        %v1421 = vpop.f32.mrf.mxu0
        %v1422 = vadd.f32 %v1288, %v1421
        %1423 = vmatmul.bf16.gmra.mxu0 %v1268
        %v1424 = vpop.f32.mrf.mxu0
        %v1425 = vadd.f32 %v1288, %v1424
        %v1426 = vpop.f32.mrf.mxu0
        %v1427 = vadd.f32 %v1288, %v1426
        %1428 = vdwg.mxu0
        %1429 = vst [vmem:[%s417 + $0x80] sm:$0xff] %v1381
        %1430 = vst.msk [vmem:[%s417 + $0x88] sm:$0xff] %vm921, %v1410
        %1431 = vst [vmem:[%s417 + $0x90] sm:$0xff] %v1383
        %1432 = vst.msk [vmem:[%s417 + $0x98] sm:$0xff] %vm921, %v1412
        %1433 = vst [vmem:[%s417 + $0xa0] sm:$0xff] %v1386
        %1434 = vst.msk [vmem:[%s417 + $0xa8] sm:$0xff] %vm921, %v1415
        %1435 = vst [vmem:[%s417 + $0xb0] sm:$0xff] %v1388
        %1436 = vst.msk [vmem:[%s417 + $0xb8] sm:$0xff] %vm921, %v1417
        %1437 = vst [vmem:[%s417 + $0xc0] sm:$0xff] %v1391
        %1438 = vst.msk [vmem:[%s417 + $0xc8] sm:$0xff] %vm921, %v1420
        %1439 = vst [vmem:[%s417 + $0xd0] sm:$0xff] %v1393
        %1440 = vst.msk [vmem:[%s417 + $0xd8] sm:$0xff] %vm921, %v1422
        %1441 = vst [vmem:[%s417 + $0xe0] sm:$0xff] %v1396
        %1442 = vst.msk [vmem:[%s417 + $0xe8] sm:$0xff] %vm921, %v1425
        %1443 = vst [vmem:[%s417 + $0xf0] sm:$0xff] %v1398
        %1444 = vst.msk [vmem:[%s417 + $0xf8] sm:$0xff] %vm921, %v1427
        %v1445 = vperm.slane %v419, 2
        %v1446 = vadd.f32 %v420, %v1445
        %v1447 = vadd.f32 %v421, %v1445
        %v1448 = vadd.f32 %v422, %v1445
        %v1449 = vadd.f32 %v423, %v1445
        %v1450 = vadd.f32 %v424, %v1445
        %v1451 = vadd.f32 %v425, %v1445
        %v1452 = vadd.f32 %v426, %v1445
        %v1453 = vadd.f32 %v427, %v1445
        %v1454 = vpack.c.bf16 %v1447, %v1446
        %v1455 = vpack.c.bf16 %v1449, %v1448
        %v1456 = vpack.c.bf16 %v1451, %v1450
        %v1457 = vpack.c.bf16 %v1453, %v1452
        %v1458 = vld [vmem:[%s2] sm:$0xf]
        %v1459 = vld [vmem:[%s2 + $0x4] sm:$0xf]
        %v1460 = vld [vmem:[%s2 + $0x8] sm:$0xf]
        %v1461 = vld [vmem:[%s2 + $0xc] sm:$0xf]
        %v1462 = vld [vmem:[%s2 + $0x10] sm:$0xf]
        %v1463 = vld [vmem:[%s2 + $0x14] sm:$0xf]
        %v1464 = vld [vmem:[%s2 + $0x18] sm:$0xf]
        %v1465 = vld [vmem:[%s2 + $0x1c] sm:$0xf]
        %v1466 = vld [vmem:[%s2 + $0x20] sm:$0xf]
        %v1467 = vld [vmem:[%s2 + $0x24] sm:$0xf]
        %v1468 = vld [vmem:[%s2 + $0x28] sm:$0xf]
        %v1469 = vld [vmem:[%s2 + $0x2c] sm:$0xf]
        %v1470 = vld [vmem:[%s2 + $0x30] sm:$0xf]
        %v1471 = vld [vmem:[%s2 + $0x34] sm:$0xf]
        %v1472 = vld [vmem:[%s2 + $0x38] sm:$0xf]
        %v1473 = vld [vmem:[%s2 + $0x3c] sm:$0xf]
        %v1474 = vld [vmem:[#allocation2] sm:$0x1]
        %v1476 = vperm.slane %v1474, 0
        %v1494 = vunpack.c.l.b16 %v1458
        %v1495 = vunpack.c.l.b16 %v1459
        %v1496 = vunpack.c.l.b16 %v1460
        %v1497 = vunpack.c.l.b16 %v1461
        %v1498 = vunpack.c.l.b16 %v1462
        %v1499 = vunpack.c.l.b16 %v1463
        %v1500 = vunpack.c.l.b16 %v1464
        %v1501 = vunpack.c.l.b16 %v1465
        %v1502 = vunpack.c.l.b16 %v1466
        %v1503 = vunpack.c.l.b16 %v1467
        %v1504 = vunpack.c.l.b16 %v1468
        %v1505 = vunpack.c.l.b16 %v1469
        %v1506 = vunpack.c.l.b16 %v1470
        %v1507 = vunpack.c.l.b16 %v1471
        %v1508 = vunpack.c.l.b16 %v1472
        %v1509 = vunpack.c.l.b16 %v1473
        %v1510 = vpack.c.b16 %v1495, %v1494
        %v1511 = vpack.c.b16 %v1497, %v1496
        %v1512 = vpack.c.b16 %v1499, %v1498
        %v1513 = vpack.c.b16 %v1501, %v1500
        %v1514 = vpack.c.b16 %v1503, %v1502
        %v1515 = vpack.c.b16 %v1505, %v1504
        %v1516 = vpack.c.b16 %v1507, %v1506
        %v1517 = vpack.c.b16 %v1509, %v1508
        %1526 = vmatpush.bf16.msra.mxu0 %v1517
        %1527 = vmatpush.bf16.msra.mxu0 %v1516
        %1528 = vmatpush.bf16.msra.mxu0 %v1515
        %1529 = vmatpush.bf16.msra.mxu0 %v1514
        %1530 = vmatpush.bf16.msra.mxu0 %v1513
        %1531 = vmatpush.bf16.msra.mxu0 %v1512
        %1532 = vmatpush.bf16.msra.mxu0 %v1511
        %1533 = vmatpush.bf16.msra.mxu0 %v1510
        %1534 = vmatmul.bf16.gmra.mxu0 %v1454
        %v1535 = vpop.f32.mrf.mxu0
        %v1536 = vadd.f32 %v1476, %v1535
        %v1537 = vpop.f32.mrf.mxu0
        %v1538 = vadd.f32 %v1476, %v1537
        %1539 = vmatmul.bf16.gmra.mxu0 %v1455
        %v1540 = vpop.f32.mrf.mxu0
        %v1541 = vadd.f32 %v1476, %v1540
        %v1542 = vpop.f32.mrf.mxu0
        %v1543 = vadd.f32 %v1476, %v1542
        %1544 = vmatmul.bf16.gmra.mxu0 %v1456
        %v1545 = vpop.f32.mrf.mxu0
        %v1546 = vadd.f32 %v1476, %v1545
        %v1547 = vpop.f32.mrf.mxu0
        %v1548 = vadd.f32 %v1476, %v1547
        %1549 = vmatmul.bf16.gmra.mxu0 %v1457
        %v1550 = vpop.f32.mrf.mxu0
        %v1551 = vadd.f32 %v1476, %v1550
        %v1552 = vpop.f32.mrf.mxu0
        %v1553 = vadd.f32 %v1476, %v1552
        %1554 = vdwg.mxu0
        %v1555 = vpack.c.bf16 %v1538, %v1536
        %v1556 = vpack.c.bf16 %v1543, %v1541
        %v1557 = vpack.c.bf16 %v1548, %v1546
        %v1558 = vpack.c.bf16 %v1553, %v1551
        %v1559 = vld [vmem:[%s4] sm:$0xf]
        %v1560 = vld [vmem:[%s4 + $0x4] sm:$0xf]
        %v1561 = vld [vmem:[%s4 + $0x8] sm:$0xf]
        %v1562 = vld [vmem:[%s4 + $0xc] sm:$0xf]
        %v1563 = vld [vmem:[%s4 + $0x10] sm:$0xf]
        %v1564 = vld [vmem:[%s4 + $0x14] sm:$0xf]
        %v1565 = vld [vmem:[%s4 + $0x18] sm:$0xf]
        %v1566 = vld [vmem:[%s4 + $0x1c] sm:$0xf]
        %v1567 = vld [vmem:[%s4 + $0x20] sm:$0xf]
        %v1568 = vld [vmem:[%s4 + $0x24] sm:$0xf]
        %v1569 = vld [vmem:[%s4 + $0x28] sm:$0xf]
        %v1570 = vld [vmem:[%s4 + $0x2c] sm:$0xf]
        %v1571 = vld [vmem:[%s4 + $0x30] sm:$0xf]
        %v1572 = vld [vmem:[%s4 + $0x34] sm:$0xf]
        %v1573 = vld [vmem:[%s4 + $0x38] sm:$0xf]
        %v1574 = vld [vmem:[%s4 + $0x3c] sm:$0xf]
        %v1575 = vld [vmem:[#allocation4] sm:$0x1]
        %v1577 = vperm.slane %v1575, 0
        %v1595 = vunpack.c.l.b16 %v1559
        %v1596 = vunpack.c.l.b16 %v1560
        %v1597 = vunpack.c.l.b16 %v1561
        %v1598 = vunpack.c.l.b16 %v1562
        %v1599 = vunpack.c.l.b16 %v1563
        %v1600 = vunpack.c.l.b16 %v1564
        %v1601 = vunpack.c.l.b16 %v1565
        %v1602 = vunpack.c.l.b16 %v1566
        %v1603 = vunpack.c.l.b16 %v1567
        %v1604 = vunpack.c.l.b16 %v1568
        %v1605 = vunpack.c.l.b16 %v1569
        %v1606 = vunpack.c.l.b16 %v1570
        %v1607 = vunpack.c.l.b16 %v1571
        %v1608 = vunpack.c.l.b16 %v1572
        %v1609 = vunpack.c.l.b16 %v1573
        %v1610 = vunpack.c.l.b16 %v1574
        %v1611 = vpack.c.b16 %v1596, %v1595
        %v1612 = vpack.c.b16 %v1598, %v1597
        %v1613 = vpack.c.b16 %v1600, %v1599
        %v1614 = vpack.c.b16 %v1602, %v1601
        %v1615 = vpack.c.b16 %v1604, %v1603
        %v1616 = vpack.c.b16 %v1606, %v1605
        %v1617 = vpack.c.b16 %v1608, %v1607
        %v1618 = vpack.c.b16 %v1610, %v1609
        %1627 = vmatpush.bf16.msra.mxu0 %v1618
        %1628 = vmatpush.bf16.msra.mxu0 %v1617
        %1629 = vmatpush.bf16.msra.mxu0 %v1616
        %1630 = vmatpush.bf16.msra.mxu0 %v1615
        %1631 = vmatpush.bf16.msra.mxu0 %v1614
        %1632 = vmatpush.bf16.msra.mxu0 %v1613
        %1633 = vmatpush.bf16.msra.mxu0 %v1612
        %1634 = vmatpush.bf16.msra.mxu0 %v1611
        %1635 = vmatmul.bf16.gmra.mxu0 %v1555
        %v1636 = vpop.f32.mrf.mxu0
        %v1637 = vadd.f32 %v1577, %v1636
        %v1638 = vpop.f32.mrf.mxu0
        %v1639 = vadd.f32 %v1577, %v1638
        %1640 = vmatmul.bf16.gmra.mxu0 %v1556
        %v1641 = vpop.f32.mrf.mxu0
        %v1642 = vadd.f32 %v1577, %v1641
        %v1643 = vpop.f32.mrf.mxu0
        %v1644 = vadd.f32 %v1577, %v1643
        %1645 = vmatmul.bf16.gmra.mxu0 %v1557
        %v1646 = vpop.f32.mrf.mxu0
        %v1647 = vadd.f32 %v1577, %v1646
        %v1648 = vpop.f32.mrf.mxu0
        %v1649 = vadd.f32 %v1577, %v1648
        %1650 = vmatmul.bf16.gmra.mxu0 %v1558
        %v1651 = vpop.f32.mrf.mxu0
        %v1652 = vadd.f32 %v1577, %v1651
        %v1653 = vpop.f32.mrf.mxu0
        %v1654 = vadd.f32 %v1577, %v1653
        %1655 = vdwg.mxu0
        %v1656 = vmax.f32 %v1637, 0.0
        %v1657 = vmax.f32 %v1639, 0.0
        %v1658 = vmax.f32 %v1642, 0.0
        %v1659 = vmax.f32 %v1644, 0.0
        %v1660 = vmax.f32 %v1647, 0.0
        %v1661 = vmax.f32 %v1649, 0.0
        %v1662 = vmax.f32 %v1652, 0.0
        %v1663 = vmax.f32 %v1654, 0.0
        %v1664 = vpack.c.bf16 %v1657, %v1656
        %v1665 = vpack.c.bf16 %v1659, %v1658
        %v1666 = vpack.c.bf16 %v1661, %v1660
        %v1667 = vpack.c.bf16 %v1663, %v1662
        %v1668 = vld [vmem:[%s6] sm:$0xf]
        %v1669 = vld [vmem:[%s6 + $0x4] sm:$0xf]
        %v1670 = vld [vmem:[%s6 + $0x8] sm:$0xf]
        %v1671 = vld [vmem:[%s6 + $0xc] sm:$0xf]
        %v1672 = vld [vmem:[%s6 + $0x10] sm:$0xf]
        %v1673 = vld [vmem:[%s6 + $0x14] sm:$0xf]
        %v1674 = vld [vmem:[%s6 + $0x18] sm:$0xf]
        %v1675 = vld [vmem:[%s6 + $0x1c] sm:$0xf]
        %v1676 = vld [vmem:[%s6 + $0x20] sm:$0xf]
        %v1677 = vld [vmem:[%s6 + $0x24] sm:$0xf]
        %v1678 = vld [vmem:[%s6 + $0x28] sm:$0xf]
        %v1679 = vld [vmem:[%s6 + $0x2c] sm:$0xf]
        %v1680 = vld [vmem:[%s6 + $0x30] sm:$0xf]
        %v1681 = vld [vmem:[%s6 + $0x34] sm:$0xf]
        %v1682 = vld [vmem:[%s6 + $0x38] sm:$0xf]
        %v1683 = vld [vmem:[%s6 + $0x3c] sm:$0xf]
        %v1684 = vld [vmem:[#allocation6] sm:$0x1]
        %v1686 = vperm.slane %v1684, 0
        %v1704 = vunpack.c.l.b16 %v1668
        %v1705 = vunpack.c.l.b16 %v1669
        %v1706 = vunpack.c.l.b16 %v1670
        %v1707 = vunpack.c.l.b16 %v1671
        %v1708 = vunpack.c.l.b16 %v1672
        %v1709 = vunpack.c.l.b16 %v1673
        %v1710 = vunpack.c.l.b16 %v1674
        %v1711 = vunpack.c.l.b16 %v1675
        %v1712 = vunpack.c.l.b16 %v1676
        %v1713 = vunpack.c.l.b16 %v1677
        %v1714 = vunpack.c.l.b16 %v1678
        %v1715 = vunpack.c.l.b16 %v1679
        %v1716 = vunpack.c.l.b16 %v1680
        %v1717 = vunpack.c.l.b16 %v1681
        %v1718 = vunpack.c.l.b16 %v1682
        %v1719 = vunpack.c.l.b16 %v1683
        %v1720 = vpack.c.b16 %v1705, %v1704
        %v1721 = vpack.c.b16 %v1707, %v1706
        %v1722 = vpack.c.b16 %v1709, %v1708
        %v1723 = vpack.c.b16 %v1711, %v1710
        %v1724 = vpack.c.b16 %v1713, %v1712
        %v1725 = vpack.c.b16 %v1715, %v1714
        %v1726 = vpack.c.b16 %v1717, %v1716
        %v1727 = vpack.c.b16 %v1719, %v1718
        %1736 = vmatpush.bf16.msra.mxu0 %v1727
        %1737 = vmatpush.bf16.msra.mxu0 %v1726
        %1738 = vmatpush.bf16.msra.mxu0 %v1725
        %1739 = vmatpush.bf16.msra.mxu0 %v1724
        %1740 = vmatpush.bf16.msra.mxu0 %v1723
        %1741 = vmatpush.bf16.msra.mxu0 %v1722
        %1742 = vmatpush.bf16.msra.mxu0 %v1721
        %1743 = vmatpush.bf16.msra.mxu0 %v1720
        %1744 = vmatmul.bf16.gmra.mxu0 %v1664
        %v1745 = vpop.f32.mrf.mxu0
        %v1746 = vadd.f32 %v1686, %v1745
        %v1747 = vpop.f32.mrf.mxu0
        %v1748 = vadd.f32 %v1686, %v1747
        %1749 = vmatmul.bf16.gmra.mxu0 %v1665
        %v1750 = vpop.f32.mrf.mxu0
        %v1751 = vadd.f32 %v1686, %v1750
        %v1752 = vpop.f32.mrf.mxu0
        %v1753 = vadd.f32 %v1686, %v1752
        %1754 = vmatmul.bf16.gmra.mxu0 %v1666
        %v1755 = vpop.f32.mrf.mxu0
        %v1756 = vadd.f32 %v1686, %v1755
        %v1757 = vpop.f32.mrf.mxu0
        %v1758 = vadd.f32 %v1686, %v1757
        %1759 = vmatmul.bf16.gmra.mxu0 %v1667
        %v1760 = vpop.f32.mrf.mxu0
        %v1761 = vadd.f32 %v1686, %v1760
        %v1762 = vpop.f32.mrf.mxu0
        %v1763 = vadd.f32 %v1686, %v1762
        %1764 = vdwg.mxu0
        %v1765 = vmax.f32 %v1746, 0.0
        %v1766 = vmax.f32 %v1748, 0.0
        %v1767 = vmax.f32 %v1751, 0.0
        %v1768 = vmax.f32 %v1753, 0.0
        %v1769 = vmax.f32 %v1756, 0.0
        %v1770 = vmax.f32 %v1758, 0.0
        %v1771 = vmax.f32 %v1761, 0.0
        %v1772 = vmax.f32 %v1763, 0.0
        %v1773 = vpack.c.bf16 %v1766, %v1765
        %v1774 = vpack.c.bf16 %v1768, %v1767
        %v1775 = vpack.c.bf16 %v1770, %v1769
        %v1776 = vpack.c.bf16 %v1772, %v1771
        %v1777 = vld [vmem:[%s8] sm:$0xff]
        %v1778 = vld [vmem:[%s8 + $0x8] sm:$0xff]
        %v1779 = vld [vmem:[%s8 + $0x10] sm:$0xff]
        %v1780 = vld [vmem:[%s8 + $0x18] sm:$0xff]
        %v1781 = vld [vmem:[%s8 + $0x20] sm:$0xff]
        %v1782 = vld [vmem:[%s8 + $0x28] sm:$0xff]
        %v1783 = vld [vmem:[%s8 + $0x30] sm:$0xff]
        %v1784 = vld [vmem:[%s8 + $0x38] sm:$0xff]
        %v1785 = vld [vmem:[%s8 + $0x40] sm:$0xff]
        %v1786 = vld [vmem:[%s8 + $0x48] sm:$0xff]
        %v1787 = vld [vmem:[%s8 + $0x50] sm:$0xff]
        %v1788 = vld [vmem:[%s8 + $0x58] sm:$0xff]
        %v1789 = vld [vmem:[%s8 + $0x60] sm:$0xff]
        %v1790 = vld [vmem:[%s8 + $0x68] sm:$0xff]
        %v1791 = vld [vmem:[%s8 + $0x70] sm:$0xff]
        %v1792 = vld [vmem:[%s8 + $0x78] sm:$0xff]
        %v1793 = vld [vmem:[#allocation7] sm:$0x3]
        %v1795 = vperm.slane %v1793, 0
        %v1796 = vperm.slane %v1793, 1
        %v1815 = vunpack.c.l.b16 %v1777
        %v1816 = vunpack.c.h.b16 %v1777
        %v1817 = vunpack.c.l.b16 %v1778
        %v1818 = vunpack.c.h.b16 %v1778
        %v1819 = vunpack.c.l.b16 %v1779
        %v1820 = vunpack.c.h.b16 %v1779
        %v1821 = vunpack.c.l.b16 %v1780
        %v1822 = vunpack.c.h.b16 %v1780
        %v1823 = vunpack.c.l.b16 %v1781
        %v1824 = vunpack.c.h.b16 %v1781
        %v1825 = vunpack.c.l.b16 %v1782
        %v1826 = vunpack.c.h.b16 %v1782
        %v1827 = vunpack.c.l.b16 %v1783
        %v1828 = vunpack.c.h.b16 %v1783
        %v1829 = vunpack.c.l.b16 %v1784
        %v1830 = vunpack.c.h.b16 %v1784
        %v1831 = vunpack.c.l.b16 %v1785
        %v1832 = vunpack.c.h.b16 %v1785
        %v1833 = vunpack.c.l.b16 %v1786
        %v1834 = vunpack.c.h.b16 %v1786
        %v1835 = vunpack.c.l.b16 %v1787
        %v1836 = vunpack.c.h.b16 %v1787
        %v1837 = vunpack.c.l.b16 %v1788
        %v1838 = vunpack.c.h.b16 %v1788
        %v1839 = vunpack.c.l.b16 %v1789
        %v1840 = vunpack.c.h.b16 %v1789
        %v1841 = vunpack.c.l.b16 %v1790
        %v1842 = vunpack.c.h.b16 %v1790
        %v1843 = vunpack.c.l.b16 %v1791
        %v1844 = vunpack.c.h.b16 %v1791
        %v1845 = vunpack.c.l.b16 %v1792
        %v1846 = vunpack.c.h.b16 %v1792
        %v1847 = vpack.c.b16 %v1817, %v1815
        %v1848 = vpack.c.b16 %v1818, %v1816
        %v1849 = vpack.c.b16 %v1821, %v1819
        %v1850 = vpack.c.b16 %v1822, %v1820
        %v1851 = vpack.c.b16 %v1825, %v1823
        %v1852 = vpack.c.b16 %v1826, %v1824
        %v1853 = vpack.c.b16 %v1829, %v1827
        %v1854 = vpack.c.b16 %v1830, %v1828
        %v1855 = vpack.c.b16 %v1833, %v1831
        %v1856 = vpack.c.b16 %v1834, %v1832
        %v1857 = vpack.c.b16 %v1837, %v1835
        %v1858 = vpack.c.b16 %v1838, %v1836
        %v1859 = vpack.c.b16 %v1841, %v1839
        %v1860 = vpack.c.b16 %v1842, %v1840
        %v1861 = vpack.c.b16 %v1845, %v1843
        %v1862 = vpack.c.b16 %v1846, %v1844
        %1879 = vmatpush.bf16.msra.mxu0 %v1861
        %1880 = vmatpush.bf16.msra.mxu0 %v1859
        %1881 = vmatpush.bf16.msra.mxu0 %v1857
        %1882 = vmatpush.bf16.msra.mxu0 %v1855
        %1883 = vmatpush.bf16.msra.mxu0 %v1853
        %1884 = vmatpush.bf16.msra.mxu0 %v1851
        %1885 = vmatpush.bf16.msra.mxu0 %v1849
        %1886 = vmatpush.bf16.msra.mxu0 %v1847
        %1887 = vmatmul.bf16.gmra.mxu0 %v1773
        %v1888 = vpop.f32.mrf.mxu0
        %v1889 = vadd.f32 %v1795, %v1888
        %v1890 = vpop.f32.mrf.mxu0
        %v1891 = vadd.f32 %v1795, %v1890
        %1892 = vmatmul.bf16.gmra.mxu0 %v1774
        %v1893 = vpop.f32.mrf.mxu0
        %v1894 = vadd.f32 %v1795, %v1893
        %v1895 = vpop.f32.mrf.mxu0
        %v1896 = vadd.f32 %v1795, %v1895
        %1897 = vmatmul.bf16.gmra.mxu0 %v1775
        %v1898 = vpop.f32.mrf.mxu0
        %v1899 = vadd.f32 %v1795, %v1898
        %v1900 = vpop.f32.mrf.mxu0
        %v1901 = vadd.f32 %v1795, %v1900
        %1902 = vmatmul.bf16.gmra.mxu0 %v1776
        %v1903 = vpop.f32.mrf.mxu0
        %v1904 = vadd.f32 %v1795, %v1903
        %v1905 = vpop.f32.mrf.mxu0
        %v1906 = vadd.f32 %v1795, %v1905
        %1907 = vdwg.mxu0
        %1908 = vmatpush.bf16.msra.mxu0 %v1862
        %1909 = vmatpush.bf16.msra.mxu0 %v1860
        %1910 = vmatpush.bf16.msra.mxu0 %v1858
        %1911 = vmatpush.bf16.msra.mxu0 %v1856
        %1912 = vmatpush.bf16.msra.mxu0 %v1854
        %1913 = vmatpush.bf16.msra.mxu0 %v1852
        %1914 = vmatpush.bf16.msra.mxu0 %v1850
        %1915 = vmatpush.bf16.msra.mxu0 %v1848
        %1916 = vmatmul.bf16.gmra.mxu0 %v1773
        %v1917 = vpop.f32.mrf.mxu0
        %v1918 = vadd.f32 %v1796, %v1917
        %v1919 = vpop.f32.mrf.mxu0
        %v1920 = vadd.f32 %v1796, %v1919
        %1921 = vmatmul.bf16.gmra.mxu0 %v1774
        %v1922 = vpop.f32.mrf.mxu0
        %v1923 = vadd.f32 %v1796, %v1922
        %v1924 = vpop.f32.mrf.mxu0
        %v1925 = vadd.f32 %v1796, %v1924
        %1926 = vmatmul.bf16.gmra.mxu0 %v1775
        %v1927 = vpop.f32.mrf.mxu0
        %v1928 = vadd.f32 %v1796, %v1927
        %v1929 = vpop.f32.mrf.mxu0
        %v1930 = vadd.f32 %v1796, %v1929
        %1931 = vmatmul.bf16.gmra.mxu0 %v1776
        %v1932 = vpop.f32.mrf.mxu0
        %v1933 = vadd.f32 %v1796, %v1932
        %v1934 = vpop.f32.mrf.mxu0
        %v1935 = vadd.f32 %v1796, %v1934
        %1936 = vdwg.mxu0
        %1937 = vst [vmem:[%s417 + $0x100] sm:$0xff] %v1889
        %1938 = vst.msk [vmem:[%s417 + $0x108] sm:$0xff] %vm921, %v1918
        %1939 = vst [vmem:[%s417 + $0x110] sm:$0xff] %v1891
        %1940 = vst.msk [vmem:[%s417 + $0x118] sm:$0xff] %vm921, %v1920
        %1941 = vst [vmem:[%s417 + $0x120] sm:$0xff] %v1894
        %1942 = vst.msk [vmem:[%s417 + $0x128] sm:$0xff] %vm921, %v1923
        %1943 = vst [vmem:[%s417 + $0x130] sm:$0xff] %v1896
        %1944 = vst.msk [vmem:[%s417 + $0x138] sm:$0xff] %vm921, %v1925
        %1945 = vst [vmem:[%s417 + $0x140] sm:$0xff] %v1899
        %1946 = vst.msk [vmem:[%s417 + $0x148] sm:$0xff] %vm921, %v1928
        %1947 = vst [vmem:[%s417 + $0x150] sm:$0xff] %v1901
        %1948 = vst.msk [vmem:[%s417 + $0x158] sm:$0xff] %vm921, %v1930
        %1949 = vst [vmem:[%s417 + $0x160] sm:$0xff] %v1904
        %1950 = vst.msk [vmem:[%s417 + $0x168] sm:$0xff] %vm921, %v1933
        %1951 = vst [vmem:[%s417 + $0x170] sm:$0xff] %v1906
        %1952 = vst.msk [vmem:[%s417 + $0x178] sm:$0xff] %vm921, %v1935
        %s1953 = smul.u32 24, %s24
        %p1954 = scmp.lt.s32.totalorder %s1953, 95
        %s1955 = scalar_select %p1954, %s1953, 95
        %s1956 = smul.addr %s1955, 2
        %s1957 = smul.addr %s1956, 8
        %s1958 = scalar_lea.vmem %s10, %s1957
        // Predicated region
        $region77: #{net_forward.4} parent=59 // pred_check
          %p1959 = pneg %p257
        $region78: #{net_forward.4} parent=59 // pred_check_branch
          %1961 = sbr.rel (%p1959) target = $region80
        $region79: #{net_forward.4} parent=59 // pred_region
          %s1962 = smul.u32 24, %s24
        $region80: #{net_forward.4} parent=59 // pred_fallthru
          _
      $region60: #{net_forward.4} parent=5 // pred_fallthru
        _
      %p1963 = scmp.le.s32.totalorder 2, %s19
      // Predicated region
      $region81: #{net_forward.4} parent=5 // pred_check
        %p1964 = pneg %p1963
      $region82: #{net_forward.4} parent=5 // pred_check_branch
        %1966 = sbr.rel (%p1964) target = $region84
      $region83: #{net_forward.4} parent=5 // pred_region
        %s1967 = ssub.s32 %s19, 2
        // Predicated region
        $region85: #{net_forward.4} parent=83 // pred_check
          %p1968 = pneg %p263
        $region86: #{net_forward.4} parent=83 // pred_check_branch
          %1970 = sbr.rel (%p1968) target = $region88
        $region87: #{net_forward.4} parent=83 // pred_region
          %s1971 = smul.u32 24, %s25
          %p1972 = scmp.lt.s32.totalorder %s1971, 95
          %s1973 = scalar_select %p1972, %s1971, 95
          %s1974 = smul.addr %s1973, 2
          %s1975 = smul.addr %s1974, 8
          %s1976 = scalar_lea.vmem %s10, %s1975
        $region88: #{net_forward.4} parent=83 // pred_fallthru
          _
      $region84: #{net_forward.4} parent=5 // pred_fallthru
        _
    $region6: #{net_forward.4} parent=1 // loop_footer
      %s23 = sadd.s32 1, %s19
    $region7: #{net_forward.4} parent=1 // loop_footer_branch
      %18 = sbr.rel target = $region3
    $region8: #{net_forward.4} parent=1 // loop_exit
      _
    %1977 = vsyncpa [#allocation3], 1
    %s1978 = scalar_lea.sflag [#allocation3], 1
    %1979 = vsyncpa %s1978, 1
    %1980 = vsyncpa [#allocation5], 1
    %1981 = vsyncpa [#allocation8], 1

</llo_original>
